<compile_context>
chip_gen: v6e
topology: v6e:2x2x1
jax: 0.10.0
libtpu: 0.0.40
codegen_flags: <defaults>
</compile_context>

<pallas_src>
import functools
import math

import jax
import jax.numpy as jnp
from jax.experimental import pallas as pl
from jax.experimental.pallas import tpu as pltpu

_NEG_INF = -1.0e30  # finite "minus infinity": exp(_NEG_INF - m) underflows to 0


def _attention_kernel(n_heads, dim_per_head, eps, seq_valid, seq_tile,
                      q_ref, qt_ref, k_ref, v_ref,
                      wv_ref, bv_ref, gamma_ref, beta_ref,
                      out_ref,
                      m_scr, l_scr, ctx_scr):
    """Grid = (batch_blocks, seq_blocks); seq axis is an online-softmax reduction.

    q_ref   : (bb, D)      raw queries (residual)                [input dtype]
    qt_ref  : (bb, H, D)   scale * (q@Wq+bq)_h @ W_k_h^T         [kv dtype]
    k_ref   : (bb, ts, D)  raw keys tile     v_ref: (bb, ts, D)  [kv dtype]
    wv_ref  : (D, H, dh)   W_v reshaped per head (f32)
    bv_ref, gamma_ref, beta_ref : (1, D) f32
    out_ref : (bb, D)
    scratch : m, l (bb, H, 1) f32; ctx (bb, H, D) f32
    """
    D = n_heads * dim_per_head
    s_idx = pl.program_id(1)
    ns = pl.num_programs(1)

    @pl.when(s_idx == 0)
    def _init():
        m_scr[...] = jnp.full(m_scr.shape, _NEG_INF, jnp.float32)
        l_scr[...] = jnp.zeros(l_scr.shape, jnp.float32)
        ctx_scr[...] = jnp.zeros(ctx_scr.shape, jnp.float32)

    # ---- streaming phase: one raw K/V tile, online softmax ----
    k_tile = k_ref[...]
    v_tile = v_ref[...]
    scores = jnp.einsum('bhd,bsd->bhs', qt_ref[...], k_tile,
                        preferred_element_type=jnp.float32)       # (bb, H, ts) f32
    if seq_valid % seq_tile != 0:
        # Sequence was padded in the wrapper: mask tail columns (static branch).
        col = s_idx * seq_tile + jax.lax.broadcasted_iota(jnp.int32, scores.shape, 2)
        scores = jnp.where(col < seq_valid, scores, _NEG_INF)
    m_prev = m_scr[...]
    m_new = jnp.maximum(m_prev, jnp.max(scores, axis=-1, keepdims=True))
    alpha = jnp.exp(m_prev - m_new)
    scores = jnp.exp(scores - m_new)                              # reuse: scores -> p
    l_scr[...] = alpha * l_scr[...] + jnp.sum(scores, axis=-1, keepdims=True)
    ctx_scr[...] = alpha * ctx_scr[...] + jnp.einsum(
        'bhs,bsd->bhd', scores.astype(v_tile.dtype), v_tile,
        preferred_element_type=jnp.float32)
    m_scr[...] = m_new

    # ---- finalize: deferred W_v + b_v, residual add, LayerNorm ----
    @pl.when(s_idx == ns - 1)
    def _finalize():
        bb = out_ref.shape[0]
        ctx = ctx_scr[...] / l_scr[...]                           # exact normalization
        attn_h = jnp.einsum('bhd,dhe->bhe', ctx, wv_ref[...],
                            preferred_element_type=jnp.float32)   # (bb, H, dh)
        attn = attn_h.reshape(bb, D) + bv_ref[...]
        x = attn + q_ref[...].astype(jnp.float32)
        mean = jnp.mean(x, axis=-1, keepdims=True)
        cen = x - mean
        var = jnp.mean(cen * cen, axis=-1, keepdims=True)
        normed = cen * jax.lax.rsqrt(var + eps)
        out_ref[...] = (normed * gamma_ref[...] + beta_ref[...]).astype(out_ref.dtype)


def _round_up(x, m):
    return ((x + m - 1) // m) * m


def _vmem_capacity_bytes():
    try:
        return int(pltpu.get_tpu_info().vmem_capacity_bytes)
    except Exception:
        return 64 * 1024 * 1024  # conservative fallback (v7x per-TensorCore VMEM)


def _choose_tiles(B, S, D, H, kv_bytes, vmem_cap):
    """Pick (bb, B_pad, ts, S_pad) under a per-generation VMEM budget."""
    if B <= 8:
        bb, b_pad = B, B
    else:
        b_pad = _round_up(B, 8)
        bb = 8
    tile_budget = int(vmem_cap * 0.6)
    # Fixed VMEM estimate: ctx accumulator + weight block + q/q_tilde/out blocks
    # (conservatively assume double-buffering) + 1 MiB slack for small operands.
    fixed = (bb * H * D * 4
             + 2 * D * D * 4
             + 2 * bb * H * D * kv_bytes
             + 4 * bb * D * 4
             + (1 << 20))
    per_col = 2 * 2 * bb * D * kv_bytes          # K + V, double-buffered, per key
    avail = max(tile_budget - fixed, 128 * per_col)
    ts_cap = max(128, min(2048, (avail // per_col) // 128 * 128))
    if S <= ts_cap:
        s_pad = _round_up(S, 8)                  # single tile, sublane-aligned
        ts = s_pad
    else:
        ts = 0
        for cand in range(ts_cap, 127, -128):    # largest 128-aligned divisor of S
            if S % cand == 0:
                ts = cand
                break
        if ts == 0:
            ts = ts_cap                          # no aligned divisor: pad + mask
        s_pad = _round_up(S, ts)
    return bb, b_pad, ts, s_pad


def attention_forward(queries, keys, values, params, n_heads,
                      kv_dtype=jnp.bfloat16, eps=1e-5):
    """queries (B, D), keys/values (B, S, D) -> (B, D).

    kv_dtype is the streaming dtype for K/V and q_tilde (bf16 halves HBM bytes
    and uses the native MXU); softmax / accumulation stay in f32.
    """
    B, D = queries.shape
    S = keys.shape[1]
    H = n_heads
    dh = D // H
    scale = 1.0 / math.sqrt(dh)
    hp = jax.lax.Precision.HIGHEST

    # ---- hoisted (tiny) XLA work: q projection with W_k absorbed ----
    q_proj = jnp.dot(queries, params['wq'], precision=hp,
                     preferred_element_type=jnp.float32) + params['bq'][0]   # (B, D)
    wk_hed = params['wk'].T.reshape(H, dh, D)        # [h,e,d] = W_k[d, h*dh+e]
    q_tilde = scale * jnp.einsum('bhe,hed->bhd', q_proj.reshape(B, H, dh), wk_hed,
                                 precision=hp, preferred_element_type=jnp.float32)
    # NOTE: the q . b_k bias term is dropped — softmax is shift-invariant per row.

    wv_r = params['wv'].reshape(D, H, dh)            # [d,h,e] = W_v[d, h*dh+e]

    kv_bytes = jnp.dtype(kv_dtype).itemsize
    vmem_cap = _vmem_capacity_bytes()
    bb, b_pad, ts, s_pad = _choose_tiles(B, S, D, H, kv_bytes, vmem_cap)

    q_tilde = q_tilde.astype(kv_dtype)
    keys_s = keys.astype(kv_dtype)
    values_s = values.astype(kv_dtype)
    queries_p = queries

    if s_pad != S:    # ragged S: pad; padded columns are masked to -inf in-kernel
        pad = ((0, 0), (0, s_pad - S), (0, 0))
        keys_s = jnp.pad(keys_s, pad)
        values_s = jnp.pad(values_s, pad)
    if b_pad != B:    # ragged B: pad batch to a sublane multiple
        bp = b_pad - B
        queries_p = jnp.pad(queries_p, ((0, bp), (0, 0)))
        q_tilde = jnp.pad(q_tilde, ((0, bp), (0, 0), (0, 0)))
        keys_s = jnp.pad(keys_s, ((0, bp), (0, 0), (0, 0)))
        values_s = jnp.pad(values_s, ((0, bp), (0, 0), (0, 0)))

    nb = b_pad // bb
    ns = s_pad // ts

    kernel = functools.partial(_attention_kernel, H, dh, eps, S, ts)

    def _const_spec(shape):
        zero = (0,) * len(shape)
        try:   # single-buffer the constant operands (fetched once)
            return pl.BlockSpec(shape, lambda b, s: zero, pipeline_mode=pl.Buffered(1))
        except Exception:
            return pl.BlockSpec(shape, lambda b, s: zero)

    grid_spec = pltpu.PrefetchScalarGridSpec(
        num_scalar_prefetch=0,
        grid=(nb, ns),
        in_specs=[
            pl.BlockSpec((bb, D), lambda b, s: (b, 0)),          # queries (residual)
            pl.BlockSpec((bb, H, D), lambda b, s: (b, 0, 0)),    # q_tilde
            pl.BlockSpec((bb, ts, D), lambda b, s: (b, s, 0)),   # keys tile
            pl.BlockSpec((bb, ts, D), lambda b, s: (b, s, 0)),   # values tile
            _const_spec((D, H, dh)),                             # W_v (per head)
            _const_spec((1, D)),                                 # b_v
            _const_spec((1, D)),                                 # gamma
            _const_spec((1, D)),                                 # beta
        ],
        out_specs=pl.BlockSpec((bb, D), lambda b, s: (b, 0)),
        scratch_shapes=[
            pltpu.VMEM((bb, H, 1), jnp.float32),   # running max
            pltpu.VMEM((bb, H, 1), jnp.float32),   # running denominator
            pltpu.VMEM((bb, H, D), jnp.float32),   # context accumulator
        ],
    )

    # TODO(synk): when nb == 1 on v7x the second TensorCore idles; splitting S
    # across cores with a partial (m, l, ctx) merge would recover up to 2x.
    out = pl.pallas_call(
        kernel,
        out_shape=jax.ShapeDtypeStruct((b_pad, D), queries.dtype),
        grid_spec=grid_spec,
        compiler_params=pltpu.CompilerParams(
            dimension_semantics=("parallel", "arbitrary"),
            vmem_limit_bytes=int(vmem_cap * 0.85),
        ),
    )(queries_p, q_tilde, keys_s, values_s, wv_r,
      params['bv'], params['gamma'], params['beta'])

    return out[:B] if b_pad != B else out


def _reference_forward(queries, keys, values, params, n_heads):
    """Pure-JAX reference mirroring the PyTorch forward exactly."""
    B, D = queries.shape
    S = keys.shape[1]
    dh = D // n_heads
    hp = jax.lax.Precision.HIGHEST

    q = jnp.dot(queries, params['wq'], precision=hp) + params['bq'][0]   # (B, D)
    k = jnp.dot(keys, params['wk'], precision=hp) + params['bk'][0]      # (B, S, D)
    v = jnp.dot(values, params['wv'], precision=hp) + params['bv'][0]    # (B, S, D)

    q = q.reshape(B * n_heads, 1, dh)
    k = k.reshape(B, S, n_heads, dh).transpose(0, 2, 1, 3).reshape(B * n_heads, S, dh)
    v = v.reshape(B, S, n_heads, dh).transpose(0, 2, 1, 3).reshape(B * n_heads, S, dh)

    w = jnp.einsum('bqd,bkd->bqk', q, k, precision=hp) / math.sqrt(dh)
    attn = jnp.einsum('bqk,bkd->bqd', jax.nn.softmax(w, axis=-1), v, precision=hp)
    attn = attn.reshape(B, n_heads * dh)

    x = attn + queries
    mean = x.mean(-1, keepdims=True)
    var = ((x - mean) ** 2).mean(-1, keepdims=True)
    normed = (x - mean) / jnp.sqrt(var + 1e-5)
    return normed * params['gamma'][0] + params['beta'][0]


if __name__ == "__main__":
    B, S, D, H = 2, 8, 32, 2

    key = jax.random.PRNGKey(0)
    kq, kk, kv, kwq, kwk, kwv, kbq, kbk, kbv, kk2, kv2 = jax.random.split(key, 11)

    scale = 1.0 / math.sqrt(D)
    params = {
        'wq': jax.random.uniform(kwq, (D, D), jnp.float32, -scale, scale),
        'wk': jax.random.uniform(kwk, (D, D), jnp.float32, -scale, scale),
        'wv': jax.random.uniform(kwv, (D, D), jnp.float32, -scale, scale),
        'bq': jax.random.uniform(kbq, (1, D), jnp.float32, -scale, scale),
        'bk': jax.random.uniform(kbk, (1, D), jnp.float32, -scale, scale),
        'bv': jax.random.uniform(kbv, (1, D), jnp.float32, -scale, scale),
        'gamma': jnp.ones((1, D), jnp.float32),   # LayerNorm weight init
        'beta': jnp.zeros((1, D), jnp.float32),   # LayerNorm bias init
    }

    queries = jax.random.normal(kq, (B, D), dtype=jnp.float32)
    keys = jax.random.normal(kk, (B, S, D), dtype=jnp.float32)
    values = jax.random.normal(kv, (B, S, D), dtype=jnp.float32)

    ref = _reference_forward(queries, keys, values, params, n_heads=H)

    # 1) f32 K/V streaming (tight tolerance — exact division, no approx recip).
    out = jax.block_until_ready(
        attention_forward(queries, keys, values, params, n_heads=H,
                          kv_dtype=jnp.float32))
    assert out.shape == (B, D)
    assert jnp.allclose(out, ref, atol=2e-3, rtol=2e-3), "f32 path mismatch"

    # 2) default bf16 K/V streaming (HBM-bandwidth optimization).
    out_bf16 = jax.block_until_ready(
        attention_forward(queries, keys, values, params, n_heads=H))
    assert jnp.allclose(out_bf16, ref, atol=5e-2, rtol=5e-2), "bf16 path mismatch"

    # 3) ragged S (exercises the pad + in-kernel tail-mask path).
    S2 = 37
    keys2 = jax.random.normal(kk2, (B, S2, D), dtype=jnp.float32)
    values2 = jax.random.normal(kv2, (B, S2, D), dtype=jnp.float32)
    out2 = jax.block_until_ready(
        attention_forward(queries, keys2, values2, params, n_heads=H,
                          kv_dtype=jnp.float32))
    ref2 = _reference_forward(queries, keys2, values2, params, n_heads=H)
    assert jnp.allclose(out2, ref2, atol=2e-3, rtol=2e-3), "masked path mismatch"

    print("KERNEL_OK")
</pallas_src>

<mosaic_0001>
module attributes {stable_mosaic.version = 11 : i64} {
  func.func @_attention_kernel(%arg0: i32, %arg1: i32, %arg2: memref<2x32xf32, #tpu.memory_space<vmem>>, %arg3: memref<2x2x32xf32, #tpu.memory_space<vmem>>, %arg4: memref<2x8x32xf32, #tpu.memory_space<vmem>>, %arg5: memref<2x8x32xf32, #tpu.memory_space<vmem>>, %arg6: memref<32x2x16xf32, #tpu.memory_space<vmem>>, %arg7: memref<1x32xf32, #tpu.memory_space<vmem>>, %arg8: memref<1x32xf32, #tpu.memory_space<vmem>>, %arg9: memref<1x32xf32, #tpu.memory_space<vmem>>, %arg10: memref<2x32xf32, #tpu.memory_space<vmem>>, %arg11: memref<2x2x1xf32, #tpu.memory_space<vmem>>, %arg12: memref<2x2x1xf32, #tpu.memory_space<vmem>>, %arg13: memref<2x2x32xf32, #tpu.memory_space<vmem>>) attributes {dimension_semantics = [#tpu.dimension_semantics<parallel>, #tpu.dimension_semantics<arbitrary>], iteration_bounds = array<i64: 1, 1>, scalar_prefetch = 0 : i64, scratch_operands = 3 : i64, tpu.core_type = #tpu.core_type<tc>, window_params = [{transform_indices = @transform_0, window_bounds = array<i64: 2, 32>}, {transform_indices = @transform_1, window_bounds = array<i64: 2, 2, 32>}, {transform_indices = @transform_2, window_bounds = array<i64: 2, 8, 32>}, {transform_indices = @transform_3, window_bounds = array<i64: 2, 8, 32>}, {pipeline_mode = #tpu.pipeline_mode<synchronous>, transform_indices = @transform_4, window_bounds = array<i64: 32, 2, 16>}, {pipeline_mode = #tpu.pipeline_mode<synchronous>, transform_indices = @transform_5, window_bounds = array<i64: 1, 32>}, {pipeline_mode = #tpu.pipeline_mode<synchronous>, transform_indices = @transform_6, window_bounds = array<i64: 1, 32>}, {pipeline_mode = #tpu.pipeline_mode<synchronous>, transform_indices = @transform_7, window_bounds = array<i64: 1, 32>}, {transform_indices = @transform_8, window_bounds = array<i64: 2, 32>}]} {
    %c0_i32 = arith.constant 0 : i32
    %0 = arith.cmpi eq, %arg1, %c0_i32 : i32
    %1 = arith.extui %0 : i1 to i32
    %c0_i32_0 = arith.constant 0 : i32
    %2 = arith.cmpi ne, %1, %c0_i32_0 : i32
    scf.if %2 {
      %cst_32 = arith.constant -1.000000e+30 : f32
      %32 = vector.broadcast %cst_32 : f32 to vector<2x2x1xf32>
      %c0_33 = arith.constant 0 : index
      %c0_34 = arith.constant 0 : index
      %c0_35 = arith.constant 0 : index
      %33 = vector.load %arg11[%c0_33, %c0_34, %c0_35] : memref<2x2x1xf32, #tpu.memory_space<vmem>>, vector<2x2x1xf32>
      tpu.vector_store %arg11[%c0_33, %c0_34, %c0_35], %32 {strides = array<i32>} : memref<2x2x1xf32, #tpu.memory_space<vmem>>, vector<2x2x1xf32>,
      %cst_36 = arith.constant 0.000000e+00 : f32
      %34 = vector.broadcast %cst_36 : f32 to vector<2x2x1xf32>
      %c0_37 = arith.constant 0 : index
      %c0_38 = arith.constant 0 : index
      %c0_39 = arith.constant 0 : index
      %35 = vector.load %arg12[%c0_37, %c0_38, %c0_39] : memref<2x2x1xf32, #tpu.memory_space<vmem>>, vector<2x2x1xf32>
      tpu.vector_store %arg12[%c0_37, %c0_38, %c0_39], %34 {strides = array<i32>} : memref<2x2x1xf32, #tpu.memory_space<vmem>>, vector<2x2x1xf32>,
      %cst_40 = arith.constant 0.000000e+00 : f32
      %36 = vector.broadcast %cst_40 : f32 to vector<2x2x32xf32>
      %c0_41 = arith.constant 0 : index
      %c0_42 = arith.constant 0 : index
      %c0_43 = arith.constant 0 : index
      %37 = vector.load %arg13[%c0_41, %c0_42, %c0_43] : memref<2x2x32xf32, #tpu.memory_space<vmem>>, vector<2x2x32xf32>
      tpu.vector_store %arg13[%c0_41, %c0_42, %c0_43], %36 {strides = array<i32>} : memref<2x2x32xf32, #tpu.memory_space<vmem>>, vector<2x2x32xf32>,
    } else {
    }
    %c0 = arith.constant 0 : index
    %c0_1 = arith.constant 0 : index
    %c0_2 = arith.constant 0 : index
    %3 = vector.load %arg4[%c0, %c0_1, %c0_2] : memref<2x8x32xf32, #tpu.memory_space<vmem>>, vector<2x8x32xf32>
    %c0_3 = arith.constant 0 : index
    %c0_4 = arith.constant 0 : index
    %c0_5 = arith.constant 0 : index
    %4 = vector.load %arg5[%c0_3, %c0_4, %c0_5] : memref<2x8x32xf32, #tpu.memory_space<vmem>>, vector<2x8x32xf32>
    %c0_6 = arith.constant 0 : index
    %c0_7 = arith.constant 0 : index
    %c0_8 = arith.constant 0 : index
    %5 = vector.load %arg3[%c0_6, %c0_7, %c0_8] : memref<2x2x32xf32, #tpu.memory_space<vmem>>, vector<2x2x32xf32>
    "tpu.trace_start"() <{level = 10 : i32, message = "bhd,bsd->bhs"}> : () -> ()
    %cst = arith.constant dense<0.000000e+00> : vector<2x2x8xf32>
    %6 = tpu.matmul %5, %3, %cst {dimension_numbers = #tpu.dot_dimension_numbers<[2], [2], [1], [1], [0, 0, 0, 1, 1, 1], [0], [0]>} : vector<2x2x32xf32>, vector<2x8x32xf32>, vector<2x2x8xf32> -> vector<2x2x8xf32>
    "tpu.trace_stop"() : () -> ()
    %c0_9 = arith.constant 0 : index
    %c0_10 = arith.constant 0 : index
    %c0_11 = arith.constant 0 : index
    %7 = vector.load %arg11[%c0_9, %c0_10, %c0_11] : memref<2x2x1xf32, #tpu.memory_space<vmem>>, vector<2x2x1xf32>
    %cst_12 = arith.constant dense<0xFF800000> : vector<2x2xf32>
    %8 = vector.multi_reduction <maximumf>, %6, %cst_12 [2] : vector<2x2x8xf32> to vector<2x2xf32>
    %9 = vector.shape_cast %8 : vector<2x2xf32> to vector<2x2x1xf32>
    %10 = arith.maximumf %7, %9 : vector<2x2x1xf32>
    %11 = arith.subf %7, %10 : vector<2x2x1xf32>
    %12 = math.exp %11 : vector<2x2x1xf32>
    %13 = vector.broadcast %10 : vector<2x2x1xf32> to vector<2x2x8xf32>
    %14 = arith.subf %6, %13 : vector<2x2x8xf32>
    %15 = math.exp %14 : vector<2x2x8xf32>
    %c0_13 = arith.constant 0 : index
    %c0_14 = arith.constant 0 : index
    %c0_15 = arith.constant 0 : index
    %16 = vector.load %arg12[%c0_13, %c0_14, %c0_15] : memref<2x2x1xf32, #tpu.memory_space<vmem>>, vector<2x2x1xf32>
    %17 = arith.mulf %12, %16 : vector<2x2x1xf32>
    %cst_16 = arith.constant dense<0.000000e+00> : vector<2x2xf32>
    %18 = vector.multi_reduction <add>, %15, %cst_16 [2] : vector<2x2x8xf32> to vector<2x2xf32>
    %19 = vector.shape_cast %18 : vector<2x2xf32> to vector<2x2x1xf32>
    %20 = arith.addf %17, %19 : vector<2x2x1xf32>
    %c0_17 = arith.constant 0 : index
    %c0_18 = arith.constant 0 : index
    %c0_19 = arith.constant 0 : index
    %21 = vector.load %arg12[%c0_17, %c0_18, %c0_19] : memref<2x2x1xf32, #tpu.memory_space<vmem>>, vector<2x2x1xf32>
    tpu.vector_store %arg12[%c0_17, %c0_18, %c0_19], %20 {strides = array<i32>} : memref<2x2x1xf32, #tpu.memory_space<vmem>>, vector<2x2x1xf32>,
    %c0_20 = arith.constant 0 : index
    %c0_21 = arith.constant 0 : index
    %c0_22 = arith.constant 0 : index
    %22 = vector.load %arg13[%c0_20, %c0_21, %c0_22] : memref<2x2x32xf32, #tpu.memory_space<vmem>>, vector<2x2x32xf32>
    %23 = vector.broadcast %12 : vector<2x2x1xf32> to vector<2x2x32xf32>
    %24 = arith.mulf %23, %22 : vector<2x2x32xf32>
    "tpu.trace_start"() <{level = 10 : i32, message = "bhs,bsd->bhd"}> : () -> ()
    %cst_23 = arith.constant dense<0.000000e+00> : vector<2x2x32xf32>
    %25 = tpu.matmul %15, %4, %cst_23 {dimension_numbers = #tpu.dot_dimension_numbers<[2], [1], [1], [2], [0, 0, 0, 1, 1, 2], [0], [0]>} : vector<2x2x8xf32>, vector<2x8x32xf32>, vector<2x2x32xf32> -> vector<2x2x32xf32>
    "tpu.trace_stop"() : () -> ()
    %26 = arith.addf %24, %25 : vector<2x2x32xf32>
    %c0_24 = arith.constant 0 : index
    %c0_25 = arith.constant 0 : index
    %c0_26 = arith.constant 0 : index
    %27 = vector.load %arg13[%c0_24, %c0_25, %c0_26] : memref<2x2x32xf32, #tpu.memory_space<vmem>>, vector<2x2x32xf32>
    tpu.vector_store %arg13[%c0_24, %c0_25, %c0_26], %26 {strides = array<i32>} : memref<2x2x32xf32, #tpu.memory_space<vmem>>, vector<2x2x32xf32>,
    %c0_27 = arith.constant 0 : index
    %c0_28 = arith.constant 0 : index
    %c0_29 = arith.constant 0 : index
    %28 = vector.load %arg11[%c0_27, %c0_28, %c0_29] : memref<2x2x1xf32, #tpu.memory_space<vmem>>, vector<2x2x1xf32>
    tpu.vector_store %arg11[%c0_27, %c0_28, %c0_29], %10 {strides = array<i32>} : memref<2x2x1xf32, #tpu.memory_space<vmem>>, vector<2x2x1xf32>,
    %c0_i32_30 = arith.constant 0 : i32
    %29 = arith.cmpi eq, %arg1, %c0_i32_30 : i32
    %30 = arith.extui %29 : i1 to i32
    %c0_i32_31 = arith.constant 0 : i32
    %31 = arith.cmpi ne, %30, %c0_i32_31 : i32
    scf.if %31 {
      %c0_32 = arith.constant 0 : index
      %c0_33 = arith.constant 0 : index
      %c0_34 = arith.constant 0 : index
      %32 = vector.load %arg13[%c0_32, %c0_33, %c0_34] : memref<2x2x32xf32, #tpu.memory_space<vmem>>, vector<2x2x32xf32>
      %c0_35 = arith.constant 0 : index
      %c0_36 = arith.constant 0 : index
      %c0_37 = arith.constant 0 : index
      %33 = vector.load %arg12[%c0_35, %c0_36, %c0_37] : memref<2x2x1xf32, #tpu.memory_space<vmem>>, vector<2x2x1xf32>
      %34 = vector.broadcast %33 : vector<2x2x1xf32> to vector<2x2x32xf32>
      %35 = arith.divf %32, %34 : vector<2x2x32xf32>
      %c0_38 = arith.constant 0 : index
      %c0_39 = arith.constant 0 : index
      %c0_40 = arith.constant 0 : index
      %36 = vector.load %arg6[%c0_38, %c0_39, %c0_40] : memref<32x2x16xf32, #tpu.memory_space<vmem>>, vector<32x2x16xf32>
      "tpu.trace_start"() <{level = 10 : i32, message = "bhd,dhe->bhe"}> : () -> ()
      %cst_41 = arith.constant dense<0.000000e+00> : vector<2x16x2xf32>
      %37 = tpu.matmul %36, %35, %cst_41 {dimension_numbers = #tpu.dot_dimension_numbers<[0], [2], [2], [0], [0, 1, 0, 2, 1, 0], [1], [1]>} : vector<32x2x16xf32>, vector<2x2x32xf32>, vector<2x16x2xf32> -> vector<2x16x2xf32>
      %38 = tpu.transpose %37, [2, 0, 1] : vector<2x16x2xf32> -> vector<2x2x16xf32>
      "tpu.trace_stop"() : () -> ()
      %39 = vector.shape_cast %38 : vector<2x2x16xf32> to vector<2x32xf32>
      %c0_42 = arith.constant 0 : index
      %c0_43 = arith.constant 0 : index
      %40 = vector.load %arg7[%c0_42, %c0_43] : memref<1x32xf32, #tpu.memory_space<vmem>>, vector<1x32xf32>
      %41 = vector.broadcast %40 : vector<1x32xf32> to vector<2x32xf32>
      %42 = arith.addf %39, %41 : vector<2x32xf32>
      %c0_44 = arith.constant 0 : index
      %c0_45 = arith.constant 0 : index
      %43 = vector.load %arg2[%c0_44, %c0_45] : memref<2x32xf32, #tpu.memory_space<vmem>>, vector<2x32xf32>
      %44 = arith.addf %42, %43 : vector<2x32xf32>
      %cst_46 = arith.constant dense<0.000000e+00> : vector<2xf32>
      %45 = vector.multi_reduction <add>, %44, %cst_46 [1] : vector<2x32xf32> to vector<2xf32>
      %46 = vector.shape_cast %45 : vector<2xf32> to vector<2x1xf32>
      %cst_47 = arith.constant 3.200000e+01 : f32
      %47 = vector.broadcast %cst_47 : f32 to vector<2x1xf32>
      %48 = arith.divf %46, %47 : vector<2x1xf32>
      %49 = vector.broadcast %48 : vector<2x1xf32> to vector<2x32xf32>
      %50 = arith.subf %44, %49 : vector<2x32xf32>
      %51 = arith.mulf %50, %50 : vector<2x32xf32>
      %cst_48 = arith.constant dense<0.000000e+00> : vector<2xf32>
      %52 = vector.multi_reduction <add>, %51, %cst_48 [1] : vector<2x32xf32> to vector<2xf32>
      %53 = vector.shape_cast %52 : vector<2xf32> to vector<2x1xf32>
      %cst_49 = arith.constant 3.200000e+01 : f32
      %54 = vector.broadcast %cst_49 : f32 to vector<2x1xf32>
      %55 = arith.divf %53, %54 : vector<2x1xf32>
      %cst_50 = arith.constant 9.99999974E-6 : f32
      %56 = vector.broadcast %cst_50 : f32 to vector<2x1xf32>
      %57 = arith.addf %55, %56 : vector<2x1xf32>
      %58 = math.rsqrt %57 : vector<2x1xf32>
      %59 = vector.broadcast %58 : vector<2x1xf32> to vector<2x32xf32>
      %60 = arith.mulf %50, %59 : vector<2x32xf32>
      %c0_51 = arith.constant 0 : index
      %c0_52 = arith.constant 0 : index
      %61 = vector.load %arg8[%c0_51, %c0_52] : memref<1x32xf32, #tpu.memory_space<vmem>>, vector<1x32xf32>
      %62 = vector.broadcast %61 : vector<1x32xf32> to vector<2x32xf32>
      %63 = arith.mulf %60, %62 : vector<2x32xf32>
      %c0_53 = arith.constant 0 : index
      %c0_54 = arith.constant 0 : index
      %64 = vector.load %arg9[%c0_53, %c0_54] : memref<1x32xf32, #tpu.memory_space<vmem>>, vector<1x32xf32>
      %65 = vector.broadcast %64 : vector<1x32xf32> to vector<2x32xf32>
      %66 = arith.addf %63, %65 : vector<2x32xf32>
      %c0_55 = arith.constant 0 : index
      %c0_56 = arith.constant 0 : index
      %67 = vector.load %arg10[%c0_55, %c0_56] : memref<2x32xf32, #tpu.memory_space<vmem>>, vector<2x32xf32>
      tpu.vector_store %arg10[%c0_55, %c0_56], %66 {strides = array<i32>} : memref<2x32xf32, #tpu.memory_space<vmem>>, vector<2x32xf32>,
    } else {
    }
    return
  }
  func.func @transform_0(%arg0: i32, %arg1: i32) -> (i32, i32) {
    %c0_i32 = arith.constant 0 : i32
    %c0_i32_0 = arith.constant 0 : i32
    return %arg0, %c0_i32 : i32, i32
  }
  func.func @transform_1(%arg0: i32, %arg1: i32) -> (i32, i32, i32) {
    %c0_i32 = arith.constant 0 : i32
    %c0_i32_0 = arith.constant 0 : i32
    %c0_i32_1 = arith.constant 0 : i32
    return %arg0, %c0_i32, %c0_i32_0 : i32, i32, i32
  }
  func.func @transform_2(%arg0: i32, %arg1: i32) -> (i32, i32, i32) {
    %c0_i32 = arith.constant 0 : i32
    %c0_i32_0 = arith.constant 0 : i32
    return %arg0, %arg1, %c0_i32 : i32, i32, i32
  }
  func.func @transform_3(%arg0: i32, %arg1: i32) -> (i32, i32, i32) {
    %c0_i32 = arith.constant 0 : i32
    %c0_i32_0 = arith.constant 0 : i32
    return %arg0, %arg1, %c0_i32 : i32, i32, i32
  }
  func.func @transform_4(%arg0: i32, %arg1: i32) -> (i32, i32, i32) {
    %c0_i32 = arith.constant 0 : i32
    %c0_i32_0 = arith.constant 0 : i32
    %c0_i32_1 = arith.constant 0 : i32
    %c0_i32_2 = arith.constant 0 : i32
    return %c0_i32, %c0_i32_0, %c0_i32_1 : i32, i32, i32
  }
  func.func @transform_5(%arg0: i32, %arg1: i32) -> (i32, i32) {
    %c0_i32 = arith.constant 0 : i32
    %c0_i32_0 = arith.constant 0 : i32
    %c0_i32_1 = arith.constant 0 : i32
    return %c0_i32, %c0_i32_0 : i32, i32
  }
  func.func @transform_6(%arg0: i32, %arg1: i32) -> (i32, i32) {
    %c0_i32 = arith.constant 0 : i32
    %c0_i32_0 = arith.constant 0 : i32
    %c0_i32_1 = arith.constant 0 : i32
    return %c0_i32, %c0_i32_0 : i32, i32
  }
  func.func @transform_7(%arg0: i32, %arg1: i32) -> (i32, i32) {
    %c0_i32 = arith.constant 0 : i32
    %c0_i32_0 = arith.constant 0 : i32
    %c0_i32_1 = arith.constant 0 : i32
    return %c0_i32, %c0_i32_0 : i32, i32
  }
  func.func @transform_8(%arg0: i32, %arg1: i32) -> (i32, i32) {
    %c0_i32 = arith.constant 0 : i32
    %c0_i32_0 = arith.constant 0 : i32
    return %arg0, %c0_i32 : i32, i32
  }
}

</mosaic_0001>

<llo_original>
// kernel: tpu_custom_call.1
$region0: #{tpu_custom_call.1}
  #allocation0 [shape = 'u32[]', space=smem, size = 0x4, offset = 0x4, fixed_abs, tag = 'smem constant byte address 0x4 - core index']
  #allocation1 [shape = 'u32[144,128]{1,0:T(1,128)}', space=vmem, size = 0x12000, scoped, tag = 'internal scratch']
  #allocation2 [shape = 'f32[2,2,1]{2,1,0:T(2,128)}', space=vmem, size = 0x800, scoped, tag = 'scratch operand']
  #allocation3 [shape = 'f32[2,2,1]{2,1,0:T(2,128)}', space=vmem, size = 0x800, scoped, tag = 'scratch operand']
  #allocation4 [shape = 'f32[2,2,32]{2,1,0:T(2,128)}', space=vmem, size = 0x800, scoped, tag = 'scratch operand']
  %s0 = inlined_call_operand.vmem [shape: f32[2,32], index: 0, kind: input, shape index: {}]
  %s1 = inlined_call_operand.vmem [shape: f32[2,2,32], index: 1, kind: input, shape index: {}]
  %s2 = inlined_call_operand.vmem [shape: f32[2,8,32], index: 2, kind: input, shape index: {}]
  %s3 = inlined_call_operand.vmem [shape: f32[2,8,32], index: 3, kind: input, shape index: {}]
  %s4 = inlined_call_operand.vmem [shape: f32[32,2,16], index: 4, kind: input, shape index: {}]
  %s5 = inlined_call_operand.vmem [shape: f32[1,32], index: 5, kind: input, shape index: {}]
  %s6 = inlined_call_operand.vmem [shape: f32[1,32], index: 6, kind: input, shape index: {}]
  %s7 = inlined_call_operand.vmem [shape: f32[1,32], index: 7, kind: input, shape index: {}]
  %s8 = inlined_call_operand.hbm [shape: f32[2,32], index: 8, kind: output, shape index: {}]
  %s9 = sld [smem:[#allocation0]]
  $region50: #{tpu_custom_call.1} parent=0
    _
  %s11 = ssub.s32 1, %s9
  %s12 = scalar_select 0, %s11, %s9
  $region1: #{tpu_custom_call.1} parent=0
    #allocation5 [shape = 'u8[1024]{0}', space=vmem, size = 0x400, scoped, tag = 'output window, operand 0, single buffered']
    #allocation6 [shape = 's32[1]{0}', space=sflag, size = 0x4, scoped, tag = 'scoped memory for tpu_custom_call.1']
    %13 = vsyncpa [#allocation6], 0
    // Predicated region
    $region2: #{tpu_custom_call.1} parent=1 // pred_check
      _
    $region3: #{tpu_custom_call.1} parent=1 // pred_check_branch
      %15 = sbr.rel (0) target = $region5
    $region4: #{tpu_custom_call.1} parent=1 // pred_region
      _
    $region5: #{tpu_custom_call.1} parent=1 // pred_fallthru
      _
    // Predicated region
    $region6: #{tpu_custom_call.1} parent=1 // pred_check
      _
    $region7: #{tpu_custom_call.1} parent=1 // pred_check_branch
      %17 = sbr.rel (0) target = $region9
    $region8: #{tpu_custom_call.1} parent=1 // pred_region
      _
    $region9: #{tpu_custom_call.1} parent=1 // pred_fallthru
      _
    // Predicated region
    $region10: #{tpu_custom_call.1} parent=1 // pred_check
      _
    $region11: #{tpu_custom_call.1} parent=1 // pred_check_branch
      %19 = sbr.rel (0) target = $region13
    $region12: #{tpu_custom_call.1} parent=1 // pred_region
      _
    $region13: #{tpu_custom_call.1} parent=1 // pred_fallthru
      _
    // Predicated region
    $region14: #{tpu_custom_call.1} parent=1 // pred_check
      _
    $region15: #{tpu_custom_call.1} parent=1 // pred_check_branch
      %21 = sbr.rel (0) target = $region17
    $region16: #{tpu_custom_call.1} parent=1 // pred_region
      _
    $region17: #{tpu_custom_call.1} parent=1 // pred_fallthru
      _
    // Predicated region
    $region18: #{tpu_custom_call.1} parent=1 // pred_check
      _
    $region19: #{tpu_custom_call.1} parent=1 // pred_check_branch
      %23 = sbr.rel (0) target = $region21
    $region20: #{tpu_custom_call.1} parent=1 // pred_region
      _
    $region21: #{tpu_custom_call.1} parent=1 // pred_fallthru
      _
    // Predicated region
    $region22: #{tpu_custom_call.1} parent=1 // pred_check
      _
    $region23: #{tpu_custom_call.1} parent=1 // pred_check_branch
      %25 = sbr.rel (0) target = $region25
    $region24: #{tpu_custom_call.1} parent=1 // pred_region
      _
    $region25: #{tpu_custom_call.1} parent=1 // pred_fallthru
      _
    // Predicated region
    $region26: #{tpu_custom_call.1} parent=1 // pred_check
      _
    $region27: #{tpu_custom_call.1} parent=1 // pred_check_branch
      %27 = sbr.rel (0) target = $region29
    $region28: #{tpu_custom_call.1} parent=1 // pred_region
      _
    $region29: #{tpu_custom_call.1} parent=1 // pred_fallthru
      _
    // Predicated region
    $region30: #{tpu_custom_call.1} parent=1 // pred_check
      _
    $region31: #{tpu_custom_call.1} parent=1 // pred_check_branch
      %29 = sbr.rel (0) target = $region33
    $region32: #{tpu_custom_call.1} parent=1 // pred_region
      _
    $region33: #{tpu_custom_call.1} parent=1 // pred_fallthru
      _
    %p30 = scmp.eq.s32.totalorder 0, 0
    // Predicated region
    $region34: #{tpu_custom_call.1} parent=1 // pred_check
      %p31 = pneg %p30
    $region35: #{tpu_custom_call.1} parent=1 // pred_check_branch
      %33 = sbr.rel (%p31) target = $region37
    $region36: #{tpu_custom_call.1} parent=1 // pred_region
      %vm34 = vcmask 1024
      %35 = vst.msk [vmem:[#allocation2] sm:$0x3] %vm34, -1e+30
      %36 = vst.msk [vmem:[#allocation2 + $0x2] sm:$0x3] %vm34, -1e+30
      %37 = vst.msk [vmem:[#allocation3] sm:$0x3] %vm34, 0.0
      %38 = vst.msk [vmem:[#allocation3 + $0x2] sm:$0x3] %vm34, 0.0
      %vm39 = vcmask 254976
      %40 = vst.msk [vmem:[#allocation4] sm:$0x3] %vm39, 0.0
      %41 = vst.msk [vmem:[#allocation4 + $0x2] sm:$0x3] %vm39, 0.0
    $region37: #{tpu_custom_call.1} parent=1 // pred_fallthru
      _
    %v42 = vld [vmem:[%s2] sm:$0xff]
    %v43 = vld [vmem:[%s2 + $0x8] sm:$0xff]
    %v44 = vld [vmem:[%s3] sm:$0xff]
    %v45 = vld [vmem:[%s3 + $0x8] sm:$0xff]
    %v46 = vld [vmem:[%s1] sm:$0x3]
    %v47 = vld [vmem:[%s1 + $0x2] sm:$0x3]
    %vm48 = vcmask 261120
    %v50 = vsel %vm48, %v46, 0
    %v53 = vsel %vm48, %v42, 0
    %55 = vmatprep.subr.mxu0 0.0
    %56 = vmatpush1.xpose.msra.mxu0 0.0
    %57 = vmatprep.subr.mxu0 0.0
    %58 = vmatpush1.xpose.msra.mxu0 0.0
    %59 = vmatprep.subr.mxu0 0.0
    %60 = vmatpush1.xpose.msra.mxu0 0.0
    %61 = vmatprep.subr.mxu0 0.0
    %62 = vmatpush1.xpose.msra.mxu0 0.0
    %63 = vmatprep.subr.mxu0 0.0
    %64 = vmatpush1.xpose.msra.mxu0 0.0
    %65 = vmatprep.subr.mxu0 0.0
    %66 = vmatpush1.xpose.msra.mxu0 0.0
    %67 = vmatprep.subr.mxu0 0.0
    %68 = vmatpush1.xpose.msra.mxu0 0.0
    %69 = vmatprep.subr.mxu0 0.0
    %70 = vmatpush1.xpose.msra.mxu0 0.0
    %71 = vmatprep.subr.mxu0 0.0
    %72 = vmatpush1.xpose.msra.mxu0 0.0
    %73 = vmatprep.subr.mxu0 0.0
    %74 = vmatpush1.xpose.msra.mxu0 0.0
    %75 = vmatprep.subr.mxu0 0.0
    %76 = vmatpush1.xpose.msra.mxu0 0.0
    %77 = vmatprep.subr.mxu0 0.0
    %78 = vmatpush1.xpose.msra.mxu0 0.0
    %79 = vmatprep.subr.mxu0 0.0
    %80 = vmatpush1.xpose.msra.mxu0 0.0
    %81 = vmatprep.subr.mxu0 0.0
    %82 = vmatpush1.xpose.msra.mxu0 0.0
    %83 = vmatprep.subr.mxu0 0.0
    %84 = vmatpush1.xpose.msra.mxu0 0.0
    %85 = vmatprep.subr.mxu0 0.0
    %86 = vmatpush1.xpose.msra.mxu0 %v53
    %87 = vmatprep.subr.mxu0 0.0
    %88 = vmatpush2.xpose.msra.mxu0 0.0
    %89 = vmatprep.subr.mxu0 0.0
    %90 = vmatpush2.xpose.msra.mxu0 0.0
    %91 = vmatprep.subr.mxu0 0.0
    %92 = vmatpush2.xpose.msra.mxu0 0.0
    %93 = vmatprep.subr.mxu0 0.0
    %94 = vmatpush2.xpose.msra.mxu0 0.0
    %95 = vmatprep.subr.mxu0 0.0
    %96 = vmatpush2.xpose.msra.mxu0 0.0
    %97 = vmatprep.subr.mxu0 0.0
    %98 = vmatpush2.xpose.msra.mxu0 0.0
    %99 = vmatprep.subr.mxu0 0.0
    %100 = vmatpush2.xpose.msra.mxu0 0.0
    %101 = vmatprep.subr.mxu0 0.0
    %102 = vmatpush2.xpose.msra.mxu0 0.0
    %103 = vmatprep.subr.mxu0 0.0
    %104 = vmatpush2.xpose.msra.mxu0 0.0
    %105 = vmatprep.subr.mxu0 0.0
    %106 = vmatpush2.xpose.msra.mxu0 0.0
    %107 = vmatprep.subr.mxu0 0.0
    %108 = vmatpush2.xpose.msra.mxu0 0.0
    %109 = vmatprep.subr.mxu0 0.0
    %110 = vmatpush2.xpose.msra.mxu0 0.0
    %111 = vmatprep.subr.mxu0 0.0
    %112 = vmatpush2.xpose.msra.mxu0 0.0
    %113 = vmatprep.subr.mxu0 0.0
    %114 = vmatpush2.xpose.msra.mxu0 0.0
    %115 = vmatprep.subr.mxu0 0.0
    %116 = vmatpush2.xpose.msra.mxu0 0.0
    %117 = vmatprep.subr.mxu0 0.0
    %118 = vmatpush2.xpose.msra.mxu0 0.0
    %119 = vmatprep.mubr.f32.mxu0 0.0
    %120 = vmatmul.mubr.f32.gmra.mxu0 %v50
    %v121 = vpop.f32.mrf.mxu0
    %v122 = vadd.f32 0.0, %v121
    %v123 = vpop.f32.mrf.mxu0
    %124 = vdwg.mxu0
    %v126 = vsel %vm48, %v47, 0
    %v129 = vsel %vm48, %v43, 0
    %131 = vmatprep.subr.mxu0 0.0
    %132 = vmatpush1.xpose.msra.mxu0 0.0
    %133 = vmatprep.subr.mxu0 0.0
    %134 = vmatpush1.xpose.msra.mxu0 0.0
    %135 = vmatprep.subr.mxu0 0.0
    %136 = vmatpush1.xpose.msra.mxu0 0.0
    %137 = vmatprep.subr.mxu0 0.0
    %138 = vmatpush1.xpose.msra.mxu0 0.0
    %139 = vmatprep.subr.mxu0 0.0
    %140 = vmatpush1.xpose.msra.mxu0 0.0
    %141 = vmatprep.subr.mxu0 0.0
    %142 = vmatpush1.xpose.msra.mxu0 0.0
    %143 = vmatprep.subr.mxu0 0.0
    %144 = vmatpush1.xpose.msra.mxu0 0.0
    %145 = vmatprep.subr.mxu0 0.0
    %146 = vmatpush1.xpose.msra.mxu0 0.0
    %147 = vmatprep.subr.mxu0 0.0
    %148 = vmatpush1.xpose.msra.mxu0 0.0
    %149 = vmatprep.subr.mxu0 0.0
    %150 = vmatpush1.xpose.msra.mxu0 0.0
    %151 = vmatprep.subr.mxu0 0.0
    %152 = vmatpush1.xpose.msra.mxu0 0.0
    %153 = vmatprep.subr.mxu0 0.0
    %154 = vmatpush1.xpose.msra.mxu0 0.0
    %155 = vmatprep.subr.mxu0 0.0
    %156 = vmatpush1.xpose.msra.mxu0 0.0
    %157 = vmatprep.subr.mxu0 0.0
    %158 = vmatpush1.xpose.msra.mxu0 0.0
    %159 = vmatprep.subr.mxu0 0.0
    %160 = vmatpush1.xpose.msra.mxu0 0.0
    %161 = vmatprep.subr.mxu0 0.0
    %162 = vmatpush1.xpose.msra.mxu0 %v129
    %163 = vmatprep.subr.mxu0 0.0
    %164 = vmatpush2.xpose.msra.mxu0 0.0
    %165 = vmatprep.subr.mxu0 0.0
    %166 = vmatpush2.xpose.msra.mxu0 0.0
    %167 = vmatprep.subr.mxu0 0.0
    %168 = vmatpush2.xpose.msra.mxu0 0.0
    %169 = vmatprep.subr.mxu0 0.0
    %170 = vmatpush2.xpose.msra.mxu0 0.0
    %171 = vmatprep.subr.mxu0 0.0
    %172 = vmatpush2.xpose.msra.mxu0 0.0
    %173 = vmatprep.subr.mxu0 0.0
    %174 = vmatpush2.xpose.msra.mxu0 0.0
    %175 = vmatprep.subr.mxu0 0.0
    %176 = vmatpush2.xpose.msra.mxu0 0.0
    %177 = vmatprep.subr.mxu0 0.0
    %178 = vmatpush2.xpose.msra.mxu0 0.0
    %179 = vmatprep.subr.mxu0 0.0
    %180 = vmatpush2.xpose.msra.mxu0 0.0
    %181 = vmatprep.subr.mxu0 0.0
    %182 = vmatpush2.xpose.msra.mxu0 0.0
    %183 = vmatprep.subr.mxu0 0.0
    %184 = vmatpush2.xpose.msra.mxu0 0.0
    %185 = vmatprep.subr.mxu0 0.0
    %186 = vmatpush2.xpose.msra.mxu0 0.0
    %187 = vmatprep.subr.mxu0 0.0
    %188 = vmatpush2.xpose.msra.mxu0 0.0
    %189 = vmatprep.subr.mxu0 0.0
    %190 = vmatpush2.xpose.msra.mxu0 0.0
    %191 = vmatprep.subr.mxu0 0.0
    %192 = vmatpush2.xpose.msra.mxu0 0.0
    %193 = vmatprep.subr.mxu0 0.0
    %194 = vmatpush2.xpose.msra.mxu0 0.0
    %195 = vmatprep.mubr.f32.mxu0 0.0
    %196 = vmatmul.mubr.f32.gmra.mxu0 %v126
    %v197 = vpop.f32.mrf.mxu0
    %v198 = vadd.f32 0.0, %v197
    %v199 = vpop.f32.mrf.mxu0
    %200 = vdwg.mxu0
    %v201 = vld [vmem:[#allocation2] sm:$0x3]
    %v202 = vld [vmem:[#allocation2 + $0x2] sm:$0x3]
    %vm203 = vcmask 58368
    %v204 = vsel %vm203, %v122, -inf
    %205 = vmax.xlane.f32.xlu0 %v204
    %v206 = vpop.xlane.xlu0 %205
    %v207 = vsel %vm203, %v198, -inf
    %208 = vmax.xlane.f32.xlu0 %v207
    %v209 = vpop.xlane.xlu0 %208
    %v210 = vmax.f32 %v201, %v206
    %v211 = vmax.f32 %v202, %v209
    %v212 = vsub.f32 %v201, %v210
    %v213 = vsub.f32 %v202, %v211
    %v214 = vmul.f32 %v212, 1.442695
    %v215 = vpow.pop %v214
    %v216 = vmul.f32 %v213, 1.442695
    %v217 = vpow.pop %v216
    %219 = vset.pattern.permute.xlu0 0
    %220 = vperm.xlu0 %219, %v210
    %v221 = vpop.permute.xlu0 %220
    %224 = vset.pattern.permute.xlu0 0
    %225 = vperm.xlu0 %224, %v211
    %v226 = vpop.permute.xlu0 %225
    %v228 = vsub.f32 %v122, %v221
    %v229 = vsub.f32 %v198, %v226
    %v230 = vmul.f32 %v228, 1.442695
    %v231 = vpow.pop %v230
    %v232 = vmul.f32 %v229, 1.442695
    %v233 = vpow.pop %v232
    %v234 = vld [vmem:[#allocation3] sm:$0x3]
    %v235 = vld [vmem:[#allocation3 + $0x2] sm:$0x3]
    %v236 = vmul.f32 %v215, %v234
    %v237 = vmul.f32 %v217, %v235
    %v238 = vsel %vm203, %v231, 0.0
    %239 = vadd.xlane.f32.xlu0 %v238
    %v240 = vpop.xlane.xlu0 %239
    %v241 = vsel %vm203, %v233, 0.0
    %242 = vadd.xlane.f32.xlu0 %v241
    %v243 = vpop.xlane.xlu0 %242
    %v244 = vadd.f32 %v236, %v240
    %v245 = vadd.f32 %v237, %v243
    %vm246 = vcmask 1024
    %247 = vst.msk [vmem:[#allocation3] sm:$0x3] %vm246, %v244
    %248 = vst.msk [vmem:[#allocation3 + $0x2] sm:$0x3] %vm246, %v245
    %v249 = vld [vmem:[#allocation4] sm:$0x3]
    %v250 = vld [vmem:[#allocation4 + $0x2] sm:$0x3]
    %252 = vset.pattern.permute.xlu0 0
    %253 = vperm.xlu0 %252, %v215
    %v254 = vpop.permute.xlu0 %253
    %257 = vset.pattern.permute.xlu0 0
    %258 = vperm.xlu0 %257, %v217
    %v259 = vpop.permute.xlu0 %258
    %v261 = vmul.f32 %v254, %v249
    %v262 = vmul.f32 %v259, %v250
    %vm263 = vcmask 64512
    %v265 = vsel %vm263, %v231, 0
    %267 = vmatprep.subr.mxu0 0.0
    %268 = vmatpush1.msra.mxu0 0.0
    %269 = vmatprep.subr.mxu0 0.0
    %270 = vmatpush1.msra.mxu0 0.0
    %271 = vmatprep.subr.mxu0 0.0
    %272 = vmatpush1.msra.mxu0 0.0
    %273 = vmatprep.subr.mxu0 0.0
    %274 = vmatpush1.msra.mxu0 0.0
    %275 = vmatprep.subr.mxu0 0.0
    %276 = vmatpush1.msra.mxu0 0.0
    %277 = vmatprep.subr.mxu0 0.0
    %278 = vmatpush1.msra.mxu0 0.0
    %279 = vmatprep.subr.mxu0 0.0
    %280 = vmatpush1.msra.mxu0 0.0
    %281 = vmatprep.subr.mxu0 0.0
    %282 = vmatpush1.msra.mxu0 0.0
    %283 = vmatprep.subr.mxu0 0.0
    %284 = vmatpush1.msra.mxu0 0.0
    %285 = vmatprep.subr.mxu0 0.0
    %286 = vmatpush1.msra.mxu0 0.0
    %287 = vmatprep.subr.mxu0 0.0
    %288 = vmatpush1.msra.mxu0 0.0
    %289 = vmatprep.subr.mxu0 0.0
    %290 = vmatpush1.msra.mxu0 0.0
    %291 = vmatprep.subr.mxu0 0.0
    %292 = vmatpush1.msra.mxu0 0.0
    %293 = vmatprep.subr.mxu0 0.0
    %294 = vmatpush1.msra.mxu0 0.0
    %295 = vmatprep.subr.mxu0 0.0
    %296 = vmatpush1.msra.mxu0 0.0
    %297 = vmatprep.subr.mxu0 0.0
    %298 = vmatpush1.msra.mxu0 %v44
    %299 = vmatprep.subr.mxu0 0.0
    %300 = vmatpush2.msra.mxu0 0.0
    %301 = vmatprep.subr.mxu0 0.0
    %302 = vmatpush2.msra.mxu0 0.0
    %303 = vmatprep.subr.mxu0 0.0
    %304 = vmatpush2.msra.mxu0 0.0
    %305 = vmatprep.subr.mxu0 0.0
    %306 = vmatpush2.msra.mxu0 0.0
    %307 = vmatprep.subr.mxu0 0.0
    %308 = vmatpush2.msra.mxu0 0.0
    %309 = vmatprep.subr.mxu0 0.0
    %310 = vmatpush2.msra.mxu0 0.0
    %311 = vmatprep.subr.mxu0 0.0
    %312 = vmatpush2.msra.mxu0 0.0
    %313 = vmatprep.subr.mxu0 0.0
    %314 = vmatpush2.msra.mxu0 0.0
    %315 = vmatprep.subr.mxu0 0.0
    %316 = vmatpush2.msra.mxu0 0.0
    %317 = vmatprep.subr.mxu0 0.0
    %318 = vmatpush2.msra.mxu0 0.0
    %319 = vmatprep.subr.mxu0 0.0
    %320 = vmatpush2.msra.mxu0 0.0
    %321 = vmatprep.subr.mxu0 0.0
    %322 = vmatpush2.msra.mxu0 0.0
    %323 = vmatprep.subr.mxu0 0.0
    %324 = vmatpush2.msra.mxu0 0.0
    %325 = vmatprep.subr.mxu0 0.0
    %326 = vmatpush2.msra.mxu0 0.0
    %327 = vmatprep.subr.mxu0 0.0
    %328 = vmatpush2.msra.mxu0 0.0
    %329 = vmatprep.subr.mxu0 0.0
    %330 = vmatpush2.msra.mxu0 0.0
    %331 = vmatprep.mubr.f32.mxu0 0.0
    %332 = vmatmul.mubr.f32.gmra.mxu0 %v265
    %v333 = vpop.f32.mrf.mxu0
    %v334 = vadd.f32 0.0, %v333
    %v335 = vpop.f32.mrf.mxu0
    %336 = vdwg.mxu0
    %v338 = vsel %vm263, %v233, 0
    %340 = vmatprep.subr.mxu0 0.0
    %341 = vmatpush1.msra.mxu0 0.0
    %342 = vmatprep.subr.mxu0 0.0
    %343 = vmatpush1.msra.mxu0 0.0
    %344 = vmatprep.subr.mxu0 0.0
    %345 = vmatpush1.msra.mxu0 0.0
    %346 = vmatprep.subr.mxu0 0.0
    %347 = vmatpush1.msra.mxu0 0.0
    %348 = vmatprep.subr.mxu0 0.0
    %349 = vmatpush1.msra.mxu0 0.0
    %350 = vmatprep.subr.mxu0 0.0
    %351 = vmatpush1.msra.mxu0 0.0
    %352 = vmatprep.subr.mxu0 0.0
    %353 = vmatpush1.msra.mxu0 0.0
    %354 = vmatprep.subr.mxu0 0.0
    %355 = vmatpush1.msra.mxu0 0.0
    %356 = vmatprep.subr.mxu0 0.0
    %357 = vmatpush1.msra.mxu0 0.0
    %358 = vmatprep.subr.mxu0 0.0
    %359 = vmatpush1.msra.mxu0 0.0
    %360 = vmatprep.subr.mxu0 0.0
    %361 = vmatpush1.msra.mxu0 0.0
    %362 = vmatprep.subr.mxu0 0.0
    %363 = vmatpush1.msra.mxu0 0.0
    %364 = vmatprep.subr.mxu0 0.0
    %365 = vmatpush1.msra.mxu0 0.0
    %366 = vmatprep.subr.mxu0 0.0
    %367 = vmatpush1.msra.mxu0 0.0
    %368 = vmatprep.subr.mxu0 0.0
    %369 = vmatpush1.msra.mxu0 0.0
    %370 = vmatprep.subr.mxu0 0.0
    %371 = vmatpush1.msra.mxu0 %v45
    %372 = vmatprep.subr.mxu0 0.0
    %373 = vmatpush2.msra.mxu0 0.0
    %374 = vmatprep.subr.mxu0 0.0
    %375 = vmatpush2.msra.mxu0 0.0
    %376 = vmatprep.subr.mxu0 0.0
    %377 = vmatpush2.msra.mxu0 0.0
    %378 = vmatprep.subr.mxu0 0.0
    %379 = vmatpush2.msra.mxu0 0.0
    %380 = vmatprep.subr.mxu0 0.0
    %381 = vmatpush2.msra.mxu0 0.0
    %382 = vmatprep.subr.mxu0 0.0
    %383 = vmatpush2.msra.mxu0 0.0
    %384 = vmatprep.subr.mxu0 0.0
    %385 = vmatpush2.msra.mxu0 0.0
    %386 = vmatprep.subr.mxu0 0.0
    %387 = vmatpush2.msra.mxu0 0.0
    %388 = vmatprep.subr.mxu0 0.0
    %389 = vmatpush2.msra.mxu0 0.0
    %390 = vmatprep.subr.mxu0 0.0
    %391 = vmatpush2.msra.mxu0 0.0
    %392 = vmatprep.subr.mxu0 0.0
    %393 = vmatpush2.msra.mxu0 0.0
    %394 = vmatprep.subr.mxu0 0.0
    %395 = vmatpush2.msra.mxu0 0.0
    %396 = vmatprep.subr.mxu0 0.0
    %397 = vmatpush2.msra.mxu0 0.0
    %398 = vmatprep.subr.mxu0 0.0
    %399 = vmatpush2.msra.mxu0 0.0
    %400 = vmatprep.subr.mxu0 0.0
    %401 = vmatpush2.msra.mxu0 0.0
    %402 = vmatprep.subr.mxu0 0.0
    %403 = vmatpush2.msra.mxu0 0.0
    %404 = vmatprep.mubr.f32.mxu0 0.0
    %405 = vmatmul.mubr.f32.gmra.mxu0 %v338
    %v406 = vpop.f32.mrf.mxu0
    %v407 = vadd.f32 0.0, %v406
    %v408 = vpop.f32.mrf.mxu0
    %409 = vdwg.mxu0
    %v410 = vadd.f32 %v261, %v334
    %v411 = vadd.f32 %v262, %v407
    %vm412 = vcmask 254976
    %413 = vst.msk [vmem:[#allocation4] sm:$0x3] %vm412, %v410
    %414 = vst.msk [vmem:[#allocation4 + $0x2] sm:$0x3] %vm412, %v411
    %415 = vst.msk [vmem:[#allocation2] sm:$0x3] %vm246, %v210
    %416 = vst.msk [vmem:[#allocation2 + $0x2] sm:$0x3] %vm246, %v211
    // Predicated region
    $region38: #{tpu_custom_call.1} parent=1 // pred_check
      %p417 = pneg %p30
    $region39: #{tpu_custom_call.1} parent=1 // pred_check_branch
      %419 = sbr.rel (%p417) target = $region41
    $region40: #{tpu_custom_call.1} parent=1 // pred_region
      %v420 = vld [vmem:[#allocation4] sm:$0x3]
      %v421 = vld [vmem:[#allocation4 + $0x2] sm:$0x3]
      %v422 = vld [vmem:[#allocation3] sm:$0x3]
      %v423 = vld [vmem:[#allocation3 + $0x2] sm:$0x3]
      %425 = vset.pattern.permute.xlu0 0
      %426 = vperm.xlu0 %425, %v422
      %v427 = vpop.permute.xlu0 %426
      %430 = vset.pattern.permute.xlu0 0
      %431 = vperm.xlu0 %430, %v423
      %v432 = vpop.permute.xlu0 %431
      %v434 = vrcp.pop %v427
      %v435 = vmul.f32 %v420, %v434
      %v436 = vrcp.pop %v432
      %v437 = vmul.f32 %v421, %v436
      %v438 = vld [vmem:[%s4] sm:$0x3]
      %v439 = vld [vmem:[%s4 + $0x2] sm:$0x3]
      %v440 = vld [vmem:[%s4 + $0x4] sm:$0x3]
      %v441 = vld [vmem:[%s4 + $0x6] sm:$0x3]
      %v442 = vld [vmem:[%s4 + $0x8] sm:$0x3]
      %v443 = vld [vmem:[%s4 + $0xa] sm:$0x3]
      %v444 = vld [vmem:[%s4 + $0xc] sm:$0x3]
      %v445 = vld [vmem:[%s4 + $0xe] sm:$0x3]
      %v446 = vld [vmem:[%s4 + $0x10] sm:$0x3]
      %v447 = vld [vmem:[%s4 + $0x12] sm:$0x3]
      %v448 = vld [vmem:[%s4 + $0x14] sm:$0x3]
      %v449 = vld [vmem:[%s4 + $0x16] sm:$0x3]
      %v450 = vld [vmem:[%s4 + $0x18] sm:$0x3]
      %v451 = vld [vmem:[%s4 + $0x1a] sm:$0x3]
      %v452 = vld [vmem:[%s4 + $0x1c] sm:$0x3]
      %v453 = vld [vmem:[%s4 + $0x1e] sm:$0x3]
      %v454 = vld [vmem:[%s4 + $0x20] sm:$0x3]
      %v455 = vld [vmem:[%s4 + $0x22] sm:$0x3]
      %v456 = vld [vmem:[%s4 + $0x24] sm:$0x3]
      %v457 = vld [vmem:[%s4 + $0x26] sm:$0x3]
      %v458 = vld [vmem:[%s4 + $0x28] sm:$0x3]
      %v459 = vld [vmem:[%s4 + $0x2a] sm:$0x3]
      %v460 = vld [vmem:[%s4 + $0x2c] sm:$0x3]
      %v461 = vld [vmem:[%s4 + $0x2e] sm:$0x3]
      %v462 = vld [vmem:[%s4 + $0x30] sm:$0x3]
      %v463 = vld [vmem:[%s4 + $0x32] sm:$0x3]
      %v464 = vld [vmem:[%s4 + $0x34] sm:$0x3]
      %v465 = vld [vmem:[%s4 + $0x36] sm:$0x3]
      %v466 = vld [vmem:[%s4 + $0x38] sm:$0x3]
      %v467 = vld [vmem:[%s4 + $0x3a] sm:$0x3]
      %v468 = vld [vmem:[%s4 + $0x3c] sm:$0x3]
      %v469 = vld [vmem:[%s4 + $0x3e] sm:$0x3]
      %470 = vxpose.xlu0.b32.start [1/16] %v438, 128
      %471 = vxpose.xlu0.b32.cont [2/16] 0.0, 128
      %472 = vxpose.xlu0.b32.cont [3/16] 0.0, 128
      %473 = vxpose.xlu0.b32.cont [4/16] 0.0, 128
      %474 = vxpose.xlu0.b32.cont [5/16] 0.0, 128
      %475 = vxpose.xlu0.b32.cont [6/16] 0.0, 128
      %476 = vxpose.xlu0.b32.cont [7/16] 0.0, 128
      %477 = vxpose.xlu0.b32.cont [8/16] 0.0, 128
      %478 = vxpose.xlu0.b32.cont [9/16] 0.0, 128
      %479 = vxpose.xlu0.b32.cont [10/16] 0.0, 128
      %480 = vxpose.xlu0.b32.cont [11/16] 0.0, 128
      %481 = vxpose.xlu0.b32.cont [12/16] 0.0, 128
      %482 = vxpose.xlu0.b32.cont [13/16] 0.0, 128
      %483 = vxpose.xlu0.b32.cont [14/16] 0.0, 128
      %484 = vxpose.xlu0.b32.cont [15/16] 0.0, 128
      %485 = vxpose.xlu0.b32.end [16/16] 0.0, 128
      %v486 = vpop.trf.xlu0
      %v487 = vpop.trf.xlu0
      %v488 = vpop.trf.xlu0
      %v489 = vpop.trf.xlu0
      %v490 = vpop.trf.xlu0
      %v491 = vpop.trf.xlu0
      %v492 = vpop.trf.xlu0
      %v493 = vpop.trf.xlu0
      %v494 = vpop.trf.xlu0
      %v495 = vpop.trf.xlu0
      %v496 = vpop.trf.xlu0
      %v497 = vpop.trf.xlu0
      %v498 = vpop.trf.xlu0
      %v499 = vpop.trf.xlu0
      %v500 = vpop.trf.xlu0
      %v501 = vpop.trf.xlu0
      %502 = vxpose.xlu0.b32.start [1/16] %v439, 128
      %503 = vxpose.xlu0.b32.cont [2/16] 0.0, 128
      %504 = vxpose.xlu0.b32.cont [3/16] 0.0, 128
      %505 = vxpose.xlu0.b32.cont [4/16] 0.0, 128
      %506 = vxpose.xlu0.b32.cont [5/16] 0.0, 128
      %507 = vxpose.xlu0.b32.cont [6/16] 0.0, 128
      %508 = vxpose.xlu0.b32.cont [7/16] 0.0, 128
      %509 = vxpose.xlu0.b32.cont [8/16] 0.0, 128
      %510 = vxpose.xlu0.b32.cont [9/16] 0.0, 128
      %511 = vxpose.xlu0.b32.cont [10/16] 0.0, 128
      %512 = vxpose.xlu0.b32.cont [11/16] 0.0, 128
      %513 = vxpose.xlu0.b32.cont [12/16] 0.0, 128
      %514 = vxpose.xlu0.b32.cont [13/16] 0.0, 128
      %515 = vxpose.xlu0.b32.cont [14/16] 0.0, 128
      %516 = vxpose.xlu0.b32.cont [15/16] 0.0, 128
      %517 = vxpose.xlu0.b32.end [16/16] 0.0, 128
      %v518 = vpop.trf.xlu0
      %v519 = vpop.trf.xlu0
      %v520 = vpop.trf.xlu0
      %v521 = vpop.trf.xlu0
      %v522 = vpop.trf.xlu0
      %v523 = vpop.trf.xlu0
      %v524 = vpop.trf.xlu0
      %v525 = vpop.trf.xlu0
      %v526 = vpop.trf.xlu0
      %v527 = vpop.trf.xlu0
      %v528 = vpop.trf.xlu0
      %v529 = vpop.trf.xlu0
      %v530 = vpop.trf.xlu0
      %v531 = vpop.trf.xlu0
      %v532 = vpop.trf.xlu0
      %v533 = vpop.trf.xlu0
      %534 = vxpose.xlu0.b32.start [1/16] %v440, 128
      %535 = vxpose.xlu0.b32.cont [2/16] 0.0, 128
      %536 = vxpose.xlu0.b32.cont [3/16] 0.0, 128
      %537 = vxpose.xlu0.b32.cont [4/16] 0.0, 128
      %538 = vxpose.xlu0.b32.cont [5/16] 0.0, 128
      %539 = vxpose.xlu0.b32.cont [6/16] 0.0, 128
      %540 = vxpose.xlu0.b32.cont [7/16] 0.0, 128
      %541 = vxpose.xlu0.b32.cont [8/16] 0.0, 128
      %542 = vxpose.xlu0.b32.cont [9/16] 0.0, 128
      %543 = vxpose.xlu0.b32.cont [10/16] 0.0, 128
      %544 = vxpose.xlu0.b32.cont [11/16] 0.0, 128
      %545 = vxpose.xlu0.b32.cont [12/16] 0.0, 128
      %546 = vxpose.xlu0.b32.cont [13/16] 0.0, 128
      %547 = vxpose.xlu0.b32.cont [14/16] 0.0, 128
      %548 = vxpose.xlu0.b32.cont [15/16] 0.0, 128
      %549 = vxpose.xlu0.b32.end [16/16] 0.0, 128
      %v550 = vpop.trf.xlu0
      %v551 = vpop.trf.xlu0
      %v552 = vpop.trf.xlu0
      %v553 = vpop.trf.xlu0
      %v554 = vpop.trf.xlu0
      %v555 = vpop.trf.xlu0
      %v556 = vpop.trf.xlu0
      %v557 = vpop.trf.xlu0
      %v558 = vpop.trf.xlu0
      %v559 = vpop.trf.xlu0
      %v560 = vpop.trf.xlu0
      %v561 = vpop.trf.xlu0
      %v562 = vpop.trf.xlu0
      %v563 = vpop.trf.xlu0
      %v564 = vpop.trf.xlu0
      %v565 = vpop.trf.xlu0
      %566 = vxpose.xlu0.b32.start [1/16] %v441, 128
      %567 = vxpose.xlu0.b32.cont [2/16] 0.0, 128
      %568 = vxpose.xlu0.b32.cont [3/16] 0.0, 128
      %569 = vxpose.xlu0.b32.cont [4/16] 0.0, 128
      %570 = vxpose.xlu0.b32.cont [5/16] 0.0, 128
      %571 = vxpose.xlu0.b32.cont [6/16] 0.0, 128
      %572 = vxpose.xlu0.b32.cont [7/16] 0.0, 128
      %573 = vxpose.xlu0.b32.cont [8/16] 0.0, 128
      %574 = vxpose.xlu0.b32.cont [9/16] 0.0, 128
      %575 = vxpose.xlu0.b32.cont [10/16] 0.0, 128
      %576 = vxpose.xlu0.b32.cont [11/16] 0.0, 128
      %577 = vxpose.xlu0.b32.cont [12/16] 0.0, 128
      %578 = vxpose.xlu0.b32.cont [13/16] 0.0, 128
      %579 = vxpose.xlu0.b32.cont [14/16] 0.0, 128
      %580 = vxpose.xlu0.b32.cont [15/16] 0.0, 128
      %581 = vxpose.xlu0.b32.end [16/16] 0.0, 128
      %v582 = vpop.trf.xlu0
      %v583 = vpop.trf.xlu0
      %v584 = vpop.trf.xlu0
      %v585 = vpop.trf.xlu0
      %v586 = vpop.trf.xlu0
      %v587 = vpop.trf.xlu0
      %v588 = vpop.trf.xlu0
      %v589 = vpop.trf.xlu0
      %v590 = vpop.trf.xlu0
      %v591 = vpop.trf.xlu0
      %v592 = vpop.trf.xlu0
      %v593 = vpop.trf.xlu0
      %v594 = vpop.trf.xlu0
      %v595 = vpop.trf.xlu0
      %v596 = vpop.trf.xlu0
      %v597 = vpop.trf.xlu0
      %598 = vxpose.xlu0.b32.start [1/16] %v442, 128
      %599 = vxpose.xlu0.b32.cont [2/16] 0.0, 128
      %600 = vxpose.xlu0.b32.cont [3/16] 0.0, 128
      %601 = vxpose.xlu0.b32.cont [4/16] 0.0, 128
      %602 = vxpose.xlu0.b32.cont [5/16] 0.0, 128
      %603 = vxpose.xlu0.b32.cont [6/16] 0.0, 128
      %604 = vxpose.xlu0.b32.cont [7/16] 0.0, 128
      %605 = vxpose.xlu0.b32.cont [8/16] 0.0, 128
      %606 = vxpose.xlu0.b32.cont [9/16] 0.0, 128
      %607 = vxpose.xlu0.b32.cont [10/16] 0.0, 128
      %608 = vxpose.xlu0.b32.cont [11/16] 0.0, 128
      %609 = vxpose.xlu0.b32.cont [12/16] 0.0, 128
      %610 = vxpose.xlu0.b32.cont [13/16] 0.0, 128
      %611 = vxpose.xlu0.b32.cont [14/16] 0.0, 128
      %612 = vxpose.xlu0.b32.cont [15/16] 0.0, 128
      %613 = vxpose.xlu0.b32.end [16/16] 0.0, 128
      %v614 = vpop.trf.xlu0
      %v615 = vpop.trf.xlu0
      %v616 = vpop.trf.xlu0
      %v617 = vpop.trf.xlu0
      %v618 = vpop.trf.xlu0
      %v619 = vpop.trf.xlu0
      %v620 = vpop.trf.xlu0
      %v621 = vpop.trf.xlu0
      %v622 = vpop.trf.xlu0
      %v623 = vpop.trf.xlu0
      %v624 = vpop.trf.xlu0
      %v625 = vpop.trf.xlu0
      %v626 = vpop.trf.xlu0
      %v627 = vpop.trf.xlu0
      %v628 = vpop.trf.xlu0
      %v629 = vpop.trf.xlu0
      %630 = vxpose.xlu0.b32.start [1/16] %v443, 128
      %631 = vxpose.xlu0.b32.cont [2/16] 0.0, 128
      %632 = vxpose.xlu0.b32.cont [3/16] 0.0, 128
      %633 = vxpose.xlu0.b32.cont [4/16] 0.0, 128
      %634 = vxpose.xlu0.b32.cont [5/16] 0.0, 128
      %635 = vxpose.xlu0.b32.cont [6/16] 0.0, 128
      %636 = vxpose.xlu0.b32.cont [7/16] 0.0, 128
      %637 = vxpose.xlu0.b32.cont [8/16] 0.0, 128
      %638 = vxpose.xlu0.b32.cont [9/16] 0.0, 128
      %639 = vxpose.xlu0.b32.cont [10/16] 0.0, 128
      %640 = vxpose.xlu0.b32.cont [11/16] 0.0, 128
      %641 = vxpose.xlu0.b32.cont [12/16] 0.0, 128
      %642 = vxpose.xlu0.b32.cont [13/16] 0.0, 128
      %643 = vxpose.xlu0.b32.cont [14/16] 0.0, 128
      %644 = vxpose.xlu0.b32.cont [15/16] 0.0, 128
      %645 = vxpose.xlu0.b32.end [16/16] 0.0, 128
      %v646 = vpop.trf.xlu0
      %v647 = vpop.trf.xlu0
      %v648 = vpop.trf.xlu0
      %v649 = vpop.trf.xlu0
      %v650 = vpop.trf.xlu0
      %v651 = vpop.trf.xlu0
      %v652 = vpop.trf.xlu0
      %v653 = vpop.trf.xlu0
      %v654 = vpop.trf.xlu0
      %v655 = vpop.trf.xlu0
      %v656 = vpop.trf.xlu0
      %v657 = vpop.trf.xlu0
      %v658 = vpop.trf.xlu0
      %v659 = vpop.trf.xlu0
      %v660 = vpop.trf.xlu0
      %v661 = vpop.trf.xlu0
      %662 = vxpose.xlu0.b32.start [1/16] %v444, 128
      %663 = vxpose.xlu0.b32.cont [2/16] 0.0, 128
      %664 = vxpose.xlu0.b32.cont [3/16] 0.0, 128
      %665 = vxpose.xlu0.b32.cont [4/16] 0.0, 128
      %666 = vxpose.xlu0.b32.cont [5/16] 0.0, 128
      %667 = vxpose.xlu0.b32.cont [6/16] 0.0, 128
      %668 = vxpose.xlu0.b32.cont [7/16] 0.0, 128
      %669 = vxpose.xlu0.b32.cont [8/16] 0.0, 128
      %670 = vxpose.xlu0.b32.cont [9/16] 0.0, 128
      %671 = vxpose.xlu0.b32.cont [10/16] 0.0, 128
      %672 = vxpose.xlu0.b32.cont [11/16] 0.0, 128
      %673 = vxpose.xlu0.b32.cont [12/16] 0.0, 128
      %674 = vxpose.xlu0.b32.cont [13/16] 0.0, 128
      %675 = vxpose.xlu0.b32.cont [14/16] 0.0, 128
      %676 = vxpose.xlu0.b32.cont [15/16] 0.0, 128
      %677 = vxpose.xlu0.b32.end [16/16] 0.0, 128
      %v678 = vpop.trf.xlu0
      %v679 = vpop.trf.xlu0
      %v680 = vpop.trf.xlu0
      %v681 = vpop.trf.xlu0
      %v682 = vpop.trf.xlu0
      %v683 = vpop.trf.xlu0
      %v684 = vpop.trf.xlu0
      %v685 = vpop.trf.xlu0
      %v686 = vpop.trf.xlu0
      %v687 = vpop.trf.xlu0
      %v688 = vpop.trf.xlu0
      %v689 = vpop.trf.xlu0
      %v690 = vpop.trf.xlu0
      %v691 = vpop.trf.xlu0
      %v692 = vpop.trf.xlu0
      %v693 = vpop.trf.xlu0
      %694 = vxpose.xlu0.b32.start [1/16] %v445, 128
      %695 = vxpose.xlu0.b32.cont [2/16] 0.0, 128
      %696 = vxpose.xlu0.b32.cont [3/16] 0.0, 128
      %697 = vxpose.xlu0.b32.cont [4/16] 0.0, 128
      %698 = vxpose.xlu0.b32.cont [5/16] 0.0, 128
      %699 = vxpose.xlu0.b32.cont [6/16] 0.0, 128
      %700 = vxpose.xlu0.b32.cont [7/16] 0.0, 128
      %701 = vxpose.xlu0.b32.cont [8/16] 0.0, 128
      %702 = vxpose.xlu0.b32.cont [9/16] 0.0, 128
      %703 = vxpose.xlu0.b32.cont [10/16] 0.0, 128
      %704 = vxpose.xlu0.b32.cont [11/16] 0.0, 128
      %705 = vxpose.xlu0.b32.cont [12/16] 0.0, 128
      %706 = vxpose.xlu0.b32.cont [13/16] 0.0, 128
      %707 = vxpose.xlu0.b32.cont [14/16] 0.0, 128
      %708 = vxpose.xlu0.b32.cont [15/16] 0.0, 128
      %709 = vxpose.xlu0.b32.end [16/16] 0.0, 128
      %v710 = vpop.trf.xlu0
      %v711 = vpop.trf.xlu0
      %v712 = vpop.trf.xlu0
      %v713 = vpop.trf.xlu0
      %v714 = vpop.trf.xlu0
      %v715 = vpop.trf.xlu0
      %v716 = vpop.trf.xlu0
      %v717 = vpop.trf.xlu0
      %v718 = vpop.trf.xlu0
      %v719 = vpop.trf.xlu0
      %v720 = vpop.trf.xlu0
      %v721 = vpop.trf.xlu0
      %v722 = vpop.trf.xlu0
      %v723 = vpop.trf.xlu0
      %v724 = vpop.trf.xlu0
      %v725 = vpop.trf.xlu0
      %726 = vxpose.xlu0.b32.start [1/16] %v446, 128
      %727 = vxpose.xlu0.b32.cont [2/16] 0.0, 128
      %728 = vxpose.xlu0.b32.cont [3/16] 0.0, 128
      %729 = vxpose.xlu0.b32.cont [4/16] 0.0, 128
      %730 = vxpose.xlu0.b32.cont [5/16] 0.0, 128
      %731 = vxpose.xlu0.b32.cont [6/16] 0.0, 128
      %732 = vxpose.xlu0.b32.cont [7/16] 0.0, 128
      %733 = vxpose.xlu0.b32.cont [8/16] 0.0, 128
      %734 = vxpose.xlu0.b32.cont [9/16] 0.0, 128
      %735 = vxpose.xlu0.b32.cont [10/16] 0.0, 128
      %736 = vxpose.xlu0.b32.cont [11/16] 0.0, 128
      %737 = vxpose.xlu0.b32.cont [12/16] 0.0, 128
      %738 = vxpose.xlu0.b32.cont [13/16] 0.0, 128
      %739 = vxpose.xlu0.b32.cont [14/16] 0.0, 128
      %740 = vxpose.xlu0.b32.cont [15/16] 0.0, 128
      %741 = vxpose.xlu0.b32.end [16/16] 0.0, 128
      %v742 = vpop.trf.xlu0
      %v743 = vpop.trf.xlu0
      %v744 = vpop.trf.xlu0
      %v745 = vpop.trf.xlu0
      %v746 = vpop.trf.xlu0
      %v747 = vpop.trf.xlu0
      %v748 = vpop.trf.xlu0
      %v749 = vpop.trf.xlu0
      %v750 = vpop.trf.xlu0
      %v751 = vpop.trf.xlu0
      %v752 = vpop.trf.xlu0
      %v753 = vpop.trf.xlu0
      %v754 = vpop.trf.xlu0
      %v755 = vpop.trf.xlu0
      %v756 = vpop.trf.xlu0
      %v757 = vpop.trf.xlu0
      %758 = vxpose.xlu0.b32.start [1/16] %v447, 128
      %759 = vxpose.xlu0.b32.cont [2/16] 0.0, 128
      %760 = vxpose.xlu0.b32.cont [3/16] 0.0, 128
      %761 = vxpose.xlu0.b32.cont [4/16] 0.0, 128
      %762 = vxpose.xlu0.b32.cont [5/16] 0.0, 128
      %763 = vxpose.xlu0.b32.cont [6/16] 0.0, 128
      %764 = vxpose.xlu0.b32.cont [7/16] 0.0, 128
      %765 = vxpose.xlu0.b32.cont [8/16] 0.0, 128
      %766 = vxpose.xlu0.b32.cont [9/16] 0.0, 128
      %767 = vxpose.xlu0.b32.cont [10/16] 0.0, 128
      %768 = vxpose.xlu0.b32.cont [11/16] 0.0, 128
      %769 = vxpose.xlu0.b32.cont [12/16] 0.0, 128
      %770 = vxpose.xlu0.b32.cont [13/16] 0.0, 128
      %771 = vxpose.xlu0.b32.cont [14/16] 0.0, 128
      %772 = vxpose.xlu0.b32.cont [15/16] 0.0, 128
      %773 = vxpose.xlu0.b32.end [16/16] 0.0, 128
      %v774 = vpop.trf.xlu0
      %v775 = vpop.trf.xlu0
      %v776 = vpop.trf.xlu0
      %v777 = vpop.trf.xlu0
      %v778 = vpop.trf.xlu0
      %v779 = vpop.trf.xlu0
      %v780 = vpop.trf.xlu0
      %v781 = vpop.trf.xlu0
      %v782 = vpop.trf.xlu0
      %v783 = vpop.trf.xlu0
      %v784 = vpop.trf.xlu0
      %v785 = vpop.trf.xlu0
      %v786 = vpop.trf.xlu0
      %v787 = vpop.trf.xlu0
      %v788 = vpop.trf.xlu0
      %v789 = vpop.trf.xlu0
      %790 = vxpose.xlu0.b32.start [1/16] %v448, 128
      %791 = vxpose.xlu0.b32.cont [2/16] 0.0, 128
      %792 = vxpose.xlu0.b32.cont [3/16] 0.0, 128
      %793 = vxpose.xlu0.b32.cont [4/16] 0.0, 128
      %794 = vxpose.xlu0.b32.cont [5/16] 0.0, 128
      %795 = vxpose.xlu0.b32.cont [6/16] 0.0, 128
      %796 = vxpose.xlu0.b32.cont [7/16] 0.0, 128
      %797 = vxpose.xlu0.b32.cont [8/16] 0.0, 128
      %798 = vxpose.xlu0.b32.cont [9/16] 0.0, 128
      %799 = vxpose.xlu0.b32.cont [10/16] 0.0, 128
      %800 = vxpose.xlu0.b32.cont [11/16] 0.0, 128
      %801 = vxpose.xlu0.b32.cont [12/16] 0.0, 128
      %802 = vxpose.xlu0.b32.cont [13/16] 0.0, 128
      %803 = vxpose.xlu0.b32.cont [14/16] 0.0, 128
      %804 = vxpose.xlu0.b32.cont [15/16] 0.0, 128
      %805 = vxpose.xlu0.b32.end [16/16] 0.0, 128
      %v806 = vpop.trf.xlu0
      %v807 = vpop.trf.xlu0
      %v808 = vpop.trf.xlu0
      %v809 = vpop.trf.xlu0
      %v810 = vpop.trf.xlu0
      %v811 = vpop.trf.xlu0
      %v812 = vpop.trf.xlu0
      %v813 = vpop.trf.xlu0
      %v814 = vpop.trf.xlu0
      %v815 = vpop.trf.xlu0
      %v816 = vpop.trf.xlu0
      %v817 = vpop.trf.xlu0
      %v818 = vpop.trf.xlu0
      %v819 = vpop.trf.xlu0
      %v820 = vpop.trf.xlu0
      %v821 = vpop.trf.xlu0
      %822 = vxpose.xlu0.b32.start [1/16] %v449, 128
      %823 = vxpose.xlu0.b32.cont [2/16] 0.0, 128
      %824 = vxpose.xlu0.b32.cont [3/16] 0.0, 128
      %825 = vxpose.xlu0.b32.cont [4/16] 0.0, 128
      %826 = vxpose.xlu0.b32.cont [5/16] 0.0, 128
      %827 = vxpose.xlu0.b32.cont [6/16] 0.0, 128
      %828 = vxpose.xlu0.b32.cont [7/16] 0.0, 128
      %829 = vxpose.xlu0.b32.cont [8/16] 0.0, 128
      %830 = vxpose.xlu0.b32.cont [9/16] 0.0, 128
      %831 = vxpose.xlu0.b32.cont [10/16] 0.0, 128
      %832 = vxpose.xlu0.b32.cont [11/16] 0.0, 128
      %833 = vxpose.xlu0.b32.cont [12/16] 0.0, 128
      %834 = vxpose.xlu0.b32.cont [13/16] 0.0, 128
      %835 = vxpose.xlu0.b32.cont [14/16] 0.0, 128
      %836 = vxpose.xlu0.b32.cont [15/16] 0.0, 128
      %837 = vxpose.xlu0.b32.end [16/16] 0.0, 128
      %v838 = vpop.trf.xlu0
      %v839 = vpop.trf.xlu0
      %v840 = vpop.trf.xlu0
      %v841 = vpop.trf.xlu0
      %v842 = vpop.trf.xlu0
      %v843 = vpop.trf.xlu0
      %v844 = vpop.trf.xlu0
      %v845 = vpop.trf.xlu0
      %v846 = vpop.trf.xlu0
      %v847 = vpop.trf.xlu0
      %v848 = vpop.trf.xlu0
      %v849 = vpop.trf.xlu0
      %v850 = vpop.trf.xlu0
      %v851 = vpop.trf.xlu0
      %v852 = vpop.trf.xlu0
      %v853 = vpop.trf.xlu0
      %854 = vxpose.xlu0.b32.start [1/16] %v450, 128
      %855 = vxpose.xlu0.b32.cont [2/16] 0.0, 128
      %856 = vxpose.xlu0.b32.cont [3/16] 0.0, 128
      %857 = vxpose.xlu0.b32.cont [4/16] 0.0, 128
      %858 = vxpose.xlu0.b32.cont [5/16] 0.0, 128
      %859 = vxpose.xlu0.b32.cont [6/16] 0.0, 128
      %860 = vxpose.xlu0.b32.cont [7/16] 0.0, 128
      %861 = vxpose.xlu0.b32.cont [8/16] 0.0, 128
      %862 = vxpose.xlu0.b32.cont [9/16] 0.0, 128
      %863 = vxpose.xlu0.b32.cont [10/16] 0.0, 128
      %864 = vxpose.xlu0.b32.cont [11/16] 0.0, 128
      %865 = vxpose.xlu0.b32.cont [12/16] 0.0, 128
      %866 = vxpose.xlu0.b32.cont [13/16] 0.0, 128
      %867 = vxpose.xlu0.b32.cont [14/16] 0.0, 128
      %868 = vxpose.xlu0.b32.cont [15/16] 0.0, 128
      %869 = vxpose.xlu0.b32.end [16/16] 0.0, 128
      %v870 = vpop.trf.xlu0
      %v871 = vpop.trf.xlu0
      %v872 = vpop.trf.xlu0
      %v873 = vpop.trf.xlu0
      %v874 = vpop.trf.xlu0
      %v875 = vpop.trf.xlu0
      %v876 = vpop.trf.xlu0
      %v877 = vpop.trf.xlu0
      %v878 = vpop.trf.xlu0
      %v879 = vpop.trf.xlu0
      %v880 = vpop.trf.xlu0
      %v881 = vpop.trf.xlu0
      %v882 = vpop.trf.xlu0
      %v883 = vpop.trf.xlu0
      %v884 = vpop.trf.xlu0
      %v885 = vpop.trf.xlu0
      %886 = vxpose.xlu0.b32.start [1/16] %v451, 128
      %887 = vxpose.xlu0.b32.cont [2/16] 0.0, 128
      %888 = vxpose.xlu0.b32.cont [3/16] 0.0, 128
      %889 = vxpose.xlu0.b32.cont [4/16] 0.0, 128
      %890 = vxpose.xlu0.b32.cont [5/16] 0.0, 128
      %891 = vxpose.xlu0.b32.cont [6/16] 0.0, 128
      %892 = vxpose.xlu0.b32.cont [7/16] 0.0, 128
      %893 = vxpose.xlu0.b32.cont [8/16] 0.0, 128
      %894 = vxpose.xlu0.b32.cont [9/16] 0.0, 128
      %895 = vxpose.xlu0.b32.cont [10/16] 0.0, 128
      %896 = vxpose.xlu0.b32.cont [11/16] 0.0, 128
      %897 = vxpose.xlu0.b32.cont [12/16] 0.0, 128
      %898 = vxpose.xlu0.b32.cont [13/16] 0.0, 128
      %899 = vxpose.xlu0.b32.cont [14/16] 0.0, 128
      %900 = vxpose.xlu0.b32.cont [15/16] 0.0, 128
      %901 = vxpose.xlu0.b32.end [16/16] 0.0, 128
      %v902 = vpop.trf.xlu0
      %v903 = vpop.trf.xlu0
      %v904 = vpop.trf.xlu0
      %v905 = vpop.trf.xlu0
      %v906 = vpop.trf.xlu0
      %v907 = vpop.trf.xlu0
      %v908 = vpop.trf.xlu0
      %v909 = vpop.trf.xlu0
      %v910 = vpop.trf.xlu0
      %v911 = vpop.trf.xlu0
      %v912 = vpop.trf.xlu0
      %v913 = vpop.trf.xlu0
      %v914 = vpop.trf.xlu0
      %v915 = vpop.trf.xlu0
      %v916 = vpop.trf.xlu0
      %v917 = vpop.trf.xlu0
      %918 = vxpose.xlu0.b32.start [1/16] %v452, 128
      %919 = vxpose.xlu0.b32.cont [2/16] 0.0, 128
      %920 = vxpose.xlu0.b32.cont [3/16] 0.0, 128
      %921 = vxpose.xlu0.b32.cont [4/16] 0.0, 128
      %922 = vxpose.xlu0.b32.cont [5/16] 0.0, 128
      %923 = vxpose.xlu0.b32.cont [6/16] 0.0, 128
      %924 = vxpose.xlu0.b32.cont [7/16] 0.0, 128
      %925 = vxpose.xlu0.b32.cont [8/16] 0.0, 128
      %926 = vxpose.xlu0.b32.cont [9/16] 0.0, 128
      %927 = vxpose.xlu0.b32.cont [10/16] 0.0, 128
      %928 = vxpose.xlu0.b32.cont [11/16] 0.0, 128
      %929 = vxpose.xlu0.b32.cont [12/16] 0.0, 128
      %930 = vxpose.xlu0.b32.cont [13/16] 0.0, 128
      %931 = vxpose.xlu0.b32.cont [14/16] 0.0, 128
      %932 = vxpose.xlu0.b32.cont [15/16] 0.0, 128
      %933 = vxpose.xlu0.b32.end [16/16] 0.0, 128
      %v934 = vpop.trf.xlu0
      %v935 = vpop.trf.xlu0
      %v936 = vpop.trf.xlu0
      %v937 = vpop.trf.xlu0
      %v938 = vpop.trf.xlu0
      %v939 = vpop.trf.xlu0
      %v940 = vpop.trf.xlu0
      %v941 = vpop.trf.xlu0
      %v942 = vpop.trf.xlu0
      %v943 = vpop.trf.xlu0
      %v944 = vpop.trf.xlu0
      %v945 = vpop.trf.xlu0
      %v946 = vpop.trf.xlu0
      %v947 = vpop.trf.xlu0
      %v948 = vpop.trf.xlu0
      %v949 = vpop.trf.xlu0
      %950 = vxpose.xlu0.b32.start [1/16] %v453, 128
      %951 = vxpose.xlu0.b32.cont [2/16] 0.0, 128
      %952 = vxpose.xlu0.b32.cont [3/16] 0.0, 128
      %953 = vxpose.xlu0.b32.cont [4/16] 0.0, 128
      %954 = vxpose.xlu0.b32.cont [5/16] 0.0, 128
      %955 = vxpose.xlu0.b32.cont [6/16] 0.0, 128
      %956 = vxpose.xlu0.b32.cont [7/16] 0.0, 128
      %957 = vxpose.xlu0.b32.cont [8/16] 0.0, 128
      %958 = vxpose.xlu0.b32.cont [9/16] 0.0, 128
      %959 = vxpose.xlu0.b32.cont [10/16] 0.0, 128
      %960 = vxpose.xlu0.b32.cont [11/16] 0.0, 128
      %961 = vxpose.xlu0.b32.cont [12/16] 0.0, 128
      %962 = vxpose.xlu0.b32.cont [13/16] 0.0, 128
      %963 = vxpose.xlu0.b32.cont [14/16] 0.0, 128
      %964 = vxpose.xlu0.b32.cont [15/16] 0.0, 128
      %965 = vxpose.xlu0.b32.end [16/16] 0.0, 128
      %v966 = vpop.trf.xlu0
      %v967 = vpop.trf.xlu0
      %v968 = vpop.trf.xlu0
      %v969 = vpop.trf.xlu0
      %v970 = vpop.trf.xlu0
      %v971 = vpop.trf.xlu0
      %v972 = vpop.trf.xlu0
      %v973 = vpop.trf.xlu0
      %v974 = vpop.trf.xlu0
      %v975 = vpop.trf.xlu0
      %v976 = vpop.trf.xlu0
      %v977 = vpop.trf.xlu0
      %v978 = vpop.trf.xlu0
      %v979 = vpop.trf.xlu0
      %v980 = vpop.trf.xlu0
      %v981 = vpop.trf.xlu0
      %982 = vxpose.xlu0.b32.start [1/16] %v454, 128
      %983 = vxpose.xlu0.b32.cont [2/16] 0.0, 128
      %984 = vxpose.xlu0.b32.cont [3/16] 0.0, 128
      %985 = vxpose.xlu0.b32.cont [4/16] 0.0, 128
      %986 = vxpose.xlu0.b32.cont [5/16] 0.0, 128
      %987 = vxpose.xlu0.b32.cont [6/16] 0.0, 128
      %988 = vxpose.xlu0.b32.cont [7/16] 0.0, 128
      %989 = vxpose.xlu0.b32.cont [8/16] 0.0, 128
      %990 = vxpose.xlu0.b32.cont [9/16] 0.0, 128
      %991 = vxpose.xlu0.b32.cont [10/16] 0.0, 128
      %992 = vxpose.xlu0.b32.cont [11/16] 0.0, 128
      %993 = vxpose.xlu0.b32.cont [12/16] 0.0, 128
      %994 = vxpose.xlu0.b32.cont [13/16] 0.0, 128
      %995 = vxpose.xlu0.b32.cont [14/16] 0.0, 128
      %996 = vxpose.xlu0.b32.cont [15/16] 0.0, 128
      %997 = vxpose.xlu0.b32.end [16/16] 0.0, 128
      %v998 = vpop.trf.xlu0
      %v999 = vpop.trf.xlu0
      %v1000 = vpop.trf.xlu0
      %v1001 = vpop.trf.xlu0
      %v1002 = vpop.trf.xlu0
      %v1003 = vpop.trf.xlu0
      %v1004 = vpop.trf.xlu0
      %v1005 = vpop.trf.xlu0
      %v1006 = vpop.trf.xlu0
      %v1007 = vpop.trf.xlu0
      %v1008 = vpop.trf.xlu0
      %v1009 = vpop.trf.xlu0
      %v1010 = vpop.trf.xlu0
      %v1011 = vpop.trf.xlu0
      %v1012 = vpop.trf.xlu0
      %v1013 = vpop.trf.xlu0
      %1014 = vxpose.xlu0.b32.start [1/16] %v455, 128
      %1015 = vxpose.xlu0.b32.cont [2/16] 0.0, 128
      %1016 = vxpose.xlu0.b32.cont [3/16] 0.0, 128
      %1017 = vxpose.xlu0.b32.cont [4/16] 0.0, 128
      %1018 = vxpose.xlu0.b32.cont [5/16] 0.0, 128
      %1019 = vxpose.xlu0.b32.cont [6/16] 0.0, 128
      %1020 = vxpose.xlu0.b32.cont [7/16] 0.0, 128
      %1021 = vxpose.xlu0.b32.cont [8/16] 0.0, 128
      %1022 = vxpose.xlu0.b32.cont [9/16] 0.0, 128
      %1023 = vxpose.xlu0.b32.cont [10/16] 0.0, 128
      %1024 = vxpose.xlu0.b32.cont [11/16] 0.0, 128
      %1025 = vxpose.xlu0.b32.cont [12/16] 0.0, 128
      %1026 = vxpose.xlu0.b32.cont [13/16] 0.0, 128
      %1027 = vxpose.xlu0.b32.cont [14/16] 0.0, 128
      %1028 = vxpose.xlu0.b32.cont [15/16] 0.0, 128
      %1029 = vxpose.xlu0.b32.end [16/16] 0.0, 128
      %v1030 = vpop.trf.xlu0
      %v1031 = vpop.trf.xlu0
      %v1032 = vpop.trf.xlu0
      %v1033 = vpop.trf.xlu0
      %v1034 = vpop.trf.xlu0
      %v1035 = vpop.trf.xlu0
      %v1036 = vpop.trf.xlu0
      %v1037 = vpop.trf.xlu0
      %v1038 = vpop.trf.xlu0
      %v1039 = vpop.trf.xlu0
      %v1040 = vpop.trf.xlu0
      %v1041 = vpop.trf.xlu0
      %v1042 = vpop.trf.xlu0
      %v1043 = vpop.trf.xlu0
      %v1044 = vpop.trf.xlu0
      %v1045 = vpop.trf.xlu0
      %1046 = vxpose.xlu0.b32.start [1/16] %v456, 128
      %1047 = vxpose.xlu0.b32.cont [2/16] 0.0, 128
      %1048 = vxpose.xlu0.b32.cont [3/16] 0.0, 128
      %1049 = vxpose.xlu0.b32.cont [4/16] 0.0, 128
      %1050 = vxpose.xlu0.b32.cont [5/16] 0.0, 128
      %1051 = vxpose.xlu0.b32.cont [6/16] 0.0, 128
      %1052 = vxpose.xlu0.b32.cont [7/16] 0.0, 128
      %1053 = vxpose.xlu0.b32.cont [8/16] 0.0, 128
      %1054 = vxpose.xlu0.b32.cont [9/16] 0.0, 128
      %1055 = vxpose.xlu0.b32.cont [10/16] 0.0, 128
      %1056 = vxpose.xlu0.b32.cont [11/16] 0.0, 128
      %1057 = vxpose.xlu0.b32.cont [12/16] 0.0, 128
      %1058 = vxpose.xlu0.b32.cont [13/16] 0.0, 128
      %1059 = vxpose.xlu0.b32.cont [14/16] 0.0, 128
      %1060 = vxpose.xlu0.b32.cont [15/16] 0.0, 128
      %1061 = vxpose.xlu0.b32.end [16/16] 0.0, 128
      %v1062 = vpop.trf.xlu0
      %v1063 = vpop.trf.xlu0
      %v1064 = vpop.trf.xlu0
      %v1065 = vpop.trf.xlu0
      %v1066 = vpop.trf.xlu0
      %v1067 = vpop.trf.xlu0
      %v1068 = vpop.trf.xlu0
      %v1069 = vpop.trf.xlu0
      %v1070 = vpop.trf.xlu0
      %v1071 = vpop.trf.xlu0
      %v1072 = vpop.trf.xlu0
      %v1073 = vpop.trf.xlu0
      %v1074 = vpop.trf.xlu0
      %v1075 = vpop.trf.xlu0
      %v1076 = vpop.trf.xlu0
      %v1077 = vpop.trf.xlu0
      %1078 = vxpose.xlu0.b32.start [1/16] %v457, 128
      %1079 = vxpose.xlu0.b32.cont [2/16] 0.0, 128
      %1080 = vxpose.xlu0.b32.cont [3/16] 0.0, 128
      %1081 = vxpose.xlu0.b32.cont [4/16] 0.0, 128
      %1082 = vxpose.xlu0.b32.cont [5/16] 0.0, 128
      %1083 = vxpose.xlu0.b32.cont [6/16] 0.0, 128
      %1084 = vxpose.xlu0.b32.cont [7/16] 0.0, 128
      %1085 = vxpose.xlu0.b32.cont [8/16] 0.0, 128
      %1086 = vxpose.xlu0.b32.cont [9/16] 0.0, 128
      %1087 = vxpose.xlu0.b32.cont [10/16] 0.0, 128
      %1088 = vxpose.xlu0.b32.cont [11/16] 0.0, 128
      %1089 = vxpose.xlu0.b32.cont [12/16] 0.0, 128
      %1090 = vxpose.xlu0.b32.cont [13/16] 0.0, 128
      %1091 = vxpose.xlu0.b32.cont [14/16] 0.0, 128
      %1092 = vxpose.xlu0.b32.cont [15/16] 0.0, 128
      %1093 = vxpose.xlu0.b32.end [16/16] 0.0, 128
      %v1094 = vpop.trf.xlu0
      %v1095 = vpop.trf.xlu0
      %v1096 = vpop.trf.xlu0
      %v1097 = vpop.trf.xlu0
      %v1098 = vpop.trf.xlu0
      %v1099 = vpop.trf.xlu0
      %v1100 = vpop.trf.xlu0
      %v1101 = vpop.trf.xlu0
      %v1102 = vpop.trf.xlu0
      %v1103 = vpop.trf.xlu0
      %v1104 = vpop.trf.xlu0
      %v1105 = vpop.trf.xlu0
      %v1106 = vpop.trf.xlu0
      %v1107 = vpop.trf.xlu0
      %v1108 = vpop.trf.xlu0
      %v1109 = vpop.trf.xlu0
      %1110 = vxpose.xlu0.b32.start [1/16] %v458, 128
      %1111 = vxpose.xlu0.b32.cont [2/16] 0.0, 128
      %1112 = vxpose.xlu0.b32.cont [3/16] 0.0, 128
      %1113 = vxpose.xlu0.b32.cont [4/16] 0.0, 128
      %1114 = vxpose.xlu0.b32.cont [5/16] 0.0, 128
      %1115 = vxpose.xlu0.b32.cont [6/16] 0.0, 128
      %1116 = vxpose.xlu0.b32.cont [7/16] 0.0, 128
      %1117 = vxpose.xlu0.b32.cont [8/16] 0.0, 128
      %1118 = vxpose.xlu0.b32.cont [9/16] 0.0, 128
      %1119 = vxpose.xlu0.b32.cont [10/16] 0.0, 128
      %1120 = vxpose.xlu0.b32.cont [11/16] 0.0, 128
      %1121 = vxpose.xlu0.b32.cont [12/16] 0.0, 128
      %1122 = vxpose.xlu0.b32.cont [13/16] 0.0, 128
      %1123 = vxpose.xlu0.b32.cont [14/16] 0.0, 128
      %1124 = vxpose.xlu0.b32.cont [15/16] 0.0, 128
      %1125 = vxpose.xlu0.b32.end [16/16] 0.0, 128
      %v1126 = vpop.trf.xlu0
      %v1127 = vpop.trf.xlu0
      %v1128 = vpop.trf.xlu0
      %v1129 = vpop.trf.xlu0
      %v1130 = vpop.trf.xlu0
      %v1131 = vpop.trf.xlu0
      %v1132 = vpop.trf.xlu0
      %v1133 = vpop.trf.xlu0
      %v1134 = vpop.trf.xlu0
      %v1135 = vpop.trf.xlu0
      %v1136 = vpop.trf.xlu0
      %v1137 = vpop.trf.xlu0
      %v1138 = vpop.trf.xlu0
      %v1139 = vpop.trf.xlu0
      %v1140 = vpop.trf.xlu0
      %v1141 = vpop.trf.xlu0
      %1142 = vxpose.xlu0.b32.start [1/16] %v459, 128
      %1143 = vxpose.xlu0.b32.cont [2/16] 0.0, 128
      %1144 = vxpose.xlu0.b32.cont [3/16] 0.0, 128
      %1145 = vxpose.xlu0.b32.cont [4/16] 0.0, 128
      %1146 = vxpose.xlu0.b32.cont [5/16] 0.0, 128
      %1147 = vxpose.xlu0.b32.cont [6/16] 0.0, 128
      %1148 = vxpose.xlu0.b32.cont [7/16] 0.0, 128
      %1149 = vxpose.xlu0.b32.cont [8/16] 0.0, 128
      %1150 = vxpose.xlu0.b32.cont [9/16] 0.0, 128
      %1151 = vxpose.xlu0.b32.cont [10/16] 0.0, 128
      %1152 = vxpose.xlu0.b32.cont [11/16] 0.0, 128
      %1153 = vxpose.xlu0.b32.cont [12/16] 0.0, 128
      %1154 = vxpose.xlu0.b32.cont [13/16] 0.0, 128
      %1155 = vxpose.xlu0.b32.cont [14/16] 0.0, 128
      %1156 = vxpose.xlu0.b32.cont [15/16] 0.0, 128
      %1157 = vxpose.xlu0.b32.end [16/16] 0.0, 128
      %v1158 = vpop.trf.xlu0
      %v1159 = vpop.trf.xlu0
      %v1160 = vpop.trf.xlu0
      %v1161 = vpop.trf.xlu0
      %v1162 = vpop.trf.xlu0
      %v1163 = vpop.trf.xlu0
      %v1164 = vpop.trf.xlu0
      %v1165 = vpop.trf.xlu0
      %v1166 = vpop.trf.xlu0
      %v1167 = vpop.trf.xlu0
      %v1168 = vpop.trf.xlu0
      %v1169 = vpop.trf.xlu0
      %v1170 = vpop.trf.xlu0
      %v1171 = vpop.trf.xlu0
      %v1172 = vpop.trf.xlu0
      %v1173 = vpop.trf.xlu0
      %1174 = vxpose.xlu0.b32.start [1/16] %v460, 128
      %1175 = vxpose.xlu0.b32.cont [2/16] 0.0, 128
      %1176 = vxpose.xlu0.b32.cont [3/16] 0.0, 128
      %1177 = vxpose.xlu0.b32.cont [4/16] 0.0, 128
      %1178 = vxpose.xlu0.b32.cont [5/16] 0.0, 128
      %1179 = vxpose.xlu0.b32.cont [6/16] 0.0, 128
      %1180 = vxpose.xlu0.b32.cont [7/16] 0.0, 128
      %1181 = vxpose.xlu0.b32.cont [8/16] 0.0, 128
      %1182 = vxpose.xlu0.b32.cont [9/16] 0.0, 128
      %1183 = vxpose.xlu0.b32.cont [10/16] 0.0, 128
      %1184 = vxpose.xlu0.b32.cont [11/16] 0.0, 128
      %1185 = vxpose.xlu0.b32.cont [12/16] 0.0, 128
      %1186 = vxpose.xlu0.b32.cont [13/16] 0.0, 128
      %1187 = vxpose.xlu0.b32.cont [14/16] 0.0, 128
      %1188 = vxpose.xlu0.b32.cont [15/16] 0.0, 128
      %1189 = vxpose.xlu0.b32.end [16/16] 0.0, 128
      %v1190 = vpop.trf.xlu0
      %v1191 = vpop.trf.xlu0
      %v1192 = vpop.trf.xlu0
      %v1193 = vpop.trf.xlu0
      %v1194 = vpop.trf.xlu0
      %v1195 = vpop.trf.xlu0
      %v1196 = vpop.trf.xlu0
      %v1197 = vpop.trf.xlu0
      %v1198 = vpop.trf.xlu0
      %v1199 = vpop.trf.xlu0
      %v1200 = vpop.trf.xlu0
      %v1201 = vpop.trf.xlu0
      %v1202 = vpop.trf.xlu0
      %v1203 = vpop.trf.xlu0
      %v1204 = vpop.trf.xlu0
      %v1205 = vpop.trf.xlu0
      %1206 = vxpose.xlu0.b32.start [1/16] %v461, 128
      %1207 = vxpose.xlu0.b32.cont [2/16] 0.0, 128
      %1208 = vxpose.xlu0.b32.cont [3/16] 0.0, 128
      %1209 = vxpose.xlu0.b32.cont [4/16] 0.0, 128
      %1210 = vxpose.xlu0.b32.cont [5/16] 0.0, 128
      %1211 = vxpose.xlu0.b32.cont [6/16] 0.0, 128
      %1212 = vxpose.xlu0.b32.cont [7/16] 0.0, 128
      %1213 = vxpose.xlu0.b32.cont [8/16] 0.0, 128
      %1214 = vxpose.xlu0.b32.cont [9/16] 0.0, 128
      %1215 = vxpose.xlu0.b32.cont [10/16] 0.0, 128
      %1216 = vxpose.xlu0.b32.cont [11/16] 0.0, 128
      %1217 = vxpose.xlu0.b32.cont [12/16] 0.0, 128
      %1218 = vxpose.xlu0.b32.cont [13/16] 0.0, 128
      %1219 = vxpose.xlu0.b32.cont [14/16] 0.0, 128
      %1220 = vxpose.xlu0.b32.cont [15/16] 0.0, 128
      %1221 = vxpose.xlu0.b32.end [16/16] 0.0, 128
      %v1222 = vpop.trf.xlu0
      %v1223 = vpop.trf.xlu0
      %v1224 = vpop.trf.xlu0
      %v1225 = vpop.trf.xlu0
      %v1226 = vpop.trf.xlu0
      %v1227 = vpop.trf.xlu0
      %v1228 = vpop.trf.xlu0
      %v1229 = vpop.trf.xlu0
      %v1230 = vpop.trf.xlu0
      %v1231 = vpop.trf.xlu0
      %v1232 = vpop.trf.xlu0
      %v1233 = vpop.trf.xlu0
      %v1234 = vpop.trf.xlu0
      %v1235 = vpop.trf.xlu0
      %v1236 = vpop.trf.xlu0
      %v1237 = vpop.trf.xlu0
      %1238 = vxpose.xlu0.b32.start [1/16] %v462, 128
      %1239 = vxpose.xlu0.b32.cont [2/16] 0.0, 128
      %1240 = vxpose.xlu0.b32.cont [3/16] 0.0, 128
      %1241 = vxpose.xlu0.b32.cont [4/16] 0.0, 128
      %1242 = vxpose.xlu0.b32.cont [5/16] 0.0, 128
      %1243 = vxpose.xlu0.b32.cont [6/16] 0.0, 128
      %1244 = vxpose.xlu0.b32.cont [7/16] 0.0, 128
      %1245 = vxpose.xlu0.b32.cont [8/16] 0.0, 128
      %1246 = vxpose.xlu0.b32.cont [9/16] 0.0, 128
      %1247 = vxpose.xlu0.b32.cont [10/16] 0.0, 128
      %1248 = vxpose.xlu0.b32.cont [11/16] 0.0, 128
      %1249 = vxpose.xlu0.b32.cont [12/16] 0.0, 128
      %1250 = vxpose.xlu0.b32.cont [13/16] 0.0, 128
      %1251 = vxpose.xlu0.b32.cont [14/16] 0.0, 128
      %1252 = vxpose.xlu0.b32.cont [15/16] 0.0, 128
      %1253 = vxpose.xlu0.b32.end [16/16] 0.0, 128
      %v1254 = vpop.trf.xlu0
      %v1255 = vpop.trf.xlu0
      %v1256 = vpop.trf.xlu0
      %v1257 = vpop.trf.xlu0
      %v1258 = vpop.trf.xlu0
      %v1259 = vpop.trf.xlu0
      %v1260 = vpop.trf.xlu0
      %v1261 = vpop.trf.xlu0
      %v1262 = vpop.trf.xlu0
      %v1263 = vpop.trf.xlu0
      %v1264 = vpop.trf.xlu0
      %v1265 = vpop.trf.xlu0
      %v1266 = vpop.trf.xlu0
      %v1267 = vpop.trf.xlu0
      %v1268 = vpop.trf.xlu0
      %v1269 = vpop.trf.xlu0
      %1270 = vxpose.xlu0.b32.start [1/16] %v463, 128
      %1271 = vxpose.xlu0.b32.cont [2/16] 0.0, 128
      %1272 = vxpose.xlu0.b32.cont [3/16] 0.0, 128
      %1273 = vxpose.xlu0.b32.cont [4/16] 0.0, 128
      %1274 = vxpose.xlu0.b32.cont [5/16] 0.0, 128
      %1275 = vxpose.xlu0.b32.cont [6/16] 0.0, 128
      %1276 = vxpose.xlu0.b32.cont [7/16] 0.0, 128
      %1277 = vxpose.xlu0.b32.cont [8/16] 0.0, 128
      %1278 = vxpose.xlu0.b32.cont [9/16] 0.0, 128
      %1279 = vxpose.xlu0.b32.cont [10/16] 0.0, 128
      %1280 = vxpose.xlu0.b32.cont [11/16] 0.0, 128
      %1281 = vxpose.xlu0.b32.cont [12/16] 0.0, 128
      %1282 = vxpose.xlu0.b32.cont [13/16] 0.0, 128
      %1283 = vxpose.xlu0.b32.cont [14/16] 0.0, 128
      %1284 = vxpose.xlu0.b32.cont [15/16] 0.0, 128
      %1285 = vxpose.xlu0.b32.end [16/16] 0.0, 128
      %v1286 = vpop.trf.xlu0
      %v1287 = vpop.trf.xlu0
      %v1288 = vpop.trf.xlu0
      %v1289 = vpop.trf.xlu0
      %v1290 = vpop.trf.xlu0
      %v1291 = vpop.trf.xlu0
      %v1292 = vpop.trf.xlu0
      %v1293 = vpop.trf.xlu0
      %v1294 = vpop.trf.xlu0
      %v1295 = vpop.trf.xlu0
      %v1296 = vpop.trf.xlu0
      %v1297 = vpop.trf.xlu0
      %v1298 = vpop.trf.xlu0
      %v1299 = vpop.trf.xlu0
      %v1300 = vpop.trf.xlu0
      %v1301 = vpop.trf.xlu0
      %1302 = vxpose.xlu0.b32.start [1/16] %v464, 128
      %1303 = vxpose.xlu0.b32.cont [2/16] 0.0, 128
      %1304 = vxpose.xlu0.b32.cont [3/16] 0.0, 128
      %1305 = vxpose.xlu0.b32.cont [4/16] 0.0, 128
      %1306 = vxpose.xlu0.b32.cont [5/16] 0.0, 128
      %1307 = vxpose.xlu0.b32.cont [6/16] 0.0, 128
      %1308 = vxpose.xlu0.b32.cont [7/16] 0.0, 128
      %1309 = vxpose.xlu0.b32.cont [8/16] 0.0, 128
      %1310 = vxpose.xlu0.b32.cont [9/16] 0.0, 128
      %1311 = vxpose.xlu0.b32.cont [10/16] 0.0, 128
      %1312 = vxpose.xlu0.b32.cont [11/16] 0.0, 128
      %1313 = vxpose.xlu0.b32.cont [12/16] 0.0, 128
      %1314 = vxpose.xlu0.b32.cont [13/16] 0.0, 128
      %1315 = vxpose.xlu0.b32.cont [14/16] 0.0, 128
      %1316 = vxpose.xlu0.b32.cont [15/16] 0.0, 128
      %1317 = vxpose.xlu0.b32.end [16/16] 0.0, 128
      %v1318 = vpop.trf.xlu0
      %v1319 = vpop.trf.xlu0
      %v1320 = vpop.trf.xlu0
      %v1321 = vpop.trf.xlu0
      %v1322 = vpop.trf.xlu0
      %v1323 = vpop.trf.xlu0
      %v1324 = vpop.trf.xlu0
      %v1325 = vpop.trf.xlu0
      %v1326 = vpop.trf.xlu0
      %v1327 = vpop.trf.xlu0
      %v1328 = vpop.trf.xlu0
      %v1329 = vpop.trf.xlu0
      %v1330 = vpop.trf.xlu0
      %v1331 = vpop.trf.xlu0
      %v1332 = vpop.trf.xlu0
      %v1333 = vpop.trf.xlu0
      %1334 = vxpose.xlu0.b32.start [1/16] %v465, 128
      %1335 = vxpose.xlu0.b32.cont [2/16] 0.0, 128
      %1336 = vxpose.xlu0.b32.cont [3/16] 0.0, 128
      %1337 = vxpose.xlu0.b32.cont [4/16] 0.0, 128
      %1338 = vxpose.xlu0.b32.cont [5/16] 0.0, 128
      %1339 = vxpose.xlu0.b32.cont [6/16] 0.0, 128
      %1340 = vxpose.xlu0.b32.cont [7/16] 0.0, 128
      %1341 = vxpose.xlu0.b32.cont [8/16] 0.0, 128
      %1342 = vxpose.xlu0.b32.cont [9/16] 0.0, 128
      %1343 = vxpose.xlu0.b32.cont [10/16] 0.0, 128
      %1344 = vxpose.xlu0.b32.cont [11/16] 0.0, 128
      %1345 = vxpose.xlu0.b32.cont [12/16] 0.0, 128
      %1346 = vxpose.xlu0.b32.cont [13/16] 0.0, 128
      %1347 = vxpose.xlu0.b32.cont [14/16] 0.0, 128
      %1348 = vxpose.xlu0.b32.cont [15/16] 0.0, 128
      %1349 = vxpose.xlu0.b32.end [16/16] 0.0, 128
      %v1350 = vpop.trf.xlu0
      %v1351 = vpop.trf.xlu0
      %v1352 = vpop.trf.xlu0
      %v1353 = vpop.trf.xlu0
      %v1354 = vpop.trf.xlu0
      %v1355 = vpop.trf.xlu0
      %v1356 = vpop.trf.xlu0
      %v1357 = vpop.trf.xlu0
      %v1358 = vpop.trf.xlu0
      %v1359 = vpop.trf.xlu0
      %v1360 = vpop.trf.xlu0
      %v1361 = vpop.trf.xlu0
      %v1362 = vpop.trf.xlu0
      %v1363 = vpop.trf.xlu0
      %v1364 = vpop.trf.xlu0
      %v1365 = vpop.trf.xlu0
      %1366 = vxpose.xlu0.b32.start [1/16] %v466, 128
      %1367 = vxpose.xlu0.b32.cont [2/16] 0.0, 128
      %1368 = vxpose.xlu0.b32.cont [3/16] 0.0, 128
      %1369 = vxpose.xlu0.b32.cont [4/16] 0.0, 128
      %1370 = vxpose.xlu0.b32.cont [5/16] 0.0, 128
      %1371 = vxpose.xlu0.b32.cont [6/16] 0.0, 128
      %1372 = vxpose.xlu0.b32.cont [7/16] 0.0, 128
      %1373 = vxpose.xlu0.b32.cont [8/16] 0.0, 128
      %1374 = vxpose.xlu0.b32.cont [9/16] 0.0, 128
      %1375 = vxpose.xlu0.b32.cont [10/16] 0.0, 128
      %1376 = vxpose.xlu0.b32.cont [11/16] 0.0, 128
      %1377 = vxpose.xlu0.b32.cont [12/16] 0.0, 128
      %1378 = vxpose.xlu0.b32.cont [13/16] 0.0, 128
      %1379 = vxpose.xlu0.b32.cont [14/16] 0.0, 128
      %1380 = vxpose.xlu0.b32.cont [15/16] 0.0, 128
      %1381 = vxpose.xlu0.b32.end [16/16] 0.0, 128
      %v1382 = vpop.trf.xlu0
      %v1383 = vpop.trf.xlu0
      %v1384 = vpop.trf.xlu0
      %v1385 = vpop.trf.xlu0
      %v1386 = vpop.trf.xlu0
      %v1387 = vpop.trf.xlu0
      %v1388 = vpop.trf.xlu0
      %v1389 = vpop.trf.xlu0
      %v1390 = vpop.trf.xlu0
      %v1391 = vpop.trf.xlu0
      %v1392 = vpop.trf.xlu0
      %v1393 = vpop.trf.xlu0
      %v1394 = vpop.trf.xlu0
      %v1395 = vpop.trf.xlu0
      %v1396 = vpop.trf.xlu0
      %v1397 = vpop.trf.xlu0
      %1398 = vxpose.xlu0.b32.start [1/16] %v467, 128
      %1399 = vxpose.xlu0.b32.cont [2/16] 0.0, 128
      %1400 = vxpose.xlu0.b32.cont [3/16] 0.0, 128
      %1401 = vxpose.xlu0.b32.cont [4/16] 0.0, 128
      %1402 = vxpose.xlu0.b32.cont [5/16] 0.0, 128
      %1403 = vxpose.xlu0.b32.cont [6/16] 0.0, 128
      %1404 = vxpose.xlu0.b32.cont [7/16] 0.0, 128
      %1405 = vxpose.xlu0.b32.cont [8/16] 0.0, 128
      %1406 = vxpose.xlu0.b32.cont [9/16] 0.0, 128
      %1407 = vxpose.xlu0.b32.cont [10/16] 0.0, 128
      %1408 = vxpose.xlu0.b32.cont [11/16] 0.0, 128
      %1409 = vxpose.xlu0.b32.cont [12/16] 0.0, 128
      %1410 = vxpose.xlu0.b32.cont [13/16] 0.0, 128
      %1411 = vxpose.xlu0.b32.cont [14/16] 0.0, 128
      %1412 = vxpose.xlu0.b32.cont [15/16] 0.0, 128
      %1413 = vxpose.xlu0.b32.end [16/16] 0.0, 128
      %v1414 = vpop.trf.xlu0
      %v1415 = vpop.trf.xlu0
      %v1416 = vpop.trf.xlu0
      %v1417 = vpop.trf.xlu0
      %v1418 = vpop.trf.xlu0
      %v1419 = vpop.trf.xlu0
      %v1420 = vpop.trf.xlu0
      %v1421 = vpop.trf.xlu0
      %v1422 = vpop.trf.xlu0
      %v1423 = vpop.trf.xlu0
      %v1424 = vpop.trf.xlu0
      %v1425 = vpop.trf.xlu0
      %v1426 = vpop.trf.xlu0
      %v1427 = vpop.trf.xlu0
      %v1428 = vpop.trf.xlu0
      %v1429 = vpop.trf.xlu0
      %1430 = vxpose.xlu0.b32.start [1/16] %v468, 128
      %1431 = vxpose.xlu0.b32.cont [2/16] 0.0, 128
      %1432 = vxpose.xlu0.b32.cont [3/16] 0.0, 128
      %1433 = vxpose.xlu0.b32.cont [4/16] 0.0, 128
      %1434 = vxpose.xlu0.b32.cont [5/16] 0.0, 128
      %1435 = vxpose.xlu0.b32.cont [6/16] 0.0, 128
      %1436 = vxpose.xlu0.b32.cont [7/16] 0.0, 128
      %1437 = vxpose.xlu0.b32.cont [8/16] 0.0, 128
      %1438 = vxpose.xlu0.b32.cont [9/16] 0.0, 128
      %1439 = vxpose.xlu0.b32.cont [10/16] 0.0, 128
      %1440 = vxpose.xlu0.b32.cont [11/16] 0.0, 128
      %1441 = vxpose.xlu0.b32.cont [12/16] 0.0, 128
      %1442 = vxpose.xlu0.b32.cont [13/16] 0.0, 128
      %1443 = vxpose.xlu0.b32.cont [14/16] 0.0, 128
      %1444 = vxpose.xlu0.b32.cont [15/16] 0.0, 128
      %1445 = vxpose.xlu0.b32.end [16/16] 0.0, 128
      %v1446 = vpop.trf.xlu0
      %v1447 = vpop.trf.xlu0
      %v1448 = vpop.trf.xlu0
      %v1449 = vpop.trf.xlu0
      %v1450 = vpop.trf.xlu0
      %v1451 = vpop.trf.xlu0
      %v1452 = vpop.trf.xlu0
      %v1453 = vpop.trf.xlu0
      %v1454 = vpop.trf.xlu0
      %v1455 = vpop.trf.xlu0
      %v1456 = vpop.trf.xlu0
      %v1457 = vpop.trf.xlu0
      %v1458 = vpop.trf.xlu0
      %v1459 = vpop.trf.xlu0
      %v1460 = vpop.trf.xlu0
      %v1461 = vpop.trf.xlu0
      %1462 = vxpose.xlu0.b32.start [1/16] %v469, 128
      %1463 = vxpose.xlu0.b32.cont [2/16] 0.0, 128
      %1464 = vxpose.xlu0.b32.cont [3/16] 0.0, 128
      %1465 = vxpose.xlu0.b32.cont [4/16] 0.0, 128
      %1466 = vxpose.xlu0.b32.cont [5/16] 0.0, 128
      %1467 = vxpose.xlu0.b32.cont [6/16] 0.0, 128
      %1468 = vxpose.xlu0.b32.cont [7/16] 0.0, 128
      %1469 = vxpose.xlu0.b32.cont [8/16] 0.0, 128
      %1470 = vxpose.xlu0.b32.cont [9/16] 0.0, 128
      %1471 = vxpose.xlu0.b32.cont [10/16] 0.0, 128
      %1472 = vxpose.xlu0.b32.cont [11/16] 0.0, 128
      %1473 = vxpose.xlu0.b32.cont [12/16] 0.0, 128
      %1474 = vxpose.xlu0.b32.cont [13/16] 0.0, 128
      %1475 = vxpose.xlu0.b32.cont [14/16] 0.0, 128
      %1476 = vxpose.xlu0.b32.cont [15/16] 0.0, 128
      %1477 = vxpose.xlu0.b32.end [16/16] 0.0, 128
      %v1478 = vpop.trf.xlu0
      %v1479 = vpop.trf.xlu0
      %v1480 = vpop.trf.xlu0
      %v1481 = vpop.trf.xlu0
      %v1482 = vpop.trf.xlu0
      %v1483 = vpop.trf.xlu0
      %v1484 = vpop.trf.xlu0
      %v1485 = vpop.trf.xlu0
      %v1486 = vpop.trf.xlu0
      %v1487 = vpop.trf.xlu0
      %v1488 = vpop.trf.xlu0
      %v1489 = vpop.trf.xlu0
      %v1490 = vpop.trf.xlu0
      %v1491 = vpop.trf.xlu0
      %v1492 = vpop.trf.xlu0
      %v1493 = vpop.trf.xlu0
      %v1494 = vcombine.low %v486, %v550
      %v1495 = vcombine.high %v486, %v550
      %v1497 = vunpack.c.l.s4 1983009808
      %v1498 = vunpack.c.0.s8 %v1497
      %v1499 = vlaneseq
      %v1500 = vshrl.u32 %v1499, 7
      %v1501 = vsub.s32 %v1498, %v1500
      %v1502 = vrot.slane %v1494, %v1501
      %v1504 = vunpack.c.l.s4 1983009808
      %v1505 = vunpack.c.0.s8 %v1504
      %v1506 = vlaneseq
      %v1507 = vshrl.u32 %v1506, 7
      %v1508 = vsub.s32 %v1505, %v1507
      %v1509 = vrot.slane %v1495, %v1508
      %v1510 = vcombine.low %v518, %v582
      %v1511 = vcombine.high %v518, %v582
      %v1513 = vunpack.c.l.s4 1983009808
      %v1514 = vunpack.c.0.s8 %v1513
      %v1515 = vlaneseq
      %v1516 = vshrl.u32 %v1515, 7
      %v1517 = vsub.s32 %v1514, %v1516
      %v1518 = vrot.slane %v1510, %v1517
      %v1520 = vunpack.c.l.s4 1983009808
      %v1521 = vunpack.c.0.s8 %v1520
      %v1522 = vlaneseq
      %v1523 = vshrl.u32 %v1522, 7
      %v1524 = vsub.s32 %v1521, %v1523
      %v1525 = vrot.slane %v1511, %v1524
      %v1526 = vcombine.low %v614, %v678
      %v1527 = vcombine.high %v614, %v678
      %v1529 = vunpack.c.l.s4 1983009808
      %v1530 = vunpack.c.0.s8 %v1529
      %v1531 = vlaneseq
      %v1532 = vshrl.u32 %v1531, 7
      %v1533 = vsub.s32 %v1530, %v1532
      %v1534 = vrot.slane %v1526, %v1533
      %v1536 = vunpack.c.l.s4 1983009808
      %v1537 = vunpack.c.0.s8 %v1536
      %v1538 = vlaneseq
      %v1539 = vshrl.u32 %v1538, 7
      %v1540 = vsub.s32 %v1537, %v1539
      %v1541 = vrot.slane %v1527, %v1540
      %v1542 = vcombine.low %v646, %v710
      %v1543 = vcombine.high %v646, %v710
      %v1545 = vunpack.c.l.s4 1983009808
      %v1546 = vunpack.c.0.s8 %v1545
      %v1547 = vlaneseq
      %v1548 = vshrl.u32 %v1547, 7
      %v1549 = vsub.s32 %v1546, %v1548
      %v1550 = vrot.slane %v1542, %v1549
      %v1552 = vunpack.c.l.s4 1983009808
      %v1553 = vunpack.c.0.s8 %v1552
      %v1554 = vlaneseq
      %v1555 = vshrl.u32 %v1554, 7
      %v1556 = vsub.s32 %v1553, %v1555
      %v1557 = vrot.slane %v1543, %v1556
      %v1558 = vcombine.low %v1502, %v1518
      %v1559 = vcombine.high %v1502, %v1518
      %v1561 = vunpack.c.l.s4 1934713408
      %v1562 = vunpack.c.0.s8 %v1561
      %v1563 = vlaneseq
      %v1564 = vshrl.u32 %v1563, 7
      %v1565 = vsub.s32 %v1562, %v1564
      %v1566 = vrot.slane %v1558, %v1565
      %v1568 = vunpack.c.l.s4 1934713408
      %v1569 = vunpack.c.0.s8 %v1568
      %v1570 = vlaneseq
      %v1571 = vshrl.u32 %v1570, 7
      %v1572 = vsub.s32 %v1569, %v1571
      %v1573 = vrot.slane %v1559, %v1572
      %v1574 = vcombine.low %v1509, %v1525
      %v1575 = vcombine.high %v1509, %v1525
      %v1577 = vunpack.c.l.s4 1934713408
      %v1578 = vunpack.c.0.s8 %v1577
      %v1579 = vlaneseq
      %v1580 = vshrl.u32 %v1579, 7
      %v1581 = vsub.s32 %v1578, %v1580
      %v1582 = vrot.slane %v1574, %v1581
      %v1584 = vunpack.c.l.s4 1934713408
      %v1585 = vunpack.c.0.s8 %v1584
      %v1586 = vlaneseq
      %v1587 = vshrl.u32 %v1586, 7
      %v1588 = vsub.s32 %v1585, %v1587
      %v1589 = vrot.slane %v1575, %v1588
      %v1590 = vcombine.low %v1534, %v1550
      %v1591 = vcombine.high %v1534, %v1550
      %v1593 = vunpack.c.l.s4 1934713408
      %v1594 = vunpack.c.0.s8 %v1593
      %v1595 = vlaneseq
      %v1596 = vshrl.u32 %v1595, 7
      %v1597 = vsub.s32 %v1594, %v1596
      %v1598 = vrot.slane %v1590, %v1597
      %v1600 = vunpack.c.l.s4 1934713408
      %v1601 = vunpack.c.0.s8 %v1600
      %v1602 = vlaneseq
      %v1603 = vshrl.u32 %v1602, 7
      %v1604 = vsub.s32 %v1601, %v1603
      %v1605 = vrot.slane %v1591, %v1604
      %v1606 = vcombine.low %v1541, %v1557
      %v1607 = vcombine.high %v1541, %v1557
      %v1609 = vunpack.c.l.s4 1934713408
      %v1610 = vunpack.c.0.s8 %v1609
      %v1611 = vlaneseq
      %v1612 = vshrl.u32 %v1611, 7
      %v1613 = vsub.s32 %v1610, %v1612
      %v1614 = vrot.slane %v1606, %v1613
      %v1616 = vunpack.c.l.s4 1934713408
      %v1617 = vunpack.c.0.s8 %v1616
      %v1618 = vlaneseq
      %v1619 = vshrl.u32 %v1618, 7
      %v1620 = vsub.s32 %v1617, %v1619
      %v1621 = vrot.slane %v1607, %v1620
      %v1622 = vcombine.low %v1566, %v1598
      %v1623 = vcombine.high %v1566, %v1598
      %v1624 = vcombine.low %v1573, %v1605
      %v1625 = vcombine.high %v1573, %v1605
      %v1626 = vcombine.low %v1582, %v1614
      %v1627 = vcombine.high %v1582, %v1614
      %v1628 = vcombine.low %v1589, %v1621
      %v1629 = vcombine.high %v1589, %v1621
      %v1630 = vcombine.low %v742, %v806
      %v1631 = vcombine.high %v742, %v806
      %v1633 = vunpack.c.l.s4 1983009808
      %v1634 = vunpack.c.0.s8 %v1633
      %v1635 = vlaneseq
      %v1636 = vshrl.u32 %v1635, 7
      %v1637 = vsub.s32 %v1634, %v1636
      %v1638 = vrot.slane %v1630, %v1637
      %v1640 = vunpack.c.l.s4 1983009808
      %v1641 = vunpack.c.0.s8 %v1640
      %v1642 = vlaneseq
      %v1643 = vshrl.u32 %v1642, 7
      %v1644 = vsub.s32 %v1641, %v1643
      %v1645 = vrot.slane %v1631, %v1644
      %v1646 = vcombine.low %v774, %v838
      %v1647 = vcombine.high %v774, %v838
      %v1649 = vunpack.c.l.s4 1983009808
      %v1650 = vunpack.c.0.s8 %v1649
      %v1651 = vlaneseq
      %v1652 = vshrl.u32 %v1651, 7
      %v1653 = vsub.s32 %v1650, %v1652
      %v1654 = vrot.slane %v1646, %v1653
      %v1656 = vunpack.c.l.s4 1983009808
      %v1657 = vunpack.c.0.s8 %v1656
      %v1658 = vlaneseq
      %v1659 = vshrl.u32 %v1658, 7
      %v1660 = vsub.s32 %v1657, %v1659
      %v1661 = vrot.slane %v1647, %v1660
      %v1662 = vcombine.low %v870, %v934
      %v1663 = vcombine.high %v870, %v934
      %v1665 = vunpack.c.l.s4 1983009808
      %v1666 = vunpack.c.0.s8 %v1665
      %v1667 = vlaneseq
      %v1668 = vshrl.u32 %v1667, 7
      %v1669 = vsub.s32 %v1666, %v1668
      %v1670 = vrot.slane %v1662, %v1669
      %v1672 = vunpack.c.l.s4 1983009808
      %v1673 = vunpack.c.0.s8 %v1672
      %v1674 = vlaneseq
      %v1675 = vshrl.u32 %v1674, 7
      %v1676 = vsub.s32 %v1673, %v1675
      %v1677 = vrot.slane %v1663, %v1676
      %v1678 = vcombine.low %v902, %v966
      %v1679 = vcombine.high %v902, %v966
      %v1681 = vunpack.c.l.s4 1983009808
      %v1682 = vunpack.c.0.s8 %v1681
      %v1683 = vlaneseq
      %v1684 = vshrl.u32 %v1683, 7
      %v1685 = vsub.s32 %v1682, %v1684
      %v1686 = vrot.slane %v1678, %v1685
      %v1688 = vunpack.c.l.s4 1983009808
      %v1689 = vunpack.c.0.s8 %v1688
      %v1690 = vlaneseq
      %v1691 = vshrl.u32 %v1690, 7
      %v1692 = vsub.s32 %v1689, %v1691
      %v1693 = vrot.slane %v1679, %v1692
      %v1694 = vcombine.low %v1638, %v1654
      %v1695 = vcombine.high %v1638, %v1654
      %v1697 = vunpack.c.l.s4 1934713408
      %v1698 = vunpack.c.0.s8 %v1697
      %v1699 = vlaneseq
      %v1700 = vshrl.u32 %v1699, 7
      %v1701 = vsub.s32 %v1698, %v1700
      %v1702 = vrot.slane %v1694, %v1701
      %v1704 = vunpack.c.l.s4 1934713408
      %v1705 = vunpack.c.0.s8 %v1704
      %v1706 = vlaneseq
      %v1707 = vshrl.u32 %v1706, 7
      %v1708 = vsub.s32 %v1705, %v1707
      %v1709 = vrot.slane %v1695, %v1708
      %v1710 = vcombine.low %v1645, %v1661
      %v1711 = vcombine.high %v1645, %v1661
      %v1713 = vunpack.c.l.s4 1934713408
      %v1714 = vunpack.c.0.s8 %v1713
      %v1715 = vlaneseq
      %v1716 = vshrl.u32 %v1715, 7
      %v1717 = vsub.s32 %v1714, %v1716
      %v1718 = vrot.slane %v1710, %v1717
      %v1720 = vunpack.c.l.s4 1934713408
      %v1721 = vunpack.c.0.s8 %v1720
      %v1722 = vlaneseq
      %v1723 = vshrl.u32 %v1722, 7
      %v1724 = vsub.s32 %v1721, %v1723
      %v1725 = vrot.slane %v1711, %v1724
      %v1726 = vcombine.low %v1670, %v1686
      %v1727 = vcombine.high %v1670, %v1686
      %v1729 = vunpack.c.l.s4 1934713408
      %v1730 = vunpack.c.0.s8 %v1729
      %v1731 = vlaneseq
      %v1732 = vshrl.u32 %v1731, 7
      %v1733 = vsub.s32 %v1730, %v1732
      %v1734 = vrot.slane %v1726, %v1733
      %v1736 = vunpack.c.l.s4 1934713408
      %v1737 = vunpack.c.0.s8 %v1736
      %v1738 = vlaneseq
      %v1739 = vshrl.u32 %v1738, 7
      %v1740 = vsub.s32 %v1737, %v1739
      %v1741 = vrot.slane %v1727, %v1740
      %v1742 = vcombine.low %v1677, %v1693
      %v1743 = vcombine.high %v1677, %v1693
      %v1745 = vunpack.c.l.s4 1934713408
      %v1746 = vunpack.c.0.s8 %v1745
      %v1747 = vlaneseq
      %v1748 = vshrl.u32 %v1747, 7
      %v1749 = vsub.s32 %v1746, %v1748
      %v1750 = vrot.slane %v1742, %v1749
      %v1752 = vunpack.c.l.s4 1934713408
      %v1753 = vunpack.c.0.s8 %v1752
      %v1754 = vlaneseq
      %v1755 = vshrl.u32 %v1754, 7
      %v1756 = vsub.s32 %v1753, %v1755
      %v1757 = vrot.slane %v1743, %v1756
      %v1758 = vcombine.low %v1702, %v1734
      %v1759 = vcombine.high %v1702, %v1734
      %v1760 = vcombine.low %v1709, %v1741
      %v1761 = vcombine.high %v1709, %v1741
      %v1762 = vcombine.low %v1718, %v1750
      %v1763 = vcombine.high %v1718, %v1750
      %v1764 = vcombine.low %v1725, %v1757
      %v1765 = vcombine.high %v1725, %v1757
      %v1766 = vcombine.low %v998, %v1062
      %v1767 = vcombine.high %v998, %v1062
      %v1769 = vunpack.c.l.s4 1983009808
      %v1770 = vunpack.c.0.s8 %v1769
      %v1771 = vlaneseq
      %v1772 = vshrl.u32 %v1771, 7
      %v1773 = vsub.s32 %v1770, %v1772
      %v1774 = vrot.slane %v1766, %v1773
      %v1776 = vunpack.c.l.s4 1983009808
      %v1777 = vunpack.c.0.s8 %v1776
      %v1778 = vlaneseq
      %v1779 = vshrl.u32 %v1778, 7
      %v1780 = vsub.s32 %v1777, %v1779
      %v1781 = vrot.slane %v1767, %v1780
      %v1782 = vcombine.low %v1030, %v1094
      %v1783 = vcombine.high %v1030, %v1094
      %v1785 = vunpack.c.l.s4 1983009808
      %v1786 = vunpack.c.0.s8 %v1785
      %v1787 = vlaneseq
      %v1788 = vshrl.u32 %v1787, 7
      %v1789 = vsub.s32 %v1786, %v1788
      %v1790 = vrot.slane %v1782, %v1789
      %v1792 = vunpack.c.l.s4 1983009808
      %v1793 = vunpack.c.0.s8 %v1792
      %v1794 = vlaneseq
      %v1795 = vshrl.u32 %v1794, 7
      %v1796 = vsub.s32 %v1793, %v1795
      %v1797 = vrot.slane %v1783, %v1796
      %v1798 = vcombine.low %v1126, %v1190
      %v1799 = vcombine.high %v1126, %v1190
      %v1801 = vunpack.c.l.s4 1983009808
      %v1802 = vunpack.c.0.s8 %v1801
      %v1803 = vlaneseq
      %v1804 = vshrl.u32 %v1803, 7
      %v1805 = vsub.s32 %v1802, %v1804
      %v1806 = vrot.slane %v1798, %v1805
      %v1808 = vunpack.c.l.s4 1983009808
      %v1809 = vunpack.c.0.s8 %v1808
      %v1810 = vlaneseq
      %v1811 = vshrl.u32 %v1810, 7
      %v1812 = vsub.s32 %v1809, %v1811
      %v1813 = vrot.slane %v1799, %v1812
      %v1814 = vcombine.low %v1158, %v1222
      %v1815 = vcombine.high %v1158, %v1222
      %v1817 = vunpack.c.l.s4 1983009808
      %v1818 = vunpack.c.0.s8 %v1817
      %v1819 = vlaneseq
      %v1820 = vshrl.u32 %v1819, 7
      %v1821 = vsub.s32 %v1818, %v1820
      %v1822 = vrot.slane %v1814, %v1821
      %v1824 = vunpack.c.l.s4 1983009808
      %v1825 = vunpack.c.0.s8 %v1824
      %v1826 = vlaneseq
      %v1827 = vshrl.u32 %v1826, 7
      %v1828 = vsub.s32 %v1825, %v1827
      %v1829 = vrot.slane %v1815, %v1828
      %v1830 = vcombine.low %v1774, %v1790
      %v1831 = vcombine.high %v1774, %v1790
      %v1833 = vunpack.c.l.s4 1934713408
      %v1834 = vunpack.c.0.s8 %v1833
      %v1835 = vlaneseq
      %v1836 = vshrl.u32 %v1835, 7
      %v1837 = vsub.s32 %v1834, %v1836
      %v1838 = vrot.slane %v1830, %v1837
      %v1840 = vunpack.c.l.s4 1934713408
      %v1841 = vunpack.c.0.s8 %v1840
      %v1842 = vlaneseq
      %v1843 = vshrl.u32 %v1842, 7
      %v1844 = vsub.s32 %v1841, %v1843
      %v1845 = vrot.slane %v1831, %v1844
      %v1846 = vcombine.low %v1781, %v1797
      %v1847 = vcombine.high %v1781, %v1797
      %v1849 = vunpack.c.l.s4 1934713408
      %v1850 = vunpack.c.0.s8 %v1849
      %v1851 = vlaneseq
      %v1852 = vshrl.u32 %v1851, 7
      %v1853 = vsub.s32 %v1850, %v1852
      %v1854 = vrot.slane %v1846, %v1853
      %v1856 = vunpack.c.l.s4 1934713408
      %v1857 = vunpack.c.0.s8 %v1856
      %v1858 = vlaneseq
      %v1859 = vshrl.u32 %v1858, 7
      %v1860 = vsub.s32 %v1857, %v1859
      %v1861 = vrot.slane %v1847, %v1860
      %v1862 = vcombine.low %v1806, %v1822
      %v1863 = vcombine.high %v1806, %v1822
      %v1865 = vunpack.c.l.s4 1934713408
      %v1866 = vunpack.c.0.s8 %v1865
      %v1867 = vlaneseq
      %v1868 = vshrl.u32 %v1867, 7
      %v1869 = vsub.s32 %v1866, %v1868
      %v1870 = vrot.slane %v1862, %v1869
      %v1872 = vunpack.c.l.s4 1934713408
      %v1873 = vunpack.c.0.s8 %v1872
      %v1874 = vlaneseq
      %v1875 = vshrl.u32 %v1874, 7
      %v1876 = vsub.s32 %v1873, %v1875
      %v1877 = vrot.slane %v1863, %v1876
      %v1878 = vcombine.low %v1813, %v1829
      %v1879 = vcombine.high %v1813, %v1829
      %v1881 = vunpack.c.l.s4 1934713408
      %v1882 = vunpack.c.0.s8 %v1881
      %v1883 = vlaneseq
      %v1884 = vshrl.u32 %v1883, 7
      %v1885 = vsub.s32 %v1882, %v1884
      %v1886 = vrot.slane %v1878, %v1885
      %v1888 = vunpack.c.l.s4 1934713408
      %v1889 = vunpack.c.0.s8 %v1888
      %v1890 = vlaneseq
      %v1891 = vshrl.u32 %v1890, 7
      %v1892 = vsub.s32 %v1889, %v1891
      %v1893 = vrot.slane %v1879, %v1892
      %v1894 = vcombine.low %v1838, %v1870
      %v1895 = vcombine.high %v1838, %v1870
      %v1896 = vcombine.low %v1845, %v1877
      %v1897 = vcombine.high %v1845, %v1877
      %v1898 = vcombine.low %v1854, %v1886
      %v1899 = vcombine.high %v1854, %v1886
      %v1900 = vcombine.low %v1861, %v1893
      %v1901 = vcombine.high %v1861, %v1893
      %v1902 = vcombine.low %v1254, %v1318
      %v1903 = vcombine.high %v1254, %v1318
      %v1905 = vunpack.c.l.s4 1983009808
      %v1906 = vunpack.c.0.s8 %v1905
      %v1907 = vlaneseq
      %v1908 = vshrl.u32 %v1907, 7
      %v1909 = vsub.s32 %v1906, %v1908
      %v1910 = vrot.slane %v1902, %v1909
      %v1912 = vunpack.c.l.s4 1983009808
      %v1913 = vunpack.c.0.s8 %v1912
      %v1914 = vlaneseq
      %v1915 = vshrl.u32 %v1914, 7
      %v1916 = vsub.s32 %v1913, %v1915
      %v1917 = vrot.slane %v1903, %v1916
      %v1918 = vcombine.low %v1286, %v1350
      %v1919 = vcombine.high %v1286, %v1350
      %v1921 = vunpack.c.l.s4 1983009808
      %v1922 = vunpack.c.0.s8 %v1921
      %v1923 = vlaneseq
      %v1924 = vshrl.u32 %v1923, 7
      %v1925 = vsub.s32 %v1922, %v1924
      %v1926 = vrot.slane %v1918, %v1925
      %v1928 = vunpack.c.l.s4 1983009808
      %v1929 = vunpack.c.0.s8 %v1928
      %v1930 = vlaneseq
      %v1931 = vshrl.u32 %v1930, 7
      %v1932 = vsub.s32 %v1929, %v1931
      %v1933 = vrot.slane %v1919, %v1932
      %v1934 = vcombine.low %v1382, %v1446
      %v1935 = vcombine.high %v1382, %v1446
      %v1937 = vunpack.c.l.s4 1983009808
      %v1938 = vunpack.c.0.s8 %v1937
      %v1939 = vlaneseq
      %v1940 = vshrl.u32 %v1939, 7
      %v1941 = vsub.s32 %v1938, %v1940
      %v1942 = vrot.slane %v1934, %v1941
      %v1944 = vunpack.c.l.s4 1983009808
      %v1945 = vunpack.c.0.s8 %v1944
      %v1946 = vlaneseq
      %v1947 = vshrl.u32 %v1946, 7
      %v1948 = vsub.s32 %v1945, %v1947
      %v1949 = vrot.slane %v1935, %v1948
      %v1950 = vcombine.low %v1414, %v1478
      %v1951 = vcombine.high %v1414, %v1478
      %v1953 = vunpack.c.l.s4 1983009808
      %v1954 = vunpack.c.0.s8 %v1953
      %v1955 = vlaneseq
      %v1956 = vshrl.u32 %v1955, 7
      %v1957 = vsub.s32 %v1954, %v1956
      %v1958 = vrot.slane %v1950, %v1957
      %v1960 = vunpack.c.l.s4 1983009808
      %v1961 = vunpack.c.0.s8 %v1960
      %v1962 = vlaneseq
      %v1963 = vshrl.u32 %v1962, 7
      %v1964 = vsub.s32 %v1961, %v1963
      %v1965 = vrot.slane %v1951, %v1964
      %v1966 = vcombine.low %v1910, %v1926
      %v1967 = vcombine.high %v1910, %v1926
      %v1969 = vunpack.c.l.s4 1934713408
      %v1970 = vunpack.c.0.s8 %v1969
      %v1971 = vlaneseq
      %v1972 = vshrl.u32 %v1971, 7
      %v1973 = vsub.s32 %v1970, %v1972
      %v1974 = vrot.slane %v1966, %v1973
      %v1976 = vunpack.c.l.s4 1934713408
      %v1977 = vunpack.c.0.s8 %v1976
      %v1978 = vlaneseq
      %v1979 = vshrl.u32 %v1978, 7
      %v1980 = vsub.s32 %v1977, %v1979
      %v1981 = vrot.slane %v1967, %v1980
      %v1982 = vcombine.low %v1917, %v1933
      %v1983 = vcombine.high %v1917, %v1933
      %v1985 = vunpack.c.l.s4 1934713408
      %v1986 = vunpack.c.0.s8 %v1985
      %v1987 = vlaneseq
      %v1988 = vshrl.u32 %v1987, 7
      %v1989 = vsub.s32 %v1986, %v1988
      %v1990 = vrot.slane %v1982, %v1989
      %v1992 = vunpack.c.l.s4 1934713408
      %v1993 = vunpack.c.0.s8 %v1992
      %v1994 = vlaneseq
      %v1995 = vshrl.u32 %v1994, 7
      %v1996 = vsub.s32 %v1993, %v1995
      %v1997 = vrot.slane %v1983, %v1996
      %v1998 = vcombine.low %v1942, %v1958
      %v1999 = vcombine.high %v1942, %v1958
      %v2001 = vunpack.c.l.s4 1934713408
      %v2002 = vunpack.c.0.s8 %v2001
      %v2003 = vlaneseq
      %v2004 = vshrl.u32 %v2003, 7
      %v2005 = vsub.s32 %v2002, %v2004
      %v2006 = vrot.slane %v1998, %v2005
      %v2008 = vunpack.c.l.s4 1934713408
      %v2009 = vunpack.c.0.s8 %v2008
      %v2010 = vlaneseq
      %v2011 = vshrl.u32 %v2010, 7
      %v2012 = vsub.s32 %v2009, %v2011
      %v2013 = vrot.slane %v1999, %v2012
      %v2014 = vcombine.low %v1949, %v1965
      %v2015 = vcombine.high %v1949, %v1965
      %v2017 = vunpack.c.l.s4 1934713408
      %v2018 = vunpack.c.0.s8 %v2017
      %v2019 = vlaneseq
      %v2020 = vshrl.u32 %v2019, 7
      %v2021 = vsub.s32 %v2018, %v2020
      %v2022 = vrot.slane %v2014, %v2021
      %v2024 = vunpack.c.l.s4 1934713408
      %v2025 = vunpack.c.0.s8 %v2024
      %v2026 = vlaneseq
      %v2027 = vshrl.u32 %v2026, 7
      %v2028 = vsub.s32 %v2025, %v2027
      %v2029 = vrot.slane %v2015, %v2028
      %v2030 = vcombine.low %v1974, %v2006
      %v2031 = vcombine.high %v1974, %v2006
      %v2032 = vcombine.low %v1981, %v2013
      %v2033 = vcombine.high %v1981, %v2013
      %v2034 = vcombine.low %v1990, %v2022
      %v2035 = vcombine.high %v1990, %v2022
      %v2036 = vcombine.low %v1997, %v2029
      %v2037 = vcombine.high %v1997, %v2029
      %v2038 = vcombine.low %v487, %v551
      %v2039 = vcombine.high %v487, %v551
      %v2041 = vunpack.c.l.s4 1983009808
      %v2042 = vunpack.c.0.s8 %v2041
      %v2043 = vlaneseq
      %v2044 = vshrl.u32 %v2043, 7
      %v2045 = vsub.s32 %v2042, %v2044
      %v2046 = vrot.slane %v2038, %v2045
      %v2048 = vunpack.c.l.s4 1983009808
      %v2049 = vunpack.c.0.s8 %v2048
      %v2050 = vlaneseq
      %v2051 = vshrl.u32 %v2050, 7
      %v2052 = vsub.s32 %v2049, %v2051
      %v2053 = vrot.slane %v2039, %v2052
      %v2054 = vcombine.low %v519, %v583
      %v2055 = vcombine.high %v519, %v583
      %v2057 = vunpack.c.l.s4 1983009808
      %v2058 = vunpack.c.0.s8 %v2057
      %v2059 = vlaneseq
      %v2060 = vshrl.u32 %v2059, 7
      %v2061 = vsub.s32 %v2058, %v2060
      %v2062 = vrot.slane %v2054, %v2061
      %v2064 = vunpack.c.l.s4 1983009808
      %v2065 = vunpack.c.0.s8 %v2064
      %v2066 = vlaneseq
      %v2067 = vshrl.u32 %v2066, 7
      %v2068 = vsub.s32 %v2065, %v2067
      %v2069 = vrot.slane %v2055, %v2068
      %v2070 = vcombine.low %v615, %v679
      %v2071 = vcombine.high %v615, %v679
      %v2073 = vunpack.c.l.s4 1983009808
      %v2074 = vunpack.c.0.s8 %v2073
      %v2075 = vlaneseq
      %v2076 = vshrl.u32 %v2075, 7
      %v2077 = vsub.s32 %v2074, %v2076
      %v2078 = vrot.slane %v2070, %v2077
      %v2080 = vunpack.c.l.s4 1983009808
      %v2081 = vunpack.c.0.s8 %v2080
      %v2082 = vlaneseq
      %v2083 = vshrl.u32 %v2082, 7
      %v2084 = vsub.s32 %v2081, %v2083
      %v2085 = vrot.slane %v2071, %v2084
      %v2086 = vcombine.low %v647, %v711
      %v2087 = vcombine.high %v647, %v711
      %v2089 = vunpack.c.l.s4 1983009808
      %v2090 = vunpack.c.0.s8 %v2089
      %v2091 = vlaneseq
      %v2092 = vshrl.u32 %v2091, 7
      %v2093 = vsub.s32 %v2090, %v2092
      %v2094 = vrot.slane %v2086, %v2093
      %v2096 = vunpack.c.l.s4 1983009808
      %v2097 = vunpack.c.0.s8 %v2096
      %v2098 = vlaneseq
      %v2099 = vshrl.u32 %v2098, 7
      %v2100 = vsub.s32 %v2097, %v2099
      %v2101 = vrot.slane %v2087, %v2100
      %v2102 = vcombine.low %v2046, %v2062
      %v2103 = vcombine.high %v2046, %v2062
      %v2105 = vunpack.c.l.s4 1934713408
      %v2106 = vunpack.c.0.s8 %v2105
      %v2107 = vlaneseq
      %v2108 = vshrl.u32 %v2107, 7
      %v2109 = vsub.s32 %v2106, %v2108
      %v2110 = vrot.slane %v2102, %v2109
      %v2112 = vunpack.c.l.s4 1934713408
      %v2113 = vunpack.c.0.s8 %v2112
      %v2114 = vlaneseq
      %v2115 = vshrl.u32 %v2114, 7
      %v2116 = vsub.s32 %v2113, %v2115
      %v2117 = vrot.slane %v2103, %v2116
      %v2118 = vcombine.low %v2053, %v2069
      %v2119 = vcombine.high %v2053, %v2069
      %v2121 = vunpack.c.l.s4 1934713408
      %v2122 = vunpack.c.0.s8 %v2121
      %v2123 = vlaneseq
      %v2124 = vshrl.u32 %v2123, 7
      %v2125 = vsub.s32 %v2122, %v2124
      %v2126 = vrot.slane %v2118, %v2125
      %v2128 = vunpack.c.l.s4 1934713408
      %v2129 = vunpack.c.0.s8 %v2128
      %v2130 = vlaneseq
      %v2131 = vshrl.u32 %v2130, 7
      %v2132 = vsub.s32 %v2129, %v2131
      %v2133 = vrot.slane %v2119, %v2132
      %v2134 = vcombine.low %v2078, %v2094
      %v2135 = vcombine.high %v2078, %v2094
      %v2137 = vunpack.c.l.s4 1934713408
      %v2138 = vunpack.c.0.s8 %v2137
      %v2139 = vlaneseq
      %v2140 = vshrl.u32 %v2139, 7
      %v2141 = vsub.s32 %v2138, %v2140
      %v2142 = vrot.slane %v2134, %v2141
      %v2144 = vunpack.c.l.s4 1934713408
      %v2145 = vunpack.c.0.s8 %v2144
      %v2146 = vlaneseq
      %v2147 = vshrl.u32 %v2146, 7
      %v2148 = vsub.s32 %v2145, %v2147
      %v2149 = vrot.slane %v2135, %v2148
      %v2150 = vcombine.low %v2085, %v2101
      %v2151 = vcombine.high %v2085, %v2101
      %v2153 = vunpack.c.l.s4 1934713408
      %v2154 = vunpack.c.0.s8 %v2153
      %v2155 = vlaneseq
      %v2156 = vshrl.u32 %v2155, 7
      %v2157 = vsub.s32 %v2154, %v2156
      %v2158 = vrot.slane %v2150, %v2157
      %v2160 = vunpack.c.l.s4 1934713408
      %v2161 = vunpack.c.0.s8 %v2160
      %v2162 = vlaneseq
      %v2163 = vshrl.u32 %v2162, 7
      %v2164 = vsub.s32 %v2161, %v2163
      %v2165 = vrot.slane %v2151, %v2164
      %v2166 = vcombine.low %v2110, %v2142
      %v2167 = vcombine.high %v2110, %v2142
      %v2168 = vcombine.low %v2117, %v2149
      %v2169 = vcombine.high %v2117, %v2149
      %v2170 = vcombine.low %v2126, %v2158
      %v2171 = vcombine.high %v2126, %v2158
      %v2172 = vcombine.low %v2133, %v2165
      %v2173 = vcombine.high %v2133, %v2165
      %v2174 = vcombine.low %v743, %v807
      %v2175 = vcombine.high %v743, %v807
      %v2177 = vunpack.c.l.s4 1983009808
      %v2178 = vunpack.c.0.s8 %v2177
      %v2179 = vlaneseq
      %v2180 = vshrl.u32 %v2179, 7
      %v2181 = vsub.s32 %v2178, %v2180
      %v2182 = vrot.slane %v2174, %v2181
      %v2184 = vunpack.c.l.s4 1983009808
      %v2185 = vunpack.c.0.s8 %v2184
      %v2186 = vlaneseq
      %v2187 = vshrl.u32 %v2186, 7
      %v2188 = vsub.s32 %v2185, %v2187
      %v2189 = vrot.slane %v2175, %v2188
      %v2190 = vcombine.low %v775, %v839
      %v2191 = vcombine.high %v775, %v839
      %v2193 = vunpack.c.l.s4 1983009808
      %v2194 = vunpack.c.0.s8 %v2193
      %v2195 = vlaneseq
      %v2196 = vshrl.u32 %v2195, 7
      %v2197 = vsub.s32 %v2194, %v2196
      %v2198 = vrot.slane %v2190, %v2197
      %v2200 = vunpack.c.l.s4 1983009808
      %v2201 = vunpack.c.0.s8 %v2200
      %v2202 = vlaneseq
      %v2203 = vshrl.u32 %v2202, 7
      %v2204 = vsub.s32 %v2201, %v2203
      %v2205 = vrot.slane %v2191, %v2204
      %v2206 = vcombine.low %v871, %v935
      %v2207 = vcombine.high %v871, %v935
      %v2209 = vunpack.c.l.s4 1983009808
      %v2210 = vunpack.c.0.s8 %v2209
      %v2211 = vlaneseq
      %v2212 = vshrl.u32 %v2211, 7
      %v2213 = vsub.s32 %v2210, %v2212
      %v2214 = vrot.slane %v2206, %v2213
      %v2216 = vunpack.c.l.s4 1983009808
      %v2217 = vunpack.c.0.s8 %v2216
      %v2218 = vlaneseq
      %v2219 = vshrl.u32 %v2218, 7
      %v2220 = vsub.s32 %v2217, %v2219
      %v2221 = vrot.slane %v2207, %v2220
      %v2222 = vcombine.low %v903, %v967
      %v2223 = vcombine.high %v903, %v967
      %v2225 = vunpack.c.l.s4 1983009808
      %v2226 = vunpack.c.0.s8 %v2225
      %v2227 = vlaneseq
      %v2228 = vshrl.u32 %v2227, 7
      %v2229 = vsub.s32 %v2226, %v2228
      %v2230 = vrot.slane %v2222, %v2229
      %v2232 = vunpack.c.l.s4 1983009808
      %v2233 = vunpack.c.0.s8 %v2232
      %v2234 = vlaneseq
      %v2235 = vshrl.u32 %v2234, 7
      %v2236 = vsub.s32 %v2233, %v2235
      %v2237 = vrot.slane %v2223, %v2236
      %v2238 = vcombine.low %v2182, %v2198
      %v2239 = vcombine.high %v2182, %v2198
      %v2241 = vunpack.c.l.s4 1934713408
      %v2242 = vunpack.c.0.s8 %v2241
      %v2243 = vlaneseq
      %v2244 = vshrl.u32 %v2243, 7
      %v2245 = vsub.s32 %v2242, %v2244
      %v2246 = vrot.slane %v2238, %v2245
      %v2248 = vunpack.c.l.s4 1934713408
      %v2249 = vunpack.c.0.s8 %v2248
      %v2250 = vlaneseq
      %v2251 = vshrl.u32 %v2250, 7
      %v2252 = vsub.s32 %v2249, %v2251
      %v2253 = vrot.slane %v2239, %v2252
      %v2254 = vcombine.low %v2189, %v2205
      %v2255 = vcombine.high %v2189, %v2205
      %v2257 = vunpack.c.l.s4 1934713408
      %v2258 = vunpack.c.0.s8 %v2257
      %v2259 = vlaneseq
      %v2260 = vshrl.u32 %v2259, 7
      %v2261 = vsub.s32 %v2258, %v2260
      %v2262 = vrot.slane %v2254, %v2261
      %v2264 = vunpack.c.l.s4 1934713408
      %v2265 = vunpack.c.0.s8 %v2264
      %v2266 = vlaneseq
      %v2267 = vshrl.u32 %v2266, 7
      %v2268 = vsub.s32 %v2265, %v2267
      %v2269 = vrot.slane %v2255, %v2268
      %v2270 = vcombine.low %v2214, %v2230
      %v2271 = vcombine.high %v2214, %v2230
      %v2273 = vunpack.c.l.s4 1934713408
      %v2274 = vunpack.c.0.s8 %v2273
      %v2275 = vlaneseq
      %v2276 = vshrl.u32 %v2275, 7
      %v2277 = vsub.s32 %v2274, %v2276
      %v2278 = vrot.slane %v2270, %v2277
      %v2280 = vunpack.c.l.s4 1934713408
      %v2281 = vunpack.c.0.s8 %v2280
      %v2282 = vlaneseq
      %v2283 = vshrl.u32 %v2282, 7
      %v2284 = vsub.s32 %v2281, %v2283
      %v2285 = vrot.slane %v2271, %v2284
      %v2286 = vcombine.low %v2221, %v2237
      %v2287 = vcombine.high %v2221, %v2237
      %v2289 = vunpack.c.l.s4 1934713408
      %v2290 = vunpack.c.0.s8 %v2289
      %v2291 = vlaneseq
      %v2292 = vshrl.u32 %v2291, 7
      %v2293 = vsub.s32 %v2290, %v2292
      %v2294 = vrot.slane %v2286, %v2293
      %v2296 = vunpack.c.l.s4 1934713408
      %v2297 = vunpack.c.0.s8 %v2296
      %v2298 = vlaneseq
      %v2299 = vshrl.u32 %v2298, 7
      %v2300 = vsub.s32 %v2297, %v2299
      %v2301 = vrot.slane %v2287, %v2300
      %v2302 = vcombine.low %v2246, %v2278
      %v2303 = vcombine.high %v2246, %v2278
      %v2304 = vcombine.low %v2253, %v2285
      %v2305 = vcombine.high %v2253, %v2285
      %v2306 = vcombine.low %v2262, %v2294
      %v2307 = vcombine.high %v2262, %v2294
      %v2308 = vcombine.low %v2269, %v2301
      %v2309 = vcombine.high %v2269, %v2301
      %v2310 = vcombine.low %v999, %v1063
      %v2311 = vcombine.high %v999, %v1063
      %v2313 = vunpack.c.l.s4 1983009808
      %v2314 = vunpack.c.0.s8 %v2313
      %v2315 = vlaneseq
      %v2316 = vshrl.u32 %v2315, 7
      %v2317 = vsub.s32 %v2314, %v2316
      %v2318 = vrot.slane %v2310, %v2317
      %v2320 = vunpack.c.l.s4 1983009808
      %v2321 = vunpack.c.0.s8 %v2320
      %v2322 = vlaneseq
      %v2323 = vshrl.u32 %v2322, 7
      %v2324 = vsub.s32 %v2321, %v2323
      %v2325 = vrot.slane %v2311, %v2324
      %v2326 = vcombine.low %v1031, %v1095
      %v2327 = vcombine.high %v1031, %v1095
      %v2329 = vunpack.c.l.s4 1983009808
      %v2330 = vunpack.c.0.s8 %v2329
      %v2331 = vlaneseq
      %v2332 = vshrl.u32 %v2331, 7
      %v2333 = vsub.s32 %v2330, %v2332
      %v2334 = vrot.slane %v2326, %v2333
      %v2336 = vunpack.c.l.s4 1983009808
      %v2337 = vunpack.c.0.s8 %v2336
      %v2338 = vlaneseq
      %v2339 = vshrl.u32 %v2338, 7
      %v2340 = vsub.s32 %v2337, %v2339
      %v2341 = vrot.slane %v2327, %v2340
      %v2342 = vcombine.low %v1127, %v1191
      %v2343 = vcombine.high %v1127, %v1191
      %v2345 = vunpack.c.l.s4 1983009808
      %v2346 = vunpack.c.0.s8 %v2345
      %v2347 = vlaneseq
      %v2348 = vshrl.u32 %v2347, 7
      %v2349 = vsub.s32 %v2346, %v2348
      %v2350 = vrot.slane %v2342, %v2349
      %v2352 = vunpack.c.l.s4 1983009808
      %v2353 = vunpack.c.0.s8 %v2352
      %v2354 = vlaneseq
      %v2355 = vshrl.u32 %v2354, 7
      %v2356 = vsub.s32 %v2353, %v2355
      %v2357 = vrot.slane %v2343, %v2356
      %v2358 = vcombine.low %v1159, %v1223
      %v2359 = vcombine.high %v1159, %v1223
      %v2361 = vunpack.c.l.s4 1983009808
      %v2362 = vunpack.c.0.s8 %v2361
      %v2363 = vlaneseq
      %v2364 = vshrl.u32 %v2363, 7
      %v2365 = vsub.s32 %v2362, %v2364
      %v2366 = vrot.slane %v2358, %v2365
      %v2368 = vunpack.c.l.s4 1983009808
      %v2369 = vunpack.c.0.s8 %v2368
      %v2370 = vlaneseq
      %v2371 = vshrl.u32 %v2370, 7
      %v2372 = vsub.s32 %v2369, %v2371
      %v2373 = vrot.slane %v2359, %v2372
      %v2374 = vcombine.low %v2318, %v2334
      %v2375 = vcombine.high %v2318, %v2334
      %v2377 = vunpack.c.l.s4 1934713408
      %v2378 = vunpack.c.0.s8 %v2377
      %v2379 = vlaneseq
      %v2380 = vshrl.u32 %v2379, 7
      %v2381 = vsub.s32 %v2378, %v2380
      %v2382 = vrot.slane %v2374, %v2381
      %v2384 = vunpack.c.l.s4 1934713408
      %v2385 = vunpack.c.0.s8 %v2384
      %v2386 = vlaneseq
      %v2387 = vshrl.u32 %v2386, 7
      %v2388 = vsub.s32 %v2385, %v2387
      %v2389 = vrot.slane %v2375, %v2388
      %v2390 = vcombine.low %v2325, %v2341
      %v2391 = vcombine.high %v2325, %v2341
      %v2393 = vunpack.c.l.s4 1934713408
      %v2394 = vunpack.c.0.s8 %v2393
      %v2395 = vlaneseq
      %v2396 = vshrl.u32 %v2395, 7
      %v2397 = vsub.s32 %v2394, %v2396
      %v2398 = vrot.slane %v2390, %v2397
      %v2400 = vunpack.c.l.s4 1934713408
      %v2401 = vunpack.c.0.s8 %v2400
      %v2402 = vlaneseq
      %v2403 = vshrl.u32 %v2402, 7
      %v2404 = vsub.s32 %v2401, %v2403
      %v2405 = vrot.slane %v2391, %v2404
      %v2406 = vcombine.low %v2350, %v2366
      %v2407 = vcombine.high %v2350, %v2366
      %v2409 = vunpack.c.l.s4 1934713408
      %v2410 = vunpack.c.0.s8 %v2409
      %v2411 = vlaneseq
      %v2412 = vshrl.u32 %v2411, 7
      %v2413 = vsub.s32 %v2410, %v2412
      %v2414 = vrot.slane %v2406, %v2413
      %v2416 = vunpack.c.l.s4 1934713408
      %v2417 = vunpack.c.0.s8 %v2416
      %v2418 = vlaneseq
      %v2419 = vshrl.u32 %v2418, 7
      %v2420 = vsub.s32 %v2417, %v2419
      %v2421 = vrot.slane %v2407, %v2420
      %v2422 = vcombine.low %v2357, %v2373
      %v2423 = vcombine.high %v2357, %v2373
      %v2425 = vunpack.c.l.s4 1934713408
      %v2426 = vunpack.c.0.s8 %v2425
      %v2427 = vlaneseq
      %v2428 = vshrl.u32 %v2427, 7
      %v2429 = vsub.s32 %v2426, %v2428
      %v2430 = vrot.slane %v2422, %v2429
      %v2432 = vunpack.c.l.s4 1934713408
      %v2433 = vunpack.c.0.s8 %v2432
      %v2434 = vlaneseq
      %v2435 = vshrl.u32 %v2434, 7
      %v2436 = vsub.s32 %v2433, %v2435
      %v2437 = vrot.slane %v2423, %v2436
      %v2438 = vcombine.low %v2382, %v2414
      %v2439 = vcombine.high %v2382, %v2414
      %v2440 = vcombine.low %v2389, %v2421
      %v2441 = vcombine.high %v2389, %v2421
      %v2442 = vcombine.low %v2398, %v2430
      %v2443 = vcombine.high %v2398, %v2430
      %v2444 = vcombine.low %v2405, %v2437
      %v2445 = vcombine.high %v2405, %v2437
      %v2446 = vcombine.low %v1255, %v1319
      %v2447 = vcombine.high %v1255, %v1319
      %v2449 = vunpack.c.l.s4 1983009808
      %v2450 = vunpack.c.0.s8 %v2449
      %v2451 = vlaneseq
      %v2452 = vshrl.u32 %v2451, 7
      %v2453 = vsub.s32 %v2450, %v2452
      %v2454 = vrot.slane %v2446, %v2453
      %v2456 = vunpack.c.l.s4 1983009808
      %v2457 = vunpack.c.0.s8 %v2456
      %v2458 = vlaneseq
      %v2459 = vshrl.u32 %v2458, 7
      %v2460 = vsub.s32 %v2457, %v2459
      %v2461 = vrot.slane %v2447, %v2460
      %v2462 = vcombine.low %v1287, %v1351
      %v2463 = vcombine.high %v1287, %v1351
      %v2465 = vunpack.c.l.s4 1983009808
      %v2466 = vunpack.c.0.s8 %v2465
      %v2467 = vlaneseq
      %v2468 = vshrl.u32 %v2467, 7
      %v2469 = vsub.s32 %v2466, %v2468
      %v2470 = vrot.slane %v2462, %v2469
      %v2472 = vunpack.c.l.s4 1983009808
      %v2473 = vunpack.c.0.s8 %v2472
      %v2474 = vlaneseq
      %v2475 = vshrl.u32 %v2474, 7
      %v2476 = vsub.s32 %v2473, %v2475
      %v2477 = vrot.slane %v2463, %v2476
      %v2478 = vcombine.low %v1383, %v1447
      %v2479 = vcombine.high %v1383, %v1447
      %v2481 = vunpack.c.l.s4 1983009808
      %v2482 = vunpack.c.0.s8 %v2481
      %v2483 = vlaneseq
      %v2484 = vshrl.u32 %v2483, 7
      %v2485 = vsub.s32 %v2482, %v2484
      %v2486 = vrot.slane %v2478, %v2485
      %v2488 = vunpack.c.l.s4 1983009808
      %v2489 = vunpack.c.0.s8 %v2488
      %v2490 = vlaneseq
      %v2491 = vshrl.u32 %v2490, 7
      %v2492 = vsub.s32 %v2489, %v2491
      %v2493 = vrot.slane %v2479, %v2492
      %v2494 = vcombine.low %v1415, %v1479
      %v2495 = vcombine.high %v1415, %v1479
      %v2497 = vunpack.c.l.s4 1983009808
      %v2498 = vunpack.c.0.s8 %v2497
      %v2499 = vlaneseq
      %v2500 = vshrl.u32 %v2499, 7
      %v2501 = vsub.s32 %v2498, %v2500
      %v2502 = vrot.slane %v2494, %v2501
      %v2504 = vunpack.c.l.s4 1983009808
      %v2505 = vunpack.c.0.s8 %v2504
      %v2506 = vlaneseq
      %v2507 = vshrl.u32 %v2506, 7
      %v2508 = vsub.s32 %v2505, %v2507
      %v2509 = vrot.slane %v2495, %v2508
      %v2510 = vcombine.low %v2454, %v2470
      %v2511 = vcombine.high %v2454, %v2470
      %v2513 = vunpack.c.l.s4 1934713408
      %v2514 = vunpack.c.0.s8 %v2513
      %v2515 = vlaneseq
      %v2516 = vshrl.u32 %v2515, 7
      %v2517 = vsub.s32 %v2514, %v2516
      %v2518 = vrot.slane %v2510, %v2517
      %v2520 = vunpack.c.l.s4 1934713408
      %v2521 = vunpack.c.0.s8 %v2520
      %v2522 = vlaneseq
      %v2523 = vshrl.u32 %v2522, 7
      %v2524 = vsub.s32 %v2521, %v2523
      %v2525 = vrot.slane %v2511, %v2524
      %v2526 = vcombine.low %v2461, %v2477
      %v2527 = vcombine.high %v2461, %v2477
      %v2529 = vunpack.c.l.s4 1934713408
      %v2530 = vunpack.c.0.s8 %v2529
      %v2531 = vlaneseq
      %v2532 = vshrl.u32 %v2531, 7
      %v2533 = vsub.s32 %v2530, %v2532
      %v2534 = vrot.slane %v2526, %v2533
      %v2536 = vunpack.c.l.s4 1934713408
      %v2537 = vunpack.c.0.s8 %v2536
      %v2538 = vlaneseq
      %v2539 = vshrl.u32 %v2538, 7
      %v2540 = vsub.s32 %v2537, %v2539
      %v2541 = vrot.slane %v2527, %v2540
      %v2542 = vcombine.low %v2486, %v2502
      %v2543 = vcombine.high %v2486, %v2502
      %v2545 = vunpack.c.l.s4 1934713408
      %v2546 = vunpack.c.0.s8 %v2545
      %v2547 = vlaneseq
      %v2548 = vshrl.u32 %v2547, 7
      %v2549 = vsub.s32 %v2546, %v2548
      %v2550 = vrot.slane %v2542, %v2549
      %v2552 = vunpack.c.l.s4 1934713408
      %v2553 = vunpack.c.0.s8 %v2552
      %v2554 = vlaneseq
      %v2555 = vshrl.u32 %v2554, 7
      %v2556 = vsub.s32 %v2553, %v2555
      %v2557 = vrot.slane %v2543, %v2556
      %v2558 = vcombine.low %v2493, %v2509
      %v2559 = vcombine.high %v2493, %v2509
      %v2561 = vunpack.c.l.s4 1934713408
      %v2562 = vunpack.c.0.s8 %v2561
      %v2563 = vlaneseq
      %v2564 = vshrl.u32 %v2563, 7
      %v2565 = vsub.s32 %v2562, %v2564
      %v2566 = vrot.slane %v2558, %v2565
      %v2568 = vunpack.c.l.s4 1934713408
      %v2569 = vunpack.c.0.s8 %v2568
      %v2570 = vlaneseq
      %v2571 = vshrl.u32 %v2570, 7
      %v2572 = vsub.s32 %v2569, %v2571
      %v2573 = vrot.slane %v2559, %v2572
      %v2574 = vcombine.low %v2518, %v2550
      %v2575 = vcombine.high %v2518, %v2550
      %v2576 = vcombine.low %v2525, %v2557
      %v2577 = vcombine.high %v2525, %v2557
      %v2578 = vcombine.low %v2534, %v2566
      %v2579 = vcombine.high %v2534, %v2566
      %v2580 = vcombine.low %v2541, %v2573
      %v2581 = vcombine.high %v2541, %v2573
      %2582 = vxpose.xlu0.b32.start [1/16] %v1622, 128
      %2583 = vxpose.xlu0.b32.cont [2/16] %v1758, 128
      %2584 = vxpose.xlu0.b32.cont [3/16] %v1894, 128
      %2585 = vxpose.xlu0.b32.cont [4/16] %v2030, 128
      %2586 = vxpose.xlu0.b32.cont [5/16] 0.0, 128
      %2587 = vxpose.xlu0.b32.cont [6/16] 0.0, 128
      %2588 = vxpose.xlu0.b32.cont [7/16] 0.0, 128
      %2589 = vxpose.xlu0.b32.cont [8/16] 0.0, 128
      %2590 = vxpose.xlu0.b32.cont [9/16] 0.0, 128
      %2591 = vxpose.xlu0.b32.cont [10/16] 0.0, 128
      %2592 = vxpose.xlu0.b32.cont [11/16] 0.0, 128
      %2593 = vxpose.xlu0.b32.cont [12/16] 0.0, 128
      %2594 = vxpose.xlu0.b32.cont [13/16] 0.0, 128
      %2595 = vxpose.xlu0.b32.cont [14/16] 0.0, 128
      %2596 = vxpose.xlu0.b32.cont [15/16] 0.0, 128
      %2597 = vxpose.xlu0.b32.end [16/16] 0.0, 128
      %v2598 = vpop.trf.xlu0
      %v2599 = vpop.trf.xlu0
      %v2600 = vpop.trf.xlu0
      %v2601 = vpop.trf.xlu0
      %v2602 = vpop.trf.xlu0
      %v2603 = vpop.trf.xlu0
      %v2604 = vpop.trf.xlu0
      %v2605 = vpop.trf.xlu0
      %v2606 = vpop.trf.xlu0
      %v2607 = vpop.trf.xlu0
      %v2608 = vpop.trf.xlu0
      %v2609 = vpop.trf.xlu0
      %v2610 = vpop.trf.xlu0
      %v2611 = vpop.trf.xlu0
      %v2612 = vpop.trf.xlu0
      %v2613 = vpop.trf.xlu0
      %2614 = vxpose.xlu0.b32.start [1/16] %v1623, 128
      %2615 = vxpose.xlu0.b32.cont [2/16] %v1759, 128
      %2616 = vxpose.xlu0.b32.cont [3/16] %v1895, 128
      %2617 = vxpose.xlu0.b32.cont [4/16] %v2031, 128
      %2618 = vxpose.xlu0.b32.cont [5/16] 0.0, 128
      %2619 = vxpose.xlu0.b32.cont [6/16] 0.0, 128
      %2620 = vxpose.xlu0.b32.cont [7/16] 0.0, 128
      %2621 = vxpose.xlu0.b32.cont [8/16] 0.0, 128
      %2622 = vxpose.xlu0.b32.cont [9/16] 0.0, 128
      %2623 = vxpose.xlu0.b32.cont [10/16] 0.0, 128
      %2624 = vxpose.xlu0.b32.cont [11/16] 0.0, 128
      %2625 = vxpose.xlu0.b32.cont [12/16] 0.0, 128
      %2626 = vxpose.xlu0.b32.cont [13/16] 0.0, 128
      %2627 = vxpose.xlu0.b32.cont [14/16] 0.0, 128
      %2628 = vxpose.xlu0.b32.cont [15/16] 0.0, 128
      %2629 = vxpose.xlu0.b32.end [16/16] 0.0, 128
      %v2630 = vpop.trf.xlu0
      %v2631 = vpop.trf.xlu0
      %v2632 = vpop.trf.xlu0
      %v2633 = vpop.trf.xlu0
      %v2634 = vpop.trf.xlu0
      %v2635 = vpop.trf.xlu0
      %v2636 = vpop.trf.xlu0
      %v2637 = vpop.trf.xlu0
      %v2638 = vpop.trf.xlu0
      %v2639 = vpop.trf.xlu0
      %v2640 = vpop.trf.xlu0
      %v2641 = vpop.trf.xlu0
      %v2642 = vpop.trf.xlu0
      %v2643 = vpop.trf.xlu0
      %v2644 = vpop.trf.xlu0
      %v2645 = vpop.trf.xlu0
      %2646 = vxpose.xlu0.b32.start [1/16] %v1624, 128
      %2647 = vxpose.xlu0.b32.cont [2/16] %v1760, 128
      %2648 = vxpose.xlu0.b32.cont [3/16] %v1896, 128
      %2649 = vxpose.xlu0.b32.cont [4/16] %v2032, 128
      %2650 = vxpose.xlu0.b32.cont [5/16] 0.0, 128
      %2651 = vxpose.xlu0.b32.cont [6/16] 0.0, 128
      %2652 = vxpose.xlu0.b32.cont [7/16] 0.0, 128
      %2653 = vxpose.xlu0.b32.cont [8/16] 0.0, 128
      %2654 = vxpose.xlu0.b32.cont [9/16] 0.0, 128
      %2655 = vxpose.xlu0.b32.cont [10/16] 0.0, 128
      %2656 = vxpose.xlu0.b32.cont [11/16] 0.0, 128
      %2657 = vxpose.xlu0.b32.cont [12/16] 0.0, 128
      %2658 = vxpose.xlu0.b32.cont [13/16] 0.0, 128
      %2659 = vxpose.xlu0.b32.cont [14/16] 0.0, 128
      %2660 = vxpose.xlu0.b32.cont [15/16] 0.0, 128
      %2661 = vxpose.xlu0.b32.end [16/16] 0.0, 128
      %v2662 = vpop.trf.xlu0
      %v2663 = vpop.trf.xlu0
      %v2664 = vpop.trf.xlu0
      %v2665 = vpop.trf.xlu0
      %v2666 = vpop.trf.xlu0
      %v2667 = vpop.trf.xlu0
      %v2668 = vpop.trf.xlu0
      %v2669 = vpop.trf.xlu0
      %v2670 = vpop.trf.xlu0
      %v2671 = vpop.trf.xlu0
      %v2672 = vpop.trf.xlu0
      %v2673 = vpop.trf.xlu0
      %v2674 = vpop.trf.xlu0
      %v2675 = vpop.trf.xlu0
      %v2676 = vpop.trf.xlu0
      %v2677 = vpop.trf.xlu0
      %2678 = vxpose.xlu0.b32.start [1/16] %v1625, 128
      %2679 = vxpose.xlu0.b32.cont [2/16] %v1761, 128
      %2680 = vxpose.xlu0.b32.cont [3/16] %v1897, 128
      %2681 = vxpose.xlu0.b32.cont [4/16] %v2033, 128
      %2682 = vxpose.xlu0.b32.cont [5/16] 0.0, 128
      %2683 = vxpose.xlu0.b32.cont [6/16] 0.0, 128
      %2684 = vxpose.xlu0.b32.cont [7/16] 0.0, 128
      %2685 = vxpose.xlu0.b32.cont [8/16] 0.0, 128
      %2686 = vxpose.xlu0.b32.cont [9/16] 0.0, 128
      %2687 = vxpose.xlu0.b32.cont [10/16] 0.0, 128
      %2688 = vxpose.xlu0.b32.cont [11/16] 0.0, 128
      %2689 = vxpose.xlu0.b32.cont [12/16] 0.0, 128
      %2690 = vxpose.xlu0.b32.cont [13/16] 0.0, 128
      %2691 = vxpose.xlu0.b32.cont [14/16] 0.0, 128
      %2692 = vxpose.xlu0.b32.cont [15/16] 0.0, 128
      %2693 = vxpose.xlu0.b32.end [16/16] 0.0, 128
      %v2694 = vpop.trf.xlu0
      %v2695 = vpop.trf.xlu0
      %v2696 = vpop.trf.xlu0
      %v2697 = vpop.trf.xlu0
      %v2698 = vpop.trf.xlu0
      %v2699 = vpop.trf.xlu0
      %v2700 = vpop.trf.xlu0
      %v2701 = vpop.trf.xlu0
      %v2702 = vpop.trf.xlu0
      %v2703 = vpop.trf.xlu0
      %v2704 = vpop.trf.xlu0
      %v2705 = vpop.trf.xlu0
      %v2706 = vpop.trf.xlu0
      %v2707 = vpop.trf.xlu0
      %v2708 = vpop.trf.xlu0
      %v2709 = vpop.trf.xlu0
      %2710 = vxpose.xlu0.b32.start [1/16] %v1626, 128
      %2711 = vxpose.xlu0.b32.cont [2/16] %v1762, 128
      %2712 = vxpose.xlu0.b32.cont [3/16] %v1898, 128
      %2713 = vxpose.xlu0.b32.cont [4/16] %v2034, 128
      %2714 = vxpose.xlu0.b32.cont [5/16] 0.0, 128
      %2715 = vxpose.xlu0.b32.cont [6/16] 0.0, 128
      %2716 = vxpose.xlu0.b32.cont [7/16] 0.0, 128
      %2717 = vxpose.xlu0.b32.cont [8/16] 0.0, 128
      %2718 = vxpose.xlu0.b32.cont [9/16] 0.0, 128
      %2719 = vxpose.xlu0.b32.cont [10/16] 0.0, 128
      %2720 = vxpose.xlu0.b32.cont [11/16] 0.0, 128
      %2721 = vxpose.xlu0.b32.cont [12/16] 0.0, 128
      %2722 = vxpose.xlu0.b32.cont [13/16] 0.0, 128
      %2723 = vxpose.xlu0.b32.cont [14/16] 0.0, 128
      %2724 = vxpose.xlu0.b32.cont [15/16] 0.0, 128
      %2725 = vxpose.xlu0.b32.end [16/16] 0.0, 128
      %v2726 = vpop.trf.xlu0
      %v2727 = vpop.trf.xlu0
      %v2728 = vpop.trf.xlu0
      %v2729 = vpop.trf.xlu0
      %v2730 = vpop.trf.xlu0
      %v2731 = vpop.trf.xlu0
      %v2732 = vpop.trf.xlu0
      %v2733 = vpop.trf.xlu0
      %v2734 = vpop.trf.xlu0
      %v2735 = vpop.trf.xlu0
      %v2736 = vpop.trf.xlu0
      %v2737 = vpop.trf.xlu0
      %v2738 = vpop.trf.xlu0
      %v2739 = vpop.trf.xlu0
      %v2740 = vpop.trf.xlu0
      %v2741 = vpop.trf.xlu0
      %2742 = vxpose.xlu0.b32.start [1/16] %v1627, 128
      %2743 = vxpose.xlu0.b32.cont [2/16] %v1763, 128
      %2744 = vxpose.xlu0.b32.cont [3/16] %v1899, 128
      %2745 = vxpose.xlu0.b32.cont [4/16] %v2035, 128
      %2746 = vxpose.xlu0.b32.cont [5/16] 0.0, 128
      %2747 = vxpose.xlu0.b32.cont [6/16] 0.0, 128
      %2748 = vxpose.xlu0.b32.cont [7/16] 0.0, 128
      %2749 = vxpose.xlu0.b32.cont [8/16] 0.0, 128
      %2750 = vxpose.xlu0.b32.cont [9/16] 0.0, 128
      %2751 = vxpose.xlu0.b32.cont [10/16] 0.0, 128
      %2752 = vxpose.xlu0.b32.cont [11/16] 0.0, 128
      %2753 = vxpose.xlu0.b32.cont [12/16] 0.0, 128
      %2754 = vxpose.xlu0.b32.cont [13/16] 0.0, 128
      %2755 = vxpose.xlu0.b32.cont [14/16] 0.0, 128
      %2756 = vxpose.xlu0.b32.cont [15/16] 0.0, 128
      %2757 = vxpose.xlu0.b32.end [16/16] 0.0, 128
      %v2758 = vpop.trf.xlu0
      %v2759 = vpop.trf.xlu0
      %v2760 = vpop.trf.xlu0
      %v2761 = vpop.trf.xlu0
      %v2762 = vpop.trf.xlu0
      %v2763 = vpop.trf.xlu0
      %v2764 = vpop.trf.xlu0
      %v2765 = vpop.trf.xlu0
      %v2766 = vpop.trf.xlu0
      %v2767 = vpop.trf.xlu0
      %v2768 = vpop.trf.xlu0
      %v2769 = vpop.trf.xlu0
      %v2770 = vpop.trf.xlu0
      %v2771 = vpop.trf.xlu0
      %v2772 = vpop.trf.xlu0
      %v2773 = vpop.trf.xlu0
      %2774 = vxpose.xlu0.b32.start [1/16] %v1628, 128
      %2775 = vxpose.xlu0.b32.cont [2/16] %v1764, 128
      %2776 = vxpose.xlu0.b32.cont [3/16] %v1900, 128
      %2777 = vxpose.xlu0.b32.cont [4/16] %v2036, 128
      %2778 = vxpose.xlu0.b32.cont [5/16] 0.0, 128
      %2779 = vxpose.xlu0.b32.cont [6/16] 0.0, 128
      %2780 = vxpose.xlu0.b32.cont [7/16] 0.0, 128
      %2781 = vxpose.xlu0.b32.cont [8/16] 0.0, 128
      %2782 = vxpose.xlu0.b32.cont [9/16] 0.0, 128
      %2783 = vxpose.xlu0.b32.cont [10/16] 0.0, 128
      %2784 = vxpose.xlu0.b32.cont [11/16] 0.0, 128
      %2785 = vxpose.xlu0.b32.cont [12/16] 0.0, 128
      %2786 = vxpose.xlu0.b32.cont [13/16] 0.0, 128
      %2787 = vxpose.xlu0.b32.cont [14/16] 0.0, 128
      %2788 = vxpose.xlu0.b32.cont [15/16] 0.0, 128
      %2789 = vxpose.xlu0.b32.end [16/16] 0.0, 128
      %v2790 = vpop.trf.xlu0
      %v2791 = vpop.trf.xlu0
      %v2792 = vpop.trf.xlu0
      %v2793 = vpop.trf.xlu0
      %v2794 = vpop.trf.xlu0
      %v2795 = vpop.trf.xlu0
      %v2796 = vpop.trf.xlu0
      %v2797 = vpop.trf.xlu0
      %v2798 = vpop.trf.xlu0
      %v2799 = vpop.trf.xlu0
      %v2800 = vpop.trf.xlu0
      %v2801 = vpop.trf.xlu0
      %v2802 = vpop.trf.xlu0
      %v2803 = vpop.trf.xlu0
      %v2804 = vpop.trf.xlu0
      %v2805 = vpop.trf.xlu0
      %2806 = vxpose.xlu0.b32.start [1/16] %v1629, 128
      %2807 = vxpose.xlu0.b32.cont [2/16] %v1765, 128
      %2808 = vxpose.xlu0.b32.cont [3/16] %v1901, 128
      %2809 = vxpose.xlu0.b32.cont [4/16] %v2037, 128
      %2810 = vxpose.xlu0.b32.cont [5/16] 0.0, 128
      %2811 = vxpose.xlu0.b32.cont [6/16] 0.0, 128
      %2812 = vxpose.xlu0.b32.cont [7/16] 0.0, 128
      %2813 = vxpose.xlu0.b32.cont [8/16] 0.0, 128
      %2814 = vxpose.xlu0.b32.cont [9/16] 0.0, 128
      %2815 = vxpose.xlu0.b32.cont [10/16] 0.0, 128
      %2816 = vxpose.xlu0.b32.cont [11/16] 0.0, 128
      %2817 = vxpose.xlu0.b32.cont [12/16] 0.0, 128
      %2818 = vxpose.xlu0.b32.cont [13/16] 0.0, 128
      %2819 = vxpose.xlu0.b32.cont [14/16] 0.0, 128
      %2820 = vxpose.xlu0.b32.cont [15/16] 0.0, 128
      %2821 = vxpose.xlu0.b32.end [16/16] 0.0, 128
      %v2822 = vpop.trf.xlu0
      %v2823 = vpop.trf.xlu0
      %v2824 = vpop.trf.xlu0
      %v2825 = vpop.trf.xlu0
      %v2826 = vpop.trf.xlu0
      %v2827 = vpop.trf.xlu0
      %v2828 = vpop.trf.xlu0
      %v2829 = vpop.trf.xlu0
      %v2830 = vpop.trf.xlu0
      %v2831 = vpop.trf.xlu0
      %v2832 = vpop.trf.xlu0
      %v2833 = vpop.trf.xlu0
      %v2834 = vpop.trf.xlu0
      %v2835 = vpop.trf.xlu0
      %v2836 = vpop.trf.xlu0
      %v2837 = vpop.trf.xlu0
      %2838 = vxpose.xlu0.b32.start [1/16] %v2166, 128
      %2839 = vxpose.xlu0.b32.cont [2/16] %v2302, 128
      %2840 = vxpose.xlu0.b32.cont [3/16] %v2438, 128
      %2841 = vxpose.xlu0.b32.cont [4/16] %v2574, 128
      %2842 = vxpose.xlu0.b32.cont [5/16] 0.0, 128
      %2843 = vxpose.xlu0.b32.cont [6/16] 0.0, 128
      %2844 = vxpose.xlu0.b32.cont [7/16] 0.0, 128
      %2845 = vxpose.xlu0.b32.cont [8/16] 0.0, 128
      %2846 = vxpose.xlu0.b32.cont [9/16] 0.0, 128
      %2847 = vxpose.xlu0.b32.cont [10/16] 0.0, 128
      %2848 = vxpose.xlu0.b32.cont [11/16] 0.0, 128
      %2849 = vxpose.xlu0.b32.cont [12/16] 0.0, 128
      %2850 = vxpose.xlu0.b32.cont [13/16] 0.0, 128
      %2851 = vxpose.xlu0.b32.cont [14/16] 0.0, 128
      %2852 = vxpose.xlu0.b32.cont [15/16] 0.0, 128
      %2853 = vxpose.xlu0.b32.end [16/16] 0.0, 128
      %v2854 = vpop.trf.xlu0
      %v2855 = vpop.trf.xlu0
      %v2856 = vpop.trf.xlu0
      %v2857 = vpop.trf.xlu0
      %v2858 = vpop.trf.xlu0
      %v2859 = vpop.trf.xlu0
      %v2860 = vpop.trf.xlu0
      %v2861 = vpop.trf.xlu0
      %v2862 = vpop.trf.xlu0
      %v2863 = vpop.trf.xlu0
      %v2864 = vpop.trf.xlu0
      %v2865 = vpop.trf.xlu0
      %v2866 = vpop.trf.xlu0
      %v2867 = vpop.trf.xlu0
      %v2868 = vpop.trf.xlu0
      %v2869 = vpop.trf.xlu0
      %2870 = vxpose.xlu0.b32.start [1/16] %v2167, 128
      %2871 = vxpose.xlu0.b32.cont [2/16] %v2303, 128
      %2872 = vxpose.xlu0.b32.cont [3/16] %v2439, 128
      %2873 = vxpose.xlu0.b32.cont [4/16] %v2575, 128
      %2874 = vxpose.xlu0.b32.cont [5/16] 0.0, 128
      %2875 = vxpose.xlu0.b32.cont [6/16] 0.0, 128
      %2876 = vxpose.xlu0.b32.cont [7/16] 0.0, 128
      %2877 = vxpose.xlu0.b32.cont [8/16] 0.0, 128
      %2878 = vxpose.xlu0.b32.cont [9/16] 0.0, 128
      %2879 = vxpose.xlu0.b32.cont [10/16] 0.0, 128
      %2880 = vxpose.xlu0.b32.cont [11/16] 0.0, 128
      %2881 = vxpose.xlu0.b32.cont [12/16] 0.0, 128
      %2882 = vxpose.xlu0.b32.cont [13/16] 0.0, 128
      %2883 = vxpose.xlu0.b32.cont [14/16] 0.0, 128
      %2884 = vxpose.xlu0.b32.cont [15/16] 0.0, 128
      %2885 = vxpose.xlu0.b32.end [16/16] 0.0, 128
      %v2886 = vpop.trf.xlu0
      %v2887 = vpop.trf.xlu0
      %v2888 = vpop.trf.xlu0
      %v2889 = vpop.trf.xlu0
      %v2890 = vpop.trf.xlu0
      %v2891 = vpop.trf.xlu0
      %v2892 = vpop.trf.xlu0
      %v2893 = vpop.trf.xlu0
      %v2894 = vpop.trf.xlu0
      %v2895 = vpop.trf.xlu0
      %v2896 = vpop.trf.xlu0
      %v2897 = vpop.trf.xlu0
      %v2898 = vpop.trf.xlu0
      %v2899 = vpop.trf.xlu0
      %v2900 = vpop.trf.xlu0
      %v2901 = vpop.trf.xlu0
      %2902 = vxpose.xlu0.b32.start [1/16] %v2168, 128
      %2903 = vxpose.xlu0.b32.cont [2/16] %v2304, 128
      %2904 = vxpose.xlu0.b32.cont [3/16] %v2440, 128
      %2905 = vxpose.xlu0.b32.cont [4/16] %v2576, 128
      %2906 = vxpose.xlu0.b32.cont [5/16] 0.0, 128
      %2907 = vxpose.xlu0.b32.cont [6/16] 0.0, 128
      %2908 = vxpose.xlu0.b32.cont [7/16] 0.0, 128
      %2909 = vxpose.xlu0.b32.cont [8/16] 0.0, 128
      %2910 = vxpose.xlu0.b32.cont [9/16] 0.0, 128
      %2911 = vxpose.xlu0.b32.cont [10/16] 0.0, 128
      %2912 = vxpose.xlu0.b32.cont [11/16] 0.0, 128
      %2913 = vxpose.xlu0.b32.cont [12/16] 0.0, 128
      %2914 = vxpose.xlu0.b32.cont [13/16] 0.0, 128
      %2915 = vxpose.xlu0.b32.cont [14/16] 0.0, 128
      %2916 = vxpose.xlu0.b32.cont [15/16] 0.0, 128
      %2917 = vxpose.xlu0.b32.end [16/16] 0.0, 128
      %v2918 = vpop.trf.xlu0
      %v2919 = vpop.trf.xlu0
      %v2920 = vpop.trf.xlu0
      %v2921 = vpop.trf.xlu0
      %v2922 = vpop.trf.xlu0
      %v2923 = vpop.trf.xlu0
      %v2924 = vpop.trf.xlu0
      %v2925 = vpop.trf.xlu0
      %v2926 = vpop.trf.xlu0
      %v2927 = vpop.trf.xlu0
      %v2928 = vpop.trf.xlu0
      %v2929 = vpop.trf.xlu0
      %v2930 = vpop.trf.xlu0
      %v2931 = vpop.trf.xlu0
      %v2932 = vpop.trf.xlu0
      %v2933 = vpop.trf.xlu0
      %2934 = vxpose.xlu0.b32.start [1/16] %v2169, 128
      %2935 = vxpose.xlu0.b32.cont [2/16] %v2305, 128
      %2936 = vxpose.xlu0.b32.cont [3/16] %v2441, 128
      %2937 = vxpose.xlu0.b32.cont [4/16] %v2577, 128
      %2938 = vxpose.xlu0.b32.cont [5/16] 0.0, 128
      %2939 = vxpose.xlu0.b32.cont [6/16] 0.0, 128
      %2940 = vxpose.xlu0.b32.cont [7/16] 0.0, 128
      %2941 = vxpose.xlu0.b32.cont [8/16] 0.0, 128
      %2942 = vxpose.xlu0.b32.cont [9/16] 0.0, 128
      %2943 = vxpose.xlu0.b32.cont [10/16] 0.0, 128
      %2944 = vxpose.xlu0.b32.cont [11/16] 0.0, 128
      %2945 = vxpose.xlu0.b32.cont [12/16] 0.0, 128
      %2946 = vxpose.xlu0.b32.cont [13/16] 0.0, 128
      %2947 = vxpose.xlu0.b32.cont [14/16] 0.0, 128
      %2948 = vxpose.xlu0.b32.cont [15/16] 0.0, 128
      %2949 = vxpose.xlu0.b32.end [16/16] 0.0, 128
      %v2950 = vpop.trf.xlu0
      %v2951 = vpop.trf.xlu0
      %v2952 = vpop.trf.xlu0
      %v2953 = vpop.trf.xlu0
      %v2954 = vpop.trf.xlu0
      %v2955 = vpop.trf.xlu0
      %v2956 = vpop.trf.xlu0
      %v2957 = vpop.trf.xlu0
      %v2958 = vpop.trf.xlu0
      %v2959 = vpop.trf.xlu0
      %v2960 = vpop.trf.xlu0
      %v2961 = vpop.trf.xlu0
      %v2962 = vpop.trf.xlu0
      %v2963 = vpop.trf.xlu0
      %v2964 = vpop.trf.xlu0
      %v2965 = vpop.trf.xlu0
      %2966 = vxpose.xlu0.b32.start [1/16] %v2170, 128
      %2967 = vxpose.xlu0.b32.cont [2/16] %v2306, 128
      %2968 = vxpose.xlu0.b32.cont [3/16] %v2442, 128
      %2969 = vxpose.xlu0.b32.cont [4/16] %v2578, 128
      %2970 = vxpose.xlu0.b32.cont [5/16] 0.0, 128
      %2971 = vxpose.xlu0.b32.cont [6/16] 0.0, 128
      %2972 = vxpose.xlu0.b32.cont [7/16] 0.0, 128
      %2973 = vxpose.xlu0.b32.cont [8/16] 0.0, 128
      %2974 = vxpose.xlu0.b32.cont [9/16] 0.0, 128
      %2975 = vxpose.xlu0.b32.cont [10/16] 0.0, 128
      %2976 = vxpose.xlu0.b32.cont [11/16] 0.0, 128
      %2977 = vxpose.xlu0.b32.cont [12/16] 0.0, 128
      %2978 = vxpose.xlu0.b32.cont [13/16] 0.0, 128
      %2979 = vxpose.xlu0.b32.cont [14/16] 0.0, 128
      %2980 = vxpose.xlu0.b32.cont [15/16] 0.0, 128
      %2981 = vxpose.xlu0.b32.end [16/16] 0.0, 128
      %v2982 = vpop.trf.xlu0
      %v2983 = vpop.trf.xlu0
      %v2984 = vpop.trf.xlu0
      %v2985 = vpop.trf.xlu0
      %v2986 = vpop.trf.xlu0
      %v2987 = vpop.trf.xlu0
      %v2988 = vpop.trf.xlu0
      %v2989 = vpop.trf.xlu0
      %v2990 = vpop.trf.xlu0
      %v2991 = vpop.trf.xlu0
      %v2992 = vpop.trf.xlu0
      %v2993 = vpop.trf.xlu0
      %v2994 = vpop.trf.xlu0
      %v2995 = vpop.trf.xlu0
      %v2996 = vpop.trf.xlu0
      %v2997 = vpop.trf.xlu0
      %2998 = vxpose.xlu0.b32.start [1/16] %v2171, 128
      %2999 = vxpose.xlu0.b32.cont [2/16] %v2307, 128
      %3000 = vxpose.xlu0.b32.cont [3/16] %v2443, 128
      %3001 = vxpose.xlu0.b32.cont [4/16] %v2579, 128
      %3002 = vxpose.xlu0.b32.cont [5/16] 0.0, 128
      %3003 = vxpose.xlu0.b32.cont [6/16] 0.0, 128
      %3004 = vxpose.xlu0.b32.cont [7/16] 0.0, 128
      %3005 = vxpose.xlu0.b32.cont [8/16] 0.0, 128
      %3006 = vxpose.xlu0.b32.cont [9/16] 0.0, 128
      %3007 = vxpose.xlu0.b32.cont [10/16] 0.0, 128
      %3008 = vxpose.xlu0.b32.cont [11/16] 0.0, 128
      %3009 = vxpose.xlu0.b32.cont [12/16] 0.0, 128
      %3010 = vxpose.xlu0.b32.cont [13/16] 0.0, 128
      %3011 = vxpose.xlu0.b32.cont [14/16] 0.0, 128
      %3012 = vxpose.xlu0.b32.cont [15/16] 0.0, 128
      %3013 = vxpose.xlu0.b32.end [16/16] 0.0, 128
      %v3014 = vpop.trf.xlu0
      %v3015 = vpop.trf.xlu0
      %v3016 = vpop.trf.xlu0
      %v3017 = vpop.trf.xlu0
      %v3018 = vpop.trf.xlu0
      %v3019 = vpop.trf.xlu0
      %v3020 = vpop.trf.xlu0
      %v3021 = vpop.trf.xlu0
      %v3022 = vpop.trf.xlu0
      %v3023 = vpop.trf.xlu0
      %v3024 = vpop.trf.xlu0
      %v3025 = vpop.trf.xlu0
      %v3026 = vpop.trf.xlu0
      %v3027 = vpop.trf.xlu0
      %v3028 = vpop.trf.xlu0
      %v3029 = vpop.trf.xlu0
      %3030 = vxpose.xlu0.b32.start [1/16] %v2172, 128
      %3031 = vxpose.xlu0.b32.cont [2/16] %v2308, 128
      %3032 = vxpose.xlu0.b32.cont [3/16] %v2444, 128
      %3033 = vxpose.xlu0.b32.cont [4/16] %v2580, 128
      %3034 = vxpose.xlu0.b32.cont [5/16] 0.0, 128
      %3035 = vxpose.xlu0.b32.cont [6/16] 0.0, 128
      %3036 = vxpose.xlu0.b32.cont [7/16] 0.0, 128
      %3037 = vxpose.xlu0.b32.cont [8/16] 0.0, 128
      %3038 = vxpose.xlu0.b32.cont [9/16] 0.0, 128
      %3039 = vxpose.xlu0.b32.cont [10/16] 0.0, 128
      %3040 = vxpose.xlu0.b32.cont [11/16] 0.0, 128
      %3041 = vxpose.xlu0.b32.cont [12/16] 0.0, 128
      %3042 = vxpose.xlu0.b32.cont [13/16] 0.0, 128
      %3043 = vxpose.xlu0.b32.cont [14/16] 0.0, 128
      %3044 = vxpose.xlu0.b32.cont [15/16] 0.0, 128
      %3045 = vxpose.xlu0.b32.end [16/16] 0.0, 128
      %v3046 = vpop.trf.xlu0
      %v3047 = vpop.trf.xlu0
      %v3048 = vpop.trf.xlu0
      %v3049 = vpop.trf.xlu0
      %v3050 = vpop.trf.xlu0
      %v3051 = vpop.trf.xlu0
      %v3052 = vpop.trf.xlu0
      %v3053 = vpop.trf.xlu0
      %v3054 = vpop.trf.xlu0
      %v3055 = vpop.trf.xlu0
      %v3056 = vpop.trf.xlu0
      %v3057 = vpop.trf.xlu0
      %v3058 = vpop.trf.xlu0
      %v3059 = vpop.trf.xlu0
      %v3060 = vpop.trf.xlu0
      %v3061 = vpop.trf.xlu0
      %3062 = vxpose.xlu0.b32.start [1/16] %v2173, 128
      %3063 = vxpose.xlu0.b32.cont [2/16] %v2309, 128
      %3064 = vxpose.xlu0.b32.cont [3/16] %v2445, 128
      %3065 = vxpose.xlu0.b32.cont [4/16] %v2581, 128
      %3066 = vxpose.xlu0.b32.cont [5/16] 0.0, 128
      %3067 = vxpose.xlu0.b32.cont [6/16] 0.0, 128
      %3068 = vxpose.xlu0.b32.cont [7/16] 0.0, 128
      %3069 = vxpose.xlu0.b32.cont [8/16] 0.0, 128
      %3070 = vxpose.xlu0.b32.cont [9/16] 0.0, 128
      %3071 = vxpose.xlu0.b32.cont [10/16] 0.0, 128
      %3072 = vxpose.xlu0.b32.cont [11/16] 0.0, 128
      %3073 = vxpose.xlu0.b32.cont [12/16] 0.0, 128
      %3074 = vxpose.xlu0.b32.cont [13/16] 0.0, 128
      %3075 = vxpose.xlu0.b32.cont [14/16] 0.0, 128
      %3076 = vxpose.xlu0.b32.cont [15/16] 0.0, 128
      %3077 = vxpose.xlu0.b32.end [16/16] 0.0, 128
      %v3078 = vpop.trf.xlu0
      %v3079 = vpop.trf.xlu0
      %v3080 = vpop.trf.xlu0
      %v3081 = vpop.trf.xlu0
      %v3082 = vpop.trf.xlu0
      %v3083 = vpop.trf.xlu0
      %v3084 = vpop.trf.xlu0
      %v3085 = vpop.trf.xlu0
      %v3086 = vpop.trf.xlu0
      %v3087 = vpop.trf.xlu0
      %v3088 = vpop.trf.xlu0
      %v3089 = vpop.trf.xlu0
      %v3090 = vpop.trf.xlu0
      %v3091 = vpop.trf.xlu0
      %v3092 = vpop.trf.xlu0
      %v3093 = vpop.trf.xlu0
      %v3094 = vcombine.low %v2598, %v2662
      %v3096 = vunpack.c.l.s4 1983009808
      %v3097 = vunpack.c.0.s8 %v3096
      %v3098 = vlaneseq
      %v3099 = vshrl.u32 %v3098, 7
      %v3100 = vsub.s32 %v3097, %v3099
      %v3101 = vrot.slane %v3094, %v3100
      %v3102 = vcombine.low %v2630, %v2694
      %v3104 = vunpack.c.l.s4 1983009808
      %v3105 = vunpack.c.0.s8 %v3104
      %v3106 = vlaneseq
      %v3107 = vshrl.u32 %v3106, 7
      %v3108 = vsub.s32 %v3105, %v3107
      %v3109 = vrot.slane %v3102, %v3108
      %v3110 = vcombine.low %v2726, %v2790
      %v3112 = vunpack.c.l.s4 1983009808
      %v3113 = vunpack.c.0.s8 %v3112
      %v3114 = vlaneseq
      %v3115 = vshrl.u32 %v3114, 7
      %v3116 = vsub.s32 %v3113, %v3115
      %v3117 = vrot.slane %v3110, %v3116
      %v3118 = vcombine.low %v2758, %v2822
      %v3120 = vunpack.c.l.s4 1983009808
      %v3121 = vunpack.c.0.s8 %v3120
      %v3122 = vlaneseq
      %v3123 = vshrl.u32 %v3122, 7
      %v3124 = vsub.s32 %v3121, %v3123
      %v3125 = vrot.slane %v3118, %v3124
      %v3126 = vcombine.low %v3101, %v3109
      %v3128 = vunpack.c.l.s4 1934713408
      %v3129 = vunpack.c.0.s8 %v3128
      %v3130 = vlaneseq
      %v3131 = vshrl.u32 %v3130, 7
      %v3132 = vsub.s32 %v3129, %v3131
      %v3133 = vrot.slane %v3126, %v3132
      %v3134 = vcombine.low %v3117, %v3125
      %v3136 = vunpack.c.l.s4 1934713408
      %v3137 = vunpack.c.0.s8 %v3136
      %v3138 = vlaneseq
      %v3139 = vshrl.u32 %v3138, 7
      %v3140 = vsub.s32 %v3137, %v3139
      %v3141 = vrot.slane %v3134, %v3140
      %v3142 = vcombine.low %v3133, %v3141
      %v3143 = vcombine.high %v3133, %v3141
      %v3144 = vcombine.low %v2854, %v2918
      %v3146 = vunpack.c.l.s4 1983009808
      %v3147 = vunpack.c.0.s8 %v3146
      %v3148 = vlaneseq
      %v3149 = vshrl.u32 %v3148, 7
      %v3150 = vsub.s32 %v3147, %v3149
      %v3151 = vrot.slane %v3144, %v3150
      %v3152 = vcombine.low %v2886, %v2950
      %v3154 = vunpack.c.l.s4 1983009808
      %v3155 = vunpack.c.0.s8 %v3154
      %v3156 = vlaneseq
      %v3157 = vshrl.u32 %v3156, 7
      %v3158 = vsub.s32 %v3155, %v3157
      %v3159 = vrot.slane %v3152, %v3158
      %v3160 = vcombine.low %v2982, %v3046
      %v3162 = vunpack.c.l.s4 1983009808
      %v3163 = vunpack.c.0.s8 %v3162
      %v3164 = vlaneseq
      %v3165 = vshrl.u32 %v3164, 7
      %v3166 = vsub.s32 %v3163, %v3165
      %v3167 = vrot.slane %v3160, %v3166
      %v3168 = vcombine.low %v3014, %v3078
      %v3170 = vunpack.c.l.s4 1983009808
      %v3171 = vunpack.c.0.s8 %v3170
      %v3172 = vlaneseq
      %v3173 = vshrl.u32 %v3172, 7
      %v3174 = vsub.s32 %v3171, %v3173
      %v3175 = vrot.slane %v3168, %v3174
      %v3176 = vcombine.low %v3151, %v3159
      %v3178 = vunpack.c.l.s4 1934713408
      %v3179 = vunpack.c.0.s8 %v3178
      %v3180 = vlaneseq
      %v3181 = vshrl.u32 %v3180, 7
      %v3182 = vsub.s32 %v3179, %v3181
      %v3183 = vrot.slane %v3176, %v3182
      %v3184 = vcombine.low %v3167, %v3175
      %v3186 = vunpack.c.l.s4 1934713408
      %v3187 = vunpack.c.0.s8 %v3186
      %v3188 = vlaneseq
      %v3189 = vshrl.u32 %v3188, 7
      %v3190 = vsub.s32 %v3187, %v3189
      %v3191 = vrot.slane %v3184, %v3190
      %v3192 = vcombine.low %v3183, %v3191
      %v3193 = vcombine.high %v3183, %v3191
      %3194 = vxpose.xlu0.b32.start [1/16] %v435, 128
      %3195 = vxpose.xlu0.b32.cont [2/16] 0.0, 128
      %3196 = vxpose.xlu0.b32.cont [3/16] 0.0, 128
      %3197 = vxpose.xlu0.b32.cont [4/16] 0.0, 128
      %3198 = vxpose.xlu0.b32.cont [5/16] 0.0, 128
      %3199 = vxpose.xlu0.b32.cont [6/16] 0.0, 128
      %3200 = vxpose.xlu0.b32.cont [7/16] 0.0, 128
      %3201 = vxpose.xlu0.b32.cont [8/16] 0.0, 128
      %3202 = vxpose.xlu0.b32.cont [9/16] 0.0, 128
      %3203 = vxpose.xlu0.b32.cont [10/16] 0.0, 128
      %3204 = vxpose.xlu0.b32.cont [11/16] 0.0, 128
      %3205 = vxpose.xlu0.b32.cont [12/16] 0.0, 128
      %3206 = vxpose.xlu0.b32.cont [13/16] 0.0, 128
      %3207 = vxpose.xlu0.b32.cont [14/16] 0.0, 128
      %3208 = vxpose.xlu0.b32.cont [15/16] 0.0, 128
      %3209 = vxpose.xlu0.b32.end [16/16] 0.0, 128
      %v3210 = vpop.trf.xlu0
      %v3211 = vpop.trf.xlu0
      %v3212 = vpop.trf.xlu0
      %v3213 = vpop.trf.xlu0
      %v3214 = vpop.trf.xlu0
      %v3215 = vpop.trf.xlu0
      %v3216 = vpop.trf.xlu0
      %v3217 = vpop.trf.xlu0
      %v3218 = vpop.trf.xlu0
      %v3219 = vpop.trf.xlu0
      %v3220 = vpop.trf.xlu0
      %v3221 = vpop.trf.xlu0
      %v3222 = vpop.trf.xlu0
      %v3223 = vpop.trf.xlu0
      %v3224 = vpop.trf.xlu0
      %v3225 = vpop.trf.xlu0
      %3226 = vxpose.xlu0.b32.start [1/16] %v437, 128
      %3227 = vxpose.xlu0.b32.cont [2/16] 0.0, 128
      %3228 = vxpose.xlu0.b32.cont [3/16] 0.0, 128
      %3229 = vxpose.xlu0.b32.cont [4/16] 0.0, 128
      %3230 = vxpose.xlu0.b32.cont [5/16] 0.0, 128
      %3231 = vxpose.xlu0.b32.cont [6/16] 0.0, 128
      %3232 = vxpose.xlu0.b32.cont [7/16] 0.0, 128
      %3233 = vxpose.xlu0.b32.cont [8/16] 0.0, 128
      %3234 = vxpose.xlu0.b32.cont [9/16] 0.0, 128
      %3235 = vxpose.xlu0.b32.cont [10/16] 0.0, 128
      %3236 = vxpose.xlu0.b32.cont [11/16] 0.0, 128
      %3237 = vxpose.xlu0.b32.cont [12/16] 0.0, 128
      %3238 = vxpose.xlu0.b32.cont [13/16] 0.0, 128
      %3239 = vxpose.xlu0.b32.cont [14/16] 0.0, 128
      %3240 = vxpose.xlu0.b32.cont [15/16] 0.0, 128
      %3241 = vxpose.xlu0.b32.end [16/16] 0.0, 128
      %v3242 = vpop.trf.xlu0
      %v3243 = vpop.trf.xlu0
      %v3244 = vpop.trf.xlu0
      %v3245 = vpop.trf.xlu0
      %v3246 = vpop.trf.xlu0
      %v3247 = vpop.trf.xlu0
      %v3248 = vpop.trf.xlu0
      %v3249 = vpop.trf.xlu0
      %v3250 = vpop.trf.xlu0
      %v3251 = vpop.trf.xlu0
      %v3252 = vpop.trf.xlu0
      %v3253 = vpop.trf.xlu0
      %v3254 = vpop.trf.xlu0
      %v3255 = vpop.trf.xlu0
      %v3256 = vpop.trf.xlu0
      %v3257 = vpop.trf.xlu0
      %v3258 = vcombine.high %v3210, 0.0
      %v3260 = vunpack.c.l.s4 1983009808
      %v3261 = vunpack.c.0.s8 %v3260
      %v3262 = vlaneseq
      %v3263 = vshrl.u32 %v3262, 7
      %v3264 = vsub.s32 %v3261, %v3263
      %v3265 = vrot.slane %v3210, %v3264
      %v3267 = vunpack.c.l.s4 1983009808
      %v3268 = vunpack.c.0.s8 %v3267
      %v3269 = vlaneseq
      %v3270 = vshrl.u32 %v3269, 7
      %v3271 = vsub.s32 %v3268, %v3270
      %v3272 = vrot.slane %v3258, %v3271
      %v3273 = vcombine.high %v3242, 0.0
      %v3275 = vunpack.c.l.s4 1983009808
      %v3276 = vunpack.c.0.s8 %v3275
      %v3277 = vlaneseq
      %v3278 = vshrl.u32 %v3277, 7
      %v3279 = vsub.s32 %v3276, %v3278
      %v3280 = vrot.slane %v3242, %v3279
      %v3282 = vunpack.c.l.s4 1983009808
      %v3283 = vunpack.c.0.s8 %v3282
      %v3284 = vlaneseq
      %v3285 = vshrl.u32 %v3284, 7
      %v3286 = vsub.s32 %v3283, %v3285
      %v3287 = vrot.slane %v3273, %v3286
      %v3288 = vcombine.low %v3265, %v3280
      %v3289 = vcombine.high %v3265, %v3280
      %v3291 = vunpack.c.l.s4 1934713408
      %v3292 = vunpack.c.0.s8 %v3291
      %v3293 = vlaneseq
      %v3294 = vshrl.u32 %v3293, 7
      %v3295 = vsub.s32 %v3292, %v3294
      %v3296 = vrot.slane %v3288, %v3295
      %v3298 = vunpack.c.l.s4 1934713408
      %v3299 = vunpack.c.0.s8 %v3298
      %v3300 = vlaneseq
      %v3301 = vshrl.u32 %v3300, 7
      %v3302 = vsub.s32 %v3299, %v3301
      %v3303 = vrot.slane %v3289, %v3302
      %v3304 = vcombine.low %v3272, %v3287
      %v3305 = vcombine.high %v3272, %v3287
      %v3307 = vunpack.c.l.s4 1934713408
      %v3308 = vunpack.c.0.s8 %v3307
      %v3309 = vlaneseq
      %v3310 = vshrl.u32 %v3309, 7
      %v3311 = vsub.s32 %v3308, %v3310
      %v3312 = vrot.slane %v3304, %v3311
      %v3314 = vunpack.c.l.s4 1934713408
      %v3315 = vunpack.c.0.s8 %v3314
      %v3316 = vlaneseq
      %v3317 = vshrl.u32 %v3316, 7
      %v3318 = vsub.s32 %v3315, %v3317
      %v3319 = vrot.slane %v3305, %v3318
      %v3320 = vcombine.high %v3296, 0.0
      %v3321 = vcombine.high %v3303, 0.0
      %v3322 = vcombine.high %v3312, 0.0
      %v3323 = vcombine.high %v3319, 0.0
      %v3324 = vcombine.high %v3211, 0.0
      %v3326 = vunpack.c.l.s4 1983009808
      %v3327 = vunpack.c.0.s8 %v3326
      %v3328 = vlaneseq
      %v3329 = vshrl.u32 %v3328, 7
      %v3330 = vsub.s32 %v3327, %v3329
      %v3331 = vrot.slane %v3211, %v3330
      %v3333 = vunpack.c.l.s4 1983009808
      %v3334 = vunpack.c.0.s8 %v3333
      %v3335 = vlaneseq
      %v3336 = vshrl.u32 %v3335, 7
      %v3337 = vsub.s32 %v3334, %v3336
      %v3338 = vrot.slane %v3324, %v3337
      %v3339 = vcombine.high %v3243, 0.0
      %v3341 = vunpack.c.l.s4 1983009808
      %v3342 = vunpack.c.0.s8 %v3341
      %v3343 = vlaneseq
      %v3344 = vshrl.u32 %v3343, 7
      %v3345 = vsub.s32 %v3342, %v3344
      %v3346 = vrot.slane %v3243, %v3345
      %v3348 = vunpack.c.l.s4 1983009808
      %v3349 = vunpack.c.0.s8 %v3348
      %v3350 = vlaneseq
      %v3351 = vshrl.u32 %v3350, 7
      %v3352 = vsub.s32 %v3349, %v3351
      %v3353 = vrot.slane %v3339, %v3352
      %v3354 = vcombine.low %v3331, %v3346
      %v3355 = vcombine.high %v3331, %v3346
      %v3357 = vunpack.c.l.s4 1934713408
      %v3358 = vunpack.c.0.s8 %v3357
      %v3359 = vlaneseq
      %v3360 = vshrl.u32 %v3359, 7
      %v3361 = vsub.s32 %v3358, %v3360
      %v3362 = vrot.slane %v3354, %v3361
      %v3364 = vunpack.c.l.s4 1934713408
      %v3365 = vunpack.c.0.s8 %v3364
      %v3366 = vlaneseq
      %v3367 = vshrl.u32 %v3366, 7
      %v3368 = vsub.s32 %v3365, %v3367
      %v3369 = vrot.slane %v3355, %v3368
      %v3370 = vcombine.low %v3338, %v3353
      %v3371 = vcombine.high %v3338, %v3353
      %v3373 = vunpack.c.l.s4 1934713408
      %v3374 = vunpack.c.0.s8 %v3373
      %v3375 = vlaneseq
      %v3376 = vshrl.u32 %v3375, 7
      %v3377 = vsub.s32 %v3374, %v3376
      %v3378 = vrot.slane %v3370, %v3377
      %v3380 = vunpack.c.l.s4 1934713408
      %v3381 = vunpack.c.0.s8 %v3380
      %v3382 = vlaneseq
      %v3383 = vshrl.u32 %v3382, 7
      %v3384 = vsub.s32 %v3381, %v3383
      %v3385 = vrot.slane %v3371, %v3384
      %v3386 = vcombine.high %v3362, 0.0
      %v3387 = vcombine.high %v3369, 0.0
      %v3388 = vcombine.high %v3378, 0.0
      %v3389 = vcombine.high %v3385, 0.0
      %v3390 = vcombine.high %v3212, 0.0
      %v3392 = vunpack.c.l.s4 1983009808
      %v3393 = vunpack.c.0.s8 %v3392
      %v3394 = vlaneseq
      %v3395 = vshrl.u32 %v3394, 7
      %v3396 = vsub.s32 %v3393, %v3395
      %v3397 = vrot.slane %v3212, %v3396
      %v3399 = vunpack.c.l.s4 1983009808
      %v3400 = vunpack.c.0.s8 %v3399
      %v3401 = vlaneseq
      %v3402 = vshrl.u32 %v3401, 7
      %v3403 = vsub.s32 %v3400, %v3402
      %v3404 = vrot.slane %v3390, %v3403
      %v3405 = vcombine.high %v3244, 0.0
      %v3407 = vunpack.c.l.s4 1983009808
      %v3408 = vunpack.c.0.s8 %v3407
      %v3409 = vlaneseq
      %v3410 = vshrl.u32 %v3409, 7
      %v3411 = vsub.s32 %v3408, %v3410
      %v3412 = vrot.slane %v3244, %v3411
      %v3414 = vunpack.c.l.s4 1983009808
      %v3415 = vunpack.c.0.s8 %v3414
      %v3416 = vlaneseq
      %v3417 = vshrl.u32 %v3416, 7
      %v3418 = vsub.s32 %v3415, %v3417
      %v3419 = vrot.slane %v3405, %v3418
      %v3420 = vcombine.low %v3397, %v3412
      %v3421 = vcombine.high %v3397, %v3412
      %v3423 = vunpack.c.l.s4 1934713408
      %v3424 = vunpack.c.0.s8 %v3423
      %v3425 = vlaneseq
      %v3426 = vshrl.u32 %v3425, 7
      %v3427 = vsub.s32 %v3424, %v3426
      %v3428 = vrot.slane %v3420, %v3427
      %v3430 = vunpack.c.l.s4 1934713408
      %v3431 = vunpack.c.0.s8 %v3430
      %v3432 = vlaneseq
      %v3433 = vshrl.u32 %v3432, 7
      %v3434 = vsub.s32 %v3431, %v3433
      %v3435 = vrot.slane %v3421, %v3434
      %v3436 = vcombine.low %v3404, %v3419
      %v3437 = vcombine.high %v3404, %v3419
      %v3439 = vunpack.c.l.s4 1934713408
      %v3440 = vunpack.c.0.s8 %v3439
      %v3441 = vlaneseq
      %v3442 = vshrl.u32 %v3441, 7
      %v3443 = vsub.s32 %v3440, %v3442
      %v3444 = vrot.slane %v3436, %v3443
      %v3446 = vunpack.c.l.s4 1934713408
      %v3447 = vunpack.c.0.s8 %v3446
      %v3448 = vlaneseq
      %v3449 = vshrl.u32 %v3448, 7
      %v3450 = vsub.s32 %v3447, %v3449
      %v3451 = vrot.slane %v3437, %v3450
      %v3452 = vcombine.high %v3428, 0.0
      %v3453 = vcombine.high %v3435, 0.0
      %v3454 = vcombine.high %v3444, 0.0
      %v3455 = vcombine.high %v3451, 0.0
      %v3456 = vcombine.high %v3213, 0.0
      %v3458 = vunpack.c.l.s4 1983009808
      %v3459 = vunpack.c.0.s8 %v3458
      %v3460 = vlaneseq
      %v3461 = vshrl.u32 %v3460, 7
      %v3462 = vsub.s32 %v3459, %v3461
      %v3463 = vrot.slane %v3213, %v3462
      %v3465 = vunpack.c.l.s4 1983009808
      %v3466 = vunpack.c.0.s8 %v3465
      %v3467 = vlaneseq
      %v3468 = vshrl.u32 %v3467, 7
      %v3469 = vsub.s32 %v3466, %v3468
      %v3470 = vrot.slane %v3456, %v3469
      %v3471 = vcombine.high %v3245, 0.0
      %v3473 = vunpack.c.l.s4 1983009808
      %v3474 = vunpack.c.0.s8 %v3473
      %v3475 = vlaneseq
      %v3476 = vshrl.u32 %v3475, 7
      %v3477 = vsub.s32 %v3474, %v3476
      %v3478 = vrot.slane %v3245, %v3477
      %v3480 = vunpack.c.l.s4 1983009808
      %v3481 = vunpack.c.0.s8 %v3480
      %v3482 = vlaneseq
      %v3483 = vshrl.u32 %v3482, 7
      %v3484 = vsub.s32 %v3481, %v3483
      %v3485 = vrot.slane %v3471, %v3484
      %v3486 = vcombine.low %v3463, %v3478
      %v3487 = vcombine.high %v3463, %v3478
      %v3489 = vunpack.c.l.s4 1934713408
      %v3490 = vunpack.c.0.s8 %v3489
      %v3491 = vlaneseq
      %v3492 = vshrl.u32 %v3491, 7
      %v3493 = vsub.s32 %v3490, %v3492
      %v3494 = vrot.slane %v3486, %v3493
      %v3496 = vunpack.c.l.s4 1934713408
      %v3497 = vunpack.c.0.s8 %v3496
      %v3498 = vlaneseq
      %v3499 = vshrl.u32 %v3498, 7
      %v3500 = vsub.s32 %v3497, %v3499
      %v3501 = vrot.slane %v3487, %v3500
      %v3502 = vcombine.low %v3470, %v3485
      %v3503 = vcombine.high %v3470, %v3485
      %v3505 = vunpack.c.l.s4 1934713408
      %v3506 = vunpack.c.0.s8 %v3505
      %v3507 = vlaneseq
      %v3508 = vshrl.u32 %v3507, 7
      %v3509 = vsub.s32 %v3506, %v3508
      %v3510 = vrot.slane %v3502, %v3509
      %v3512 = vunpack.c.l.s4 1934713408
      %v3513 = vunpack.c.0.s8 %v3512
      %v3514 = vlaneseq
      %v3515 = vshrl.u32 %v3514, 7
      %v3516 = vsub.s32 %v3513, %v3515
      %v3517 = vrot.slane %v3503, %v3516
      %v3518 = vcombine.high %v3494, 0.0
      %v3519 = vcombine.high %v3501, 0.0
      %v3520 = vcombine.high %v3510, 0.0
      %v3521 = vcombine.high %v3517, 0.0
      %3522 = vxpose.xlu0.b32.start [1/16] %v3296, 128
      %3523 = vxpose.xlu0.b32.cont [2/16] 0.0, 128
      %3524 = vxpose.xlu0.b32.cont [3/16] 0.0, 128
      %3525 = vxpose.xlu0.b32.cont [4/16] 0.0, 128
      %3526 = vxpose.xlu0.b32.cont [5/16] 0.0, 128
      %3527 = vxpose.xlu0.b32.cont [6/16] 0.0, 128
      %3528 = vxpose.xlu0.b32.cont [7/16] 0.0, 128
      %3529 = vxpose.xlu0.b32.cont [8/16] 0.0, 128
      %3530 = vxpose.xlu0.b32.cont [9/16] 0.0, 128
      %3531 = vxpose.xlu0.b32.cont [10/16] 0.0, 128
      %3532 = vxpose.xlu0.b32.cont [11/16] 0.0, 128
      %3533 = vxpose.xlu0.b32.cont [12/16] 0.0, 128
      %3534 = vxpose.xlu0.b32.cont [13/16] 0.0, 128
      %3535 = vxpose.xlu0.b32.cont [14/16] 0.0, 128
      %3536 = vxpose.xlu0.b32.cont [15/16] 0.0, 128
      %3537 = vxpose.xlu0.b32.end [16/16] 0.0, 128
      %v3538 = vpop.trf.xlu0
      %v3539 = vpop.trf.xlu0
      %v3540 = vpop.trf.xlu0
      %v3541 = vpop.trf.xlu0
      %v3542 = vpop.trf.xlu0
      %v3543 = vpop.trf.xlu0
      %v3544 = vpop.trf.xlu0
      %v3545 = vpop.trf.xlu0
      %v3546 = vpop.trf.xlu0
      %v3547 = vpop.trf.xlu0
      %v3548 = vpop.trf.xlu0
      %v3549 = vpop.trf.xlu0
      %v3550 = vpop.trf.xlu0
      %v3551 = vpop.trf.xlu0
      %v3552 = vpop.trf.xlu0
      %v3553 = vpop.trf.xlu0
      %3554 = vxpose.xlu0.b32.start [1/16] %v3320, 128
      %3555 = vxpose.xlu0.b32.cont [2/16] 0.0, 128
      %3556 = vxpose.xlu0.b32.cont [3/16] 0.0, 128
      %3557 = vxpose.xlu0.b32.cont [4/16] 0.0, 128
      %3558 = vxpose.xlu0.b32.cont [5/16] 0.0, 128
      %3559 = vxpose.xlu0.b32.cont [6/16] 0.0, 128
      %3560 = vxpose.xlu0.b32.cont [7/16] 0.0, 128
      %3561 = vxpose.xlu0.b32.cont [8/16] 0.0, 128
      %3562 = vxpose.xlu0.b32.cont [9/16] 0.0, 128
      %3563 = vxpose.xlu0.b32.cont [10/16] 0.0, 128
      %3564 = vxpose.xlu0.b32.cont [11/16] 0.0, 128
      %3565 = vxpose.xlu0.b32.cont [12/16] 0.0, 128
      %3566 = vxpose.xlu0.b32.cont [13/16] 0.0, 128
      %3567 = vxpose.xlu0.b32.cont [14/16] 0.0, 128
      %3568 = vxpose.xlu0.b32.cont [15/16] 0.0, 128
      %3569 = vxpose.xlu0.b32.end [16/16] 0.0, 128
      %v3570 = vpop.trf.xlu0
      %v3571 = vpop.trf.xlu0
      %v3572 = vpop.trf.xlu0
      %v3573 = vpop.trf.xlu0
      %v3574 = vpop.trf.xlu0
      %v3575 = vpop.trf.xlu0
      %v3576 = vpop.trf.xlu0
      %v3577 = vpop.trf.xlu0
      %v3578 = vpop.trf.xlu0
      %v3579 = vpop.trf.xlu0
      %v3580 = vpop.trf.xlu0
      %v3581 = vpop.trf.xlu0
      %v3582 = vpop.trf.xlu0
      %v3583 = vpop.trf.xlu0
      %v3584 = vpop.trf.xlu0
      %v3585 = vpop.trf.xlu0
      %3586 = vxpose.xlu0.b32.start [1/16] %v3303, 128
      %3587 = vxpose.xlu0.b32.cont [2/16] 0.0, 128
      %3588 = vxpose.xlu0.b32.cont [3/16] 0.0, 128
      %3589 = vxpose.xlu0.b32.cont [4/16] 0.0, 128
      %3590 = vxpose.xlu0.b32.cont [5/16] 0.0, 128
      %3591 = vxpose.xlu0.b32.cont [6/16] 0.0, 128
      %3592 = vxpose.xlu0.b32.cont [7/16] 0.0, 128
      %3593 = vxpose.xlu0.b32.cont [8/16] 0.0, 128
      %3594 = vxpose.xlu0.b32.cont [9/16] 0.0, 128
      %3595 = vxpose.xlu0.b32.cont [10/16] 0.0, 128
      %3596 = vxpose.xlu0.b32.cont [11/16] 0.0, 128
      %3597 = vxpose.xlu0.b32.cont [12/16] 0.0, 128
      %3598 = vxpose.xlu0.b32.cont [13/16] 0.0, 128
      %3599 = vxpose.xlu0.b32.cont [14/16] 0.0, 128
      %3600 = vxpose.xlu0.b32.cont [15/16] 0.0, 128
      %3601 = vxpose.xlu0.b32.end [16/16] 0.0, 128
      %v3602 = vpop.trf.xlu0
      %v3603 = vpop.trf.xlu0
      %v3604 = vpop.trf.xlu0
      %v3605 = vpop.trf.xlu0
      %v3606 = vpop.trf.xlu0
      %v3607 = vpop.trf.xlu0
      %v3608 = vpop.trf.xlu0
      %v3609 = vpop.trf.xlu0
      %v3610 = vpop.trf.xlu0
      %v3611 = vpop.trf.xlu0
      %v3612 = vpop.trf.xlu0
      %v3613 = vpop.trf.xlu0
      %v3614 = vpop.trf.xlu0
      %v3615 = vpop.trf.xlu0
      %v3616 = vpop.trf.xlu0
      %v3617 = vpop.trf.xlu0
      %3618 = vxpose.xlu0.b32.start [1/16] %v3321, 128
      %3619 = vxpose.xlu0.b32.cont [2/16] 0.0, 128
      %3620 = vxpose.xlu0.b32.cont [3/16] 0.0, 128
      %3621 = vxpose.xlu0.b32.cont [4/16] 0.0, 128
      %3622 = vxpose.xlu0.b32.cont [5/16] 0.0, 128
      %3623 = vxpose.xlu0.b32.cont [6/16] 0.0, 128
      %3624 = vxpose.xlu0.b32.cont [7/16] 0.0, 128
      %3625 = vxpose.xlu0.b32.cont [8/16] 0.0, 128
      %3626 = vxpose.xlu0.b32.cont [9/16] 0.0, 128
      %3627 = vxpose.xlu0.b32.cont [10/16] 0.0, 128
      %3628 = vxpose.xlu0.b32.cont [11/16] 0.0, 128
      %3629 = vxpose.xlu0.b32.cont [12/16] 0.0, 128
      %3630 = vxpose.xlu0.b32.cont [13/16] 0.0, 128
      %3631 = vxpose.xlu0.b32.cont [14/16] 0.0, 128
      %3632 = vxpose.xlu0.b32.cont [15/16] 0.0, 128
      %3633 = vxpose.xlu0.b32.end [16/16] 0.0, 128
      %v3634 = vpop.trf.xlu0
      %v3635 = vpop.trf.xlu0
      %v3636 = vpop.trf.xlu0
      %v3637 = vpop.trf.xlu0
      %v3638 = vpop.trf.xlu0
      %v3639 = vpop.trf.xlu0
      %v3640 = vpop.trf.xlu0
      %v3641 = vpop.trf.xlu0
      %v3642 = vpop.trf.xlu0
      %v3643 = vpop.trf.xlu0
      %v3644 = vpop.trf.xlu0
      %v3645 = vpop.trf.xlu0
      %v3646 = vpop.trf.xlu0
      %v3647 = vpop.trf.xlu0
      %v3648 = vpop.trf.xlu0
      %v3649 = vpop.trf.xlu0
      %3650 = vxpose.xlu0.b32.start [1/16] %v3312, 128
      %3651 = vxpose.xlu0.b32.cont [2/16] 0.0, 128
      %3652 = vxpose.xlu0.b32.cont [3/16] 0.0, 128
      %3653 = vxpose.xlu0.b32.cont [4/16] 0.0, 128
      %3654 = vxpose.xlu0.b32.cont [5/16] 0.0, 128
      %3655 = vxpose.xlu0.b32.cont [6/16] 0.0, 128
      %3656 = vxpose.xlu0.b32.cont [7/16] 0.0, 128
      %3657 = vxpose.xlu0.b32.cont [8/16] 0.0, 128
      %3658 = vxpose.xlu0.b32.cont [9/16] 0.0, 128
      %3659 = vxpose.xlu0.b32.cont [10/16] 0.0, 128
      %3660 = vxpose.xlu0.b32.cont [11/16] 0.0, 128
      %3661 = vxpose.xlu0.b32.cont [12/16] 0.0, 128
      %3662 = vxpose.xlu0.b32.cont [13/16] 0.0, 128
      %3663 = vxpose.xlu0.b32.cont [14/16] 0.0, 128
      %3664 = vxpose.xlu0.b32.cont [15/16] 0.0, 128
      %3665 = vxpose.xlu0.b32.end [16/16] 0.0, 128
      %v3666 = vpop.trf.xlu0
      %v3667 = vpop.trf.xlu0
      %v3668 = vpop.trf.xlu0
      %v3669 = vpop.trf.xlu0
      %v3670 = vpop.trf.xlu0
      %v3671 = vpop.trf.xlu0
      %v3672 = vpop.trf.xlu0
      %v3673 = vpop.trf.xlu0
      %v3674 = vpop.trf.xlu0
      %v3675 = vpop.trf.xlu0
      %v3676 = vpop.trf.xlu0
      %v3677 = vpop.trf.xlu0
      %v3678 = vpop.trf.xlu0
      %v3679 = vpop.trf.xlu0
      %v3680 = vpop.trf.xlu0
      %v3681 = vpop.trf.xlu0
      %3682 = vxpose.xlu0.b32.start [1/16] %v3322, 128
      %3683 = vxpose.xlu0.b32.cont [2/16] 0.0, 128
      %3684 = vxpose.xlu0.b32.cont [3/16] 0.0, 128
      %3685 = vxpose.xlu0.b32.cont [4/16] 0.0, 128
      %3686 = vxpose.xlu0.b32.cont [5/16] 0.0, 128
      %3687 = vxpose.xlu0.b32.cont [6/16] 0.0, 128
      %3688 = vxpose.xlu0.b32.cont [7/16] 0.0, 128
      %3689 = vxpose.xlu0.b32.cont [8/16] 0.0, 128
      %3690 = vxpose.xlu0.b32.cont [9/16] 0.0, 128
      %3691 = vxpose.xlu0.b32.cont [10/16] 0.0, 128
      %3692 = vxpose.xlu0.b32.cont [11/16] 0.0, 128
      %3693 = vxpose.xlu0.b32.cont [12/16] 0.0, 128
      %3694 = vxpose.xlu0.b32.cont [13/16] 0.0, 128
      %3695 = vxpose.xlu0.b32.cont [14/16] 0.0, 128
      %3696 = vxpose.xlu0.b32.cont [15/16] 0.0, 128
      %3697 = vxpose.xlu0.b32.end [16/16] 0.0, 128
      %v3698 = vpop.trf.xlu0
      %v3699 = vpop.trf.xlu0
      %v3700 = vpop.trf.xlu0
      %v3701 = vpop.trf.xlu0
      %v3702 = vpop.trf.xlu0
      %v3703 = vpop.trf.xlu0
      %v3704 = vpop.trf.xlu0
      %v3705 = vpop.trf.xlu0
      %v3706 = vpop.trf.xlu0
      %v3707 = vpop.trf.xlu0
      %v3708 = vpop.trf.xlu0
      %v3709 = vpop.trf.xlu0
      %v3710 = vpop.trf.xlu0
      %v3711 = vpop.trf.xlu0
      %v3712 = vpop.trf.xlu0
      %v3713 = vpop.trf.xlu0
      %3714 = vxpose.xlu0.b32.start [1/16] %v3319, 128
      %3715 = vxpose.xlu0.b32.cont [2/16] 0.0, 128
      %3716 = vxpose.xlu0.b32.cont [3/16] 0.0, 128
      %3717 = vxpose.xlu0.b32.cont [4/16] 0.0, 128
      %3718 = vxpose.xlu0.b32.cont [5/16] 0.0, 128
      %3719 = vxpose.xlu0.b32.cont [6/16] 0.0, 128
      %3720 = vxpose.xlu0.b32.cont [7/16] 0.0, 128
      %3721 = vxpose.xlu0.b32.cont [8/16] 0.0, 128
      %3722 = vxpose.xlu0.b32.cont [9/16] 0.0, 128
      %3723 = vxpose.xlu0.b32.cont [10/16] 0.0, 128
      %3724 = vxpose.xlu0.b32.cont [11/16] 0.0, 128
      %3725 = vxpose.xlu0.b32.cont [12/16] 0.0, 128
      %3726 = vxpose.xlu0.b32.cont [13/16] 0.0, 128
      %3727 = vxpose.xlu0.b32.cont [14/16] 0.0, 128
      %3728 = vxpose.xlu0.b32.cont [15/16] 0.0, 128
      %3729 = vxpose.xlu0.b32.end [16/16] 0.0, 128
      %v3730 = vpop.trf.xlu0
      %v3731 = vpop.trf.xlu0
      %v3732 = vpop.trf.xlu0
      %v3733 = vpop.trf.xlu0
      %v3734 = vpop.trf.xlu0
      %v3735 = vpop.trf.xlu0
      %v3736 = vpop.trf.xlu0
      %v3737 = vpop.trf.xlu0
      %v3738 = vpop.trf.xlu0
      %v3739 = vpop.trf.xlu0
      %v3740 = vpop.trf.xlu0
      %v3741 = vpop.trf.xlu0
      %v3742 = vpop.trf.xlu0
      %v3743 = vpop.trf.xlu0
      %v3744 = vpop.trf.xlu0
      %v3745 = vpop.trf.xlu0
      %3746 = vxpose.xlu0.b32.start [1/16] %v3323, 128
      %3747 = vxpose.xlu0.b32.cont [2/16] 0.0, 128
      %3748 = vxpose.xlu0.b32.cont [3/16] 0.0, 128
      %3749 = vxpose.xlu0.b32.cont [4/16] 0.0, 128
      %3750 = vxpose.xlu0.b32.cont [5/16] 0.0, 128
      %3751 = vxpose.xlu0.b32.cont [6/16] 0.0, 128
      %3752 = vxpose.xlu0.b32.cont [7/16] 0.0, 128
      %3753 = vxpose.xlu0.b32.cont [8/16] 0.0, 128
      %3754 = vxpose.xlu0.b32.cont [9/16] 0.0, 128
      %3755 = vxpose.xlu0.b32.cont [10/16] 0.0, 128
      %3756 = vxpose.xlu0.b32.cont [11/16] 0.0, 128
      %3757 = vxpose.xlu0.b32.cont [12/16] 0.0, 128
      %3758 = vxpose.xlu0.b32.cont [13/16] 0.0, 128
      %3759 = vxpose.xlu0.b32.cont [14/16] 0.0, 128
      %3760 = vxpose.xlu0.b32.cont [15/16] 0.0, 128
      %3761 = vxpose.xlu0.b32.end [16/16] 0.0, 128
      %v3762 = vpop.trf.xlu0
      %v3763 = vpop.trf.xlu0
      %v3764 = vpop.trf.xlu0
      %v3765 = vpop.trf.xlu0
      %v3766 = vpop.trf.xlu0
      %v3767 = vpop.trf.xlu0
      %v3768 = vpop.trf.xlu0
      %v3769 = vpop.trf.xlu0
      %v3770 = vpop.trf.xlu0
      %v3771 = vpop.trf.xlu0
      %v3772 = vpop.trf.xlu0
      %v3773 = vpop.trf.xlu0
      %v3774 = vpop.trf.xlu0
      %v3775 = vpop.trf.xlu0
      %v3776 = vpop.trf.xlu0
      %v3777 = vpop.trf.xlu0
      %3778 = vxpose.xlu0.b32.start [1/16] %v3362, 128
      %3779 = vxpose.xlu0.b32.cont [2/16] 0.0, 128
      %3780 = vxpose.xlu0.b32.cont [3/16] 0.0, 128
      %3781 = vxpose.xlu0.b32.cont [4/16] 0.0, 128
      %3782 = vxpose.xlu0.b32.cont [5/16] 0.0, 128
      %3783 = vxpose.xlu0.b32.cont [6/16] 0.0, 128
      %3784 = vxpose.xlu0.b32.cont [7/16] 0.0, 128
      %3785 = vxpose.xlu0.b32.cont [8/16] 0.0, 128
      %3786 = vxpose.xlu0.b32.cont [9/16] 0.0, 128
      %3787 = vxpose.xlu0.b32.cont [10/16] 0.0, 128
      %3788 = vxpose.xlu0.b32.cont [11/16] 0.0, 128
      %3789 = vxpose.xlu0.b32.cont [12/16] 0.0, 128
      %3790 = vxpose.xlu0.b32.cont [13/16] 0.0, 128
      %3791 = vxpose.xlu0.b32.cont [14/16] 0.0, 128
      %3792 = vxpose.xlu0.b32.cont [15/16] 0.0, 128
      %3793 = vxpose.xlu0.b32.end [16/16] 0.0, 128
      %v3794 = vpop.trf.xlu0
      %v3795 = vpop.trf.xlu0
      %v3796 = vpop.trf.xlu0
      %v3797 = vpop.trf.xlu0
      %v3798 = vpop.trf.xlu0
      %v3799 = vpop.trf.xlu0
      %v3800 = vpop.trf.xlu0
      %v3801 = vpop.trf.xlu0
      %v3802 = vpop.trf.xlu0
      %v3803 = vpop.trf.xlu0
      %v3804 = vpop.trf.xlu0
      %v3805 = vpop.trf.xlu0
      %v3806 = vpop.trf.xlu0
      %v3807 = vpop.trf.xlu0
      %v3808 = vpop.trf.xlu0
      %v3809 = vpop.trf.xlu0
      %3810 = vxpose.xlu0.b32.start [1/16] %v3386, 128
      %3811 = vxpose.xlu0.b32.cont [2/16] 0.0, 128
      %3812 = vxpose.xlu0.b32.cont [3/16] 0.0, 128
      %3813 = vxpose.xlu0.b32.cont [4/16] 0.0, 128
      %3814 = vxpose.xlu0.b32.cont [5/16] 0.0, 128
      %3815 = vxpose.xlu0.b32.cont [6/16] 0.0, 128
      %3816 = vxpose.xlu0.b32.cont [7/16] 0.0, 128
      %3817 = vxpose.xlu0.b32.cont [8/16] 0.0, 128
      %3818 = vxpose.xlu0.b32.cont [9/16] 0.0, 128
      %3819 = vxpose.xlu0.b32.cont [10/16] 0.0, 128
      %3820 = vxpose.xlu0.b32.cont [11/16] 0.0, 128
      %3821 = vxpose.xlu0.b32.cont [12/16] 0.0, 128
      %3822 = vxpose.xlu0.b32.cont [13/16] 0.0, 128
      %3823 = vxpose.xlu0.b32.cont [14/16] 0.0, 128
      %3824 = vxpose.xlu0.b32.cont [15/16] 0.0, 128
      %3825 = vxpose.xlu0.b32.end [16/16] 0.0, 128
      %v3826 = vpop.trf.xlu0
      %v3827 = vpop.trf.xlu0
      %v3828 = vpop.trf.xlu0
      %v3829 = vpop.trf.xlu0
      %v3830 = vpop.trf.xlu0
      %v3831 = vpop.trf.xlu0
      %v3832 = vpop.trf.xlu0
      %v3833 = vpop.trf.xlu0
      %v3834 = vpop.trf.xlu0
      %v3835 = vpop.trf.xlu0
      %v3836 = vpop.trf.xlu0
      %v3837 = vpop.trf.xlu0
      %v3838 = vpop.trf.xlu0
      %v3839 = vpop.trf.xlu0
      %v3840 = vpop.trf.xlu0
      %v3841 = vpop.trf.xlu0
      %3842 = vxpose.xlu0.b32.start [1/16] %v3369, 128
      %3843 = vxpose.xlu0.b32.cont [2/16] 0.0, 128
      %3844 = vxpose.xlu0.b32.cont [3/16] 0.0, 128
      %3845 = vxpose.xlu0.b32.cont [4/16] 0.0, 128
      %3846 = vxpose.xlu0.b32.cont [5/16] 0.0, 128
      %3847 = vxpose.xlu0.b32.cont [6/16] 0.0, 128
      %3848 = vxpose.xlu0.b32.cont [7/16] 0.0, 128
      %3849 = vxpose.xlu0.b32.cont [8/16] 0.0, 128
      %3850 = vxpose.xlu0.b32.cont [9/16] 0.0, 128
      %3851 = vxpose.xlu0.b32.cont [10/16] 0.0, 128
      %3852 = vxpose.xlu0.b32.cont [11/16] 0.0, 128
      %3853 = vxpose.xlu0.b32.cont [12/16] 0.0, 128
      %3854 = vxpose.xlu0.b32.cont [13/16] 0.0, 128
      %3855 = vxpose.xlu0.b32.cont [14/16] 0.0, 128
      %3856 = vxpose.xlu0.b32.cont [15/16] 0.0, 128
      %3857 = vxpose.xlu0.b32.end [16/16] 0.0, 128
      %v3858 = vpop.trf.xlu0
      %v3859 = vpop.trf.xlu0
      %v3860 = vpop.trf.xlu0
      %v3861 = vpop.trf.xlu0
      %v3862 = vpop.trf.xlu0
      %v3863 = vpop.trf.xlu0
      %v3864 = vpop.trf.xlu0
      %v3865 = vpop.trf.xlu0
      %v3866 = vpop.trf.xlu0
      %v3867 = vpop.trf.xlu0
      %v3868 = vpop.trf.xlu0
      %v3869 = vpop.trf.xlu0
      %v3870 = vpop.trf.xlu0
      %v3871 = vpop.trf.xlu0
      %v3872 = vpop.trf.xlu0
      %v3873 = vpop.trf.xlu0
      %3874 = vxpose.xlu0.b32.start [1/16] %v3387, 128
      %3875 = vxpose.xlu0.b32.cont [2/16] 0.0, 128
      %3876 = vxpose.xlu0.b32.cont [3/16] 0.0, 128
      %3877 = vxpose.xlu0.b32.cont [4/16] 0.0, 128
      %3878 = vxpose.xlu0.b32.cont [5/16] 0.0, 128
      %3879 = vxpose.xlu0.b32.cont [6/16] 0.0, 128
      %3880 = vxpose.xlu0.b32.cont [7/16] 0.0, 128
      %3881 = vxpose.xlu0.b32.cont [8/16] 0.0, 128
      %3882 = vxpose.xlu0.b32.cont [9/16] 0.0, 128
      %3883 = vxpose.xlu0.b32.cont [10/16] 0.0, 128
      %3884 = vxpose.xlu0.b32.cont [11/16] 0.0, 128
      %3885 = vxpose.xlu0.b32.cont [12/16] 0.0, 128
      %3886 = vxpose.xlu0.b32.cont [13/16] 0.0, 128
      %3887 = vxpose.xlu0.b32.cont [14/16] 0.0, 128
      %3888 = vxpose.xlu0.b32.cont [15/16] 0.0, 128
      %3889 = vxpose.xlu0.b32.end [16/16] 0.0, 128
      %v3890 = vpop.trf.xlu0
      %v3891 = vpop.trf.xlu0
      %v3892 = vpop.trf.xlu0
      %v3893 = vpop.trf.xlu0
      %v3894 = vpop.trf.xlu0
      %v3895 = vpop.trf.xlu0
      %v3896 = vpop.trf.xlu0
      %v3897 = vpop.trf.xlu0
      %v3898 = vpop.trf.xlu0
      %v3899 = vpop.trf.xlu0
      %v3900 = vpop.trf.xlu0
      %v3901 = vpop.trf.xlu0
      %v3902 = vpop.trf.xlu0
      %v3903 = vpop.trf.xlu0
      %v3904 = vpop.trf.xlu0
      %v3905 = vpop.trf.xlu0
      %3906 = vxpose.xlu0.b32.start [1/16] %v3378, 128
      %3907 = vxpose.xlu0.b32.cont [2/16] 0.0, 128
      %3908 = vxpose.xlu0.b32.cont [3/16] 0.0, 128
      %3909 = vxpose.xlu0.b32.cont [4/16] 0.0, 128
      %3910 = vxpose.xlu0.b32.cont [5/16] 0.0, 128
      %3911 = vxpose.xlu0.b32.cont [6/16] 0.0, 128
      %3912 = vxpose.xlu0.b32.cont [7/16] 0.0, 128
      %3913 = vxpose.xlu0.b32.cont [8/16] 0.0, 128
      %3914 = vxpose.xlu0.b32.cont [9/16] 0.0, 128
      %3915 = vxpose.xlu0.b32.cont [10/16] 0.0, 128
      %3916 = vxpose.xlu0.b32.cont [11/16] 0.0, 128
      %3917 = vxpose.xlu0.b32.cont [12/16] 0.0, 128
      %3918 = vxpose.xlu0.b32.cont [13/16] 0.0, 128
      %3919 = vxpose.xlu0.b32.cont [14/16] 0.0, 128
      %3920 = vxpose.xlu0.b32.cont [15/16] 0.0, 128
      %3921 = vxpose.xlu0.b32.end [16/16] 0.0, 128
      %v3922 = vpop.trf.xlu0
      %v3923 = vpop.trf.xlu0
      %v3924 = vpop.trf.xlu0
      %v3925 = vpop.trf.xlu0
      %v3926 = vpop.trf.xlu0
      %v3927 = vpop.trf.xlu0
      %v3928 = vpop.trf.xlu0
      %v3929 = vpop.trf.xlu0
      %v3930 = vpop.trf.xlu0
      %v3931 = vpop.trf.xlu0
      %v3932 = vpop.trf.xlu0
      %v3933 = vpop.trf.xlu0
      %v3934 = vpop.trf.xlu0
      %v3935 = vpop.trf.xlu0
      %v3936 = vpop.trf.xlu0
      %v3937 = vpop.trf.xlu0
      %3938 = vxpose.xlu0.b32.start [1/16] %v3388, 128
      %3939 = vxpose.xlu0.b32.cont [2/16] 0.0, 128
      %3940 = vxpose.xlu0.b32.cont [3/16] 0.0, 128
      %3941 = vxpose.xlu0.b32.cont [4/16] 0.0, 128
      %3942 = vxpose.xlu0.b32.cont [5/16] 0.0, 128
      %3943 = vxpose.xlu0.b32.cont [6/16] 0.0, 128
      %3944 = vxpose.xlu0.b32.cont [7/16] 0.0, 128
      %3945 = vxpose.xlu0.b32.cont [8/16] 0.0, 128
      %3946 = vxpose.xlu0.b32.cont [9/16] 0.0, 128
      %3947 = vxpose.xlu0.b32.cont [10/16] 0.0, 128
      %3948 = vxpose.xlu0.b32.cont [11/16] 0.0, 128
      %3949 = vxpose.xlu0.b32.cont [12/16] 0.0, 128
      %3950 = vxpose.xlu0.b32.cont [13/16] 0.0, 128
      %3951 = vxpose.xlu0.b32.cont [14/16] 0.0, 128
      %3952 = vxpose.xlu0.b32.cont [15/16] 0.0, 128
      %3953 = vxpose.xlu0.b32.end [16/16] 0.0, 128
      %v3954 = vpop.trf.xlu0
      %v3955 = vpop.trf.xlu0
      %v3956 = vpop.trf.xlu0
      %v3957 = vpop.trf.xlu0
      %v3958 = vpop.trf.xlu0
      %v3959 = vpop.trf.xlu0
      %v3960 = vpop.trf.xlu0
      %v3961 = vpop.trf.xlu0
      %v3962 = vpop.trf.xlu0
      %v3963 = vpop.trf.xlu0
      %v3964 = vpop.trf.xlu0
      %v3965 = vpop.trf.xlu0
      %v3966 = vpop.trf.xlu0
      %v3967 = vpop.trf.xlu0
      %v3968 = vpop.trf.xlu0
      %v3969 = vpop.trf.xlu0
      %3970 = vxpose.xlu0.b32.start [1/16] %v3385, 128
      %3971 = vxpose.xlu0.b32.cont [2/16] 0.0, 128
      %3972 = vxpose.xlu0.b32.cont [3/16] 0.0, 128
      %3973 = vxpose.xlu0.b32.cont [4/16] 0.0, 128
      %3974 = vxpose.xlu0.b32.cont [5/16] 0.0, 128
      %3975 = vxpose.xlu0.b32.cont [6/16] 0.0, 128
      %3976 = vxpose.xlu0.b32.cont [7/16] 0.0, 128
      %3977 = vxpose.xlu0.b32.cont [8/16] 0.0, 128
      %3978 = vxpose.xlu0.b32.cont [9/16] 0.0, 128
      %3979 = vxpose.xlu0.b32.cont [10/16] 0.0, 128
      %3980 = vxpose.xlu0.b32.cont [11/16] 0.0, 128
      %3981 = vxpose.xlu0.b32.cont [12/16] 0.0, 128
      %3982 = vxpose.xlu0.b32.cont [13/16] 0.0, 128
      %3983 = vxpose.xlu0.b32.cont [14/16] 0.0, 128
      %3984 = vxpose.xlu0.b32.cont [15/16] 0.0, 128
      %3985 = vxpose.xlu0.b32.end [16/16] 0.0, 128
      %v3986 = vpop.trf.xlu0
      %v3987 = vpop.trf.xlu0
      %v3988 = vpop.trf.xlu0
      %v3989 = vpop.trf.xlu0
      %v3990 = vpop.trf.xlu0
      %v3991 = vpop.trf.xlu0
      %v3992 = vpop.trf.xlu0
      %v3993 = vpop.trf.xlu0
      %v3994 = vpop.trf.xlu0
      %v3995 = vpop.trf.xlu0
      %v3996 = vpop.trf.xlu0
      %v3997 = vpop.trf.xlu0
      %v3998 = vpop.trf.xlu0
      %v3999 = vpop.trf.xlu0
      %v4000 = vpop.trf.xlu0
      %v4001 = vpop.trf.xlu0
      %4002 = vxpose.xlu0.b32.start [1/16] %v3389, 128
      %4003 = vxpose.xlu0.b32.cont [2/16] 0.0, 128
      %4004 = vxpose.xlu0.b32.cont [3/16] 0.0, 128
      %4005 = vxpose.xlu0.b32.cont [4/16] 0.0, 128
      %4006 = vxpose.xlu0.b32.cont [5/16] 0.0, 128
      %4007 = vxpose.xlu0.b32.cont [6/16] 0.0, 128
      %4008 = vxpose.xlu0.b32.cont [7/16] 0.0, 128
      %4009 = vxpose.xlu0.b32.cont [8/16] 0.0, 128
      %4010 = vxpose.xlu0.b32.cont [9/16] 0.0, 128
      %4011 = vxpose.xlu0.b32.cont [10/16] 0.0, 128
      %4012 = vxpose.xlu0.b32.cont [11/16] 0.0, 128
      %4013 = vxpose.xlu0.b32.cont [12/16] 0.0, 128
      %4014 = vxpose.xlu0.b32.cont [13/16] 0.0, 128
      %4015 = vxpose.xlu0.b32.cont [14/16] 0.0, 128
      %4016 = vxpose.xlu0.b32.cont [15/16] 0.0, 128
      %4017 = vxpose.xlu0.b32.end [16/16] 0.0, 128
      %v4018 = vpop.trf.xlu0
      %v4019 = vpop.trf.xlu0
      %v4020 = vpop.trf.xlu0
      %v4021 = vpop.trf.xlu0
      %v4022 = vpop.trf.xlu0
      %v4023 = vpop.trf.xlu0
      %v4024 = vpop.trf.xlu0
      %v4025 = vpop.trf.xlu0
      %v4026 = vpop.trf.xlu0
      %v4027 = vpop.trf.xlu0
      %v4028 = vpop.trf.xlu0
      %v4029 = vpop.trf.xlu0
      %v4030 = vpop.trf.xlu0
      %v4031 = vpop.trf.xlu0
      %v4032 = vpop.trf.xlu0
      %v4033 = vpop.trf.xlu0
      %4034 = vxpose.xlu0.b32.start [1/16] %v3428, 128
      %4035 = vxpose.xlu0.b32.cont [2/16] 0.0, 128
      %4036 = vxpose.xlu0.b32.cont [3/16] 0.0, 128
      %4037 = vxpose.xlu0.b32.cont [4/16] 0.0, 128
      %4038 = vxpose.xlu0.b32.cont [5/16] 0.0, 128
      %4039 = vxpose.xlu0.b32.cont [6/16] 0.0, 128
      %4040 = vxpose.xlu0.b32.cont [7/16] 0.0, 128
      %4041 = vxpose.xlu0.b32.cont [8/16] 0.0, 128
      %4042 = vxpose.xlu0.b32.cont [9/16] 0.0, 128
      %4043 = vxpose.xlu0.b32.cont [10/16] 0.0, 128
      %4044 = vxpose.xlu0.b32.cont [11/16] 0.0, 128
      %4045 = vxpose.xlu0.b32.cont [12/16] 0.0, 128
      %4046 = vxpose.xlu0.b32.cont [13/16] 0.0, 128
      %4047 = vxpose.xlu0.b32.cont [14/16] 0.0, 128
      %4048 = vxpose.xlu0.b32.cont [15/16] 0.0, 128
      %4049 = vxpose.xlu0.b32.end [16/16] 0.0, 128
      %v4050 = vpop.trf.xlu0
      %v4051 = vpop.trf.xlu0
      %v4052 = vpop.trf.xlu0
      %v4053 = vpop.trf.xlu0
      %v4054 = vpop.trf.xlu0
      %v4055 = vpop.trf.xlu0
      %v4056 = vpop.trf.xlu0
      %v4057 = vpop.trf.xlu0
      %v4058 = vpop.trf.xlu0
      %v4059 = vpop.trf.xlu0
      %v4060 = vpop.trf.xlu0
      %v4061 = vpop.trf.xlu0
      %v4062 = vpop.trf.xlu0
      %v4063 = vpop.trf.xlu0
      %v4064 = vpop.trf.xlu0
      %v4065 = vpop.trf.xlu0
      %4066 = vxpose.xlu0.b32.start [1/16] %v3452, 128
      %4067 = vxpose.xlu0.b32.cont [2/16] 0.0, 128
      %4068 = vxpose.xlu0.b32.cont [3/16] 0.0, 128
      %4069 = vxpose.xlu0.b32.cont [4/16] 0.0, 128
      %4070 = vxpose.xlu0.b32.cont [5/16] 0.0, 128
      %4071 = vxpose.xlu0.b32.cont [6/16] 0.0, 128
      %4072 = vxpose.xlu0.b32.cont [7/16] 0.0, 128
      %4073 = vxpose.xlu0.b32.cont [8/16] 0.0, 128
      %4074 = vxpose.xlu0.b32.cont [9/16] 0.0, 128
      %4075 = vxpose.xlu0.b32.cont [10/16] 0.0, 128
      %4076 = vxpose.xlu0.b32.cont [11/16] 0.0, 128
      %4077 = vxpose.xlu0.b32.cont [12/16] 0.0, 128
      %4078 = vxpose.xlu0.b32.cont [13/16] 0.0, 128
      %4079 = vxpose.xlu0.b32.cont [14/16] 0.0, 128
      %4080 = vxpose.xlu0.b32.cont [15/16] 0.0, 128
      %4081 = vxpose.xlu0.b32.end [16/16] 0.0, 128
      %v4082 = vpop.trf.xlu0
      %v4083 = vpop.trf.xlu0
      %v4084 = vpop.trf.xlu0
      %v4085 = vpop.trf.xlu0
      %v4086 = vpop.trf.xlu0
      %v4087 = vpop.trf.xlu0
      %v4088 = vpop.trf.xlu0
      %v4089 = vpop.trf.xlu0
      %v4090 = vpop.trf.xlu0
      %v4091 = vpop.trf.xlu0
      %v4092 = vpop.trf.xlu0
      %v4093 = vpop.trf.xlu0
      %v4094 = vpop.trf.xlu0
      %v4095 = vpop.trf.xlu0
      %v4096 = vpop.trf.xlu0
      %v4097 = vpop.trf.xlu0
      %4098 = vxpose.xlu0.b32.start [1/16] %v3435, 128
      %4099 = vxpose.xlu0.b32.cont [2/16] 0.0, 128
      %4100 = vxpose.xlu0.b32.cont [3/16] 0.0, 128
      %4101 = vxpose.xlu0.b32.cont [4/16] 0.0, 128
      %4102 = vxpose.xlu0.b32.cont [5/16] 0.0, 128
      %4103 = vxpose.xlu0.b32.cont [6/16] 0.0, 128
      %4104 = vxpose.xlu0.b32.cont [7/16] 0.0, 128
      %4105 = vxpose.xlu0.b32.cont [8/16] 0.0, 128
      %4106 = vxpose.xlu0.b32.cont [9/16] 0.0, 128
      %4107 = vxpose.xlu0.b32.cont [10/16] 0.0, 128
      %4108 = vxpose.xlu0.b32.cont [11/16] 0.0, 128
      %4109 = vxpose.xlu0.b32.cont [12/16] 0.0, 128
      %4110 = vxpose.xlu0.b32.cont [13/16] 0.0, 128
      %4111 = vxpose.xlu0.b32.cont [14/16] 0.0, 128
      %4112 = vxpose.xlu0.b32.cont [15/16] 0.0, 128
      %4113 = vxpose.xlu0.b32.end [16/16] 0.0, 128
      %v4114 = vpop.trf.xlu0
      %v4115 = vpop.trf.xlu0
      %v4116 = vpop.trf.xlu0
      %v4117 = vpop.trf.xlu0
      %v4118 = vpop.trf.xlu0
      %v4119 = vpop.trf.xlu0
      %v4120 = vpop.trf.xlu0
      %v4121 = vpop.trf.xlu0
      %v4122 = vpop.trf.xlu0
      %v4123 = vpop.trf.xlu0
      %v4124 = vpop.trf.xlu0
      %v4125 = vpop.trf.xlu0
      %v4126 = vpop.trf.xlu0
      %v4127 = vpop.trf.xlu0
      %v4128 = vpop.trf.xlu0
      %v4129 = vpop.trf.xlu0
      %4130 = vxpose.xlu0.b32.start [1/16] %v3453, 128
      %4131 = vxpose.xlu0.b32.cont [2/16] 0.0, 128
      %4132 = vxpose.xlu0.b32.cont [3/16] 0.0, 128
      %4133 = vxpose.xlu0.b32.cont [4/16] 0.0, 128
      %4134 = vxpose.xlu0.b32.cont [5/16] 0.0, 128
      %4135 = vxpose.xlu0.b32.cont [6/16] 0.0, 128
      %4136 = vxpose.xlu0.b32.cont [7/16] 0.0, 128
      %4137 = vxpose.xlu0.b32.cont [8/16] 0.0, 128
      %4138 = vxpose.xlu0.b32.cont [9/16] 0.0, 128
      %4139 = vxpose.xlu0.b32.cont [10/16] 0.0, 128
      %4140 = vxpose.xlu0.b32.cont [11/16] 0.0, 128
      %4141 = vxpose.xlu0.b32.cont [12/16] 0.0, 128
      %4142 = vxpose.xlu0.b32.cont [13/16] 0.0, 128
      %4143 = vxpose.xlu0.b32.cont [14/16] 0.0, 128
      %4144 = vxpose.xlu0.b32.cont [15/16] 0.0, 128
      %4145 = vxpose.xlu0.b32.end [16/16] 0.0, 128
      %v4146 = vpop.trf.xlu0
      %v4147 = vpop.trf.xlu0
      %v4148 = vpop.trf.xlu0
      %v4149 = vpop.trf.xlu0
      %v4150 = vpop.trf.xlu0
      %v4151 = vpop.trf.xlu0
      %v4152 = vpop.trf.xlu0
      %v4153 = vpop.trf.xlu0
      %v4154 = vpop.trf.xlu0
      %v4155 = vpop.trf.xlu0
      %v4156 = vpop.trf.xlu0
      %v4157 = vpop.trf.xlu0
      %v4158 = vpop.trf.xlu0
      %v4159 = vpop.trf.xlu0
      %v4160 = vpop.trf.xlu0
      %v4161 = vpop.trf.xlu0
      %4162 = vxpose.xlu0.b32.start [1/16] %v3444, 128
      %4163 = vxpose.xlu0.b32.cont [2/16] 0.0, 128
      %4164 = vxpose.xlu0.b32.cont [3/16] 0.0, 128
      %4165 = vxpose.xlu0.b32.cont [4/16] 0.0, 128
      %4166 = vxpose.xlu0.b32.cont [5/16] 0.0, 128
      %4167 = vxpose.xlu0.b32.cont [6/16] 0.0, 128
      %4168 = vxpose.xlu0.b32.cont [7/16] 0.0, 128
      %4169 = vxpose.xlu0.b32.cont [8/16] 0.0, 128
      %4170 = vxpose.xlu0.b32.cont [9/16] 0.0, 128
      %4171 = vxpose.xlu0.b32.cont [10/16] 0.0, 128
      %4172 = vxpose.xlu0.b32.cont [11/16] 0.0, 128
      %4173 = vxpose.xlu0.b32.cont [12/16] 0.0, 128
      %4174 = vxpose.xlu0.b32.cont [13/16] 0.0, 128
      %4175 = vxpose.xlu0.b32.cont [14/16] 0.0, 128
      %4176 = vxpose.xlu0.b32.cont [15/16] 0.0, 128
      %4177 = vxpose.xlu0.b32.end [16/16] 0.0, 128
      %v4178 = vpop.trf.xlu0
      %v4179 = vpop.trf.xlu0
      %v4180 = vpop.trf.xlu0
      %v4181 = vpop.trf.xlu0
      %v4182 = vpop.trf.xlu0
      %v4183 = vpop.trf.xlu0
      %v4184 = vpop.trf.xlu0
      %v4185 = vpop.trf.xlu0
      %v4186 = vpop.trf.xlu0
      %v4187 = vpop.trf.xlu0
      %v4188 = vpop.trf.xlu0
      %v4189 = vpop.trf.xlu0
      %v4190 = vpop.trf.xlu0
      %v4191 = vpop.trf.xlu0
      %v4192 = vpop.trf.xlu0
      %v4193 = vpop.trf.xlu0
      %4194 = vxpose.xlu0.b32.start [1/16] %v3454, 128
      %4195 = vxpose.xlu0.b32.cont [2/16] 0.0, 128
      %4196 = vxpose.xlu0.b32.cont [3/16] 0.0, 128
      %4197 = vxpose.xlu0.b32.cont [4/16] 0.0, 128
      %4198 = vxpose.xlu0.b32.cont [5/16] 0.0, 128
      %4199 = vxpose.xlu0.b32.cont [6/16] 0.0, 128
      %4200 = vxpose.xlu0.b32.cont [7/16] 0.0, 128
      %4201 = vxpose.xlu0.b32.cont [8/16] 0.0, 128
      %4202 = vxpose.xlu0.b32.cont [9/16] 0.0, 128
      %4203 = vxpose.xlu0.b32.cont [10/16] 0.0, 128
      %4204 = vxpose.xlu0.b32.cont [11/16] 0.0, 128
      %4205 = vxpose.xlu0.b32.cont [12/16] 0.0, 128
      %4206 = vxpose.xlu0.b32.cont [13/16] 0.0, 128
      %4207 = vxpose.xlu0.b32.cont [14/16] 0.0, 128
      %4208 = vxpose.xlu0.b32.cont [15/16] 0.0, 128
      %4209 = vxpose.xlu0.b32.end [16/16] 0.0, 128
      %v4210 = vpop.trf.xlu0
      %v4211 = vpop.trf.xlu0
      %v4212 = vpop.trf.xlu0
      %v4213 = vpop.trf.xlu0
      %v4214 = vpop.trf.xlu0
      %v4215 = vpop.trf.xlu0
      %v4216 = vpop.trf.xlu0
      %v4217 = vpop.trf.xlu0
      %v4218 = vpop.trf.xlu0
      %v4219 = vpop.trf.xlu0
      %v4220 = vpop.trf.xlu0
      %v4221 = vpop.trf.xlu0
      %v4222 = vpop.trf.xlu0
      %v4223 = vpop.trf.xlu0
      %v4224 = vpop.trf.xlu0
      %v4225 = vpop.trf.xlu0
      %4226 = vxpose.xlu0.b32.start [1/16] %v3451, 128
      %4227 = vxpose.xlu0.b32.cont [2/16] 0.0, 128
      %4228 = vxpose.xlu0.b32.cont [3/16] 0.0, 128
      %4229 = vxpose.xlu0.b32.cont [4/16] 0.0, 128
      %4230 = vxpose.xlu0.b32.cont [5/16] 0.0, 128
      %4231 = vxpose.xlu0.b32.cont [6/16] 0.0, 128
      %4232 = vxpose.xlu0.b32.cont [7/16] 0.0, 128
      %4233 = vxpose.xlu0.b32.cont [8/16] 0.0, 128
      %4234 = vxpose.xlu0.b32.cont [9/16] 0.0, 128
      %4235 = vxpose.xlu0.b32.cont [10/16] 0.0, 128
      %4236 = vxpose.xlu0.b32.cont [11/16] 0.0, 128
      %4237 = vxpose.xlu0.b32.cont [12/16] 0.0, 128
      %4238 = vxpose.xlu0.b32.cont [13/16] 0.0, 128
      %4239 = vxpose.xlu0.b32.cont [14/16] 0.0, 128
      %4240 = vxpose.xlu0.b32.cont [15/16] 0.0, 128
      %4241 = vxpose.xlu0.b32.end [16/16] 0.0, 128
      %v4242 = vpop.trf.xlu0
      %v4243 = vpop.trf.xlu0
      %v4244 = vpop.trf.xlu0
      %v4245 = vpop.trf.xlu0
      %v4246 = vpop.trf.xlu0
      %v4247 = vpop.trf.xlu0
      %v4248 = vpop.trf.xlu0
      %v4249 = vpop.trf.xlu0
      %v4250 = vpop.trf.xlu0
      %v4251 = vpop.trf.xlu0
      %v4252 = vpop.trf.xlu0
      %v4253 = vpop.trf.xlu0
      %v4254 = vpop.trf.xlu0
      %v4255 = vpop.trf.xlu0
      %v4256 = vpop.trf.xlu0
      %v4257 = vpop.trf.xlu0
      %4258 = vxpose.xlu0.b32.start [1/16] %v3455, 128
      %4259 = vxpose.xlu0.b32.cont [2/16] 0.0, 128
      %4260 = vxpose.xlu0.b32.cont [3/16] 0.0, 128
      %4261 = vxpose.xlu0.b32.cont [4/16] 0.0, 128
      %4262 = vxpose.xlu0.b32.cont [5/16] 0.0, 128
      %4263 = vxpose.xlu0.b32.cont [6/16] 0.0, 128
      %4264 = vxpose.xlu0.b32.cont [7/16] 0.0, 128
      %4265 = vxpose.xlu0.b32.cont [8/16] 0.0, 128
      %4266 = vxpose.xlu0.b32.cont [9/16] 0.0, 128
      %4267 = vxpose.xlu0.b32.cont [10/16] 0.0, 128
      %4268 = vxpose.xlu0.b32.cont [11/16] 0.0, 128
      %4269 = vxpose.xlu0.b32.cont [12/16] 0.0, 128
      %4270 = vxpose.xlu0.b32.cont [13/16] 0.0, 128
      %4271 = vxpose.xlu0.b32.cont [14/16] 0.0, 128
      %4272 = vxpose.xlu0.b32.cont [15/16] 0.0, 128
      %4273 = vxpose.xlu0.b32.end [16/16] 0.0, 128
      %v4274 = vpop.trf.xlu0
      %v4275 = vpop.trf.xlu0
      %v4276 = vpop.trf.xlu0
      %v4277 = vpop.trf.xlu0
      %v4278 = vpop.trf.xlu0
      %v4279 = vpop.trf.xlu0
      %v4280 = vpop.trf.xlu0
      %v4281 = vpop.trf.xlu0
      %v4282 = vpop.trf.xlu0
      %v4283 = vpop.trf.xlu0
      %v4284 = vpop.trf.xlu0
      %v4285 = vpop.trf.xlu0
      %v4286 = vpop.trf.xlu0
      %v4287 = vpop.trf.xlu0
      %v4288 = vpop.trf.xlu0
      %v4289 = vpop.trf.xlu0
      %4290 = vxpose.xlu0.b32.start [1/16] %v3494, 128
      %4291 = vxpose.xlu0.b32.cont [2/16] 0.0, 128
      %4292 = vxpose.xlu0.b32.cont [3/16] 0.0, 128
      %4293 = vxpose.xlu0.b32.cont [4/16] 0.0, 128
      %4294 = vxpose.xlu0.b32.cont [5/16] 0.0, 128
      %4295 = vxpose.xlu0.b32.cont [6/16] 0.0, 128
      %4296 = vxpose.xlu0.b32.cont [7/16] 0.0, 128
      %4297 = vxpose.xlu0.b32.cont [8/16] 0.0, 128
      %4298 = vxpose.xlu0.b32.cont [9/16] 0.0, 128
      %4299 = vxpose.xlu0.b32.cont [10/16] 0.0, 128
      %4300 = vxpose.xlu0.b32.cont [11/16] 0.0, 128
      %4301 = vxpose.xlu0.b32.cont [12/16] 0.0, 128
      %4302 = vxpose.xlu0.b32.cont [13/16] 0.0, 128
      %4303 = vxpose.xlu0.b32.cont [14/16] 0.0, 128
      %4304 = vxpose.xlu0.b32.cont [15/16] 0.0, 128
      %4305 = vxpose.xlu0.b32.end [16/16] 0.0, 128
      %v4306 = vpop.trf.xlu0
      %v4307 = vpop.trf.xlu0
      %v4308 = vpop.trf.xlu0
      %v4309 = vpop.trf.xlu0
      %v4310 = vpop.trf.xlu0
      %v4311 = vpop.trf.xlu0
      %v4312 = vpop.trf.xlu0
      %v4313 = vpop.trf.xlu0
      %v4314 = vpop.trf.xlu0
      %v4315 = vpop.trf.xlu0
      %v4316 = vpop.trf.xlu0
      %v4317 = vpop.trf.xlu0
      %v4318 = vpop.trf.xlu0
      %v4319 = vpop.trf.xlu0
      %v4320 = vpop.trf.xlu0
      %v4321 = vpop.trf.xlu0
      %4322 = vxpose.xlu0.b32.start [1/16] %v3518, 128
      %4323 = vxpose.xlu0.b32.cont [2/16] 0.0, 128
      %4324 = vxpose.xlu0.b32.cont [3/16] 0.0, 128
      %4325 = vxpose.xlu0.b32.cont [4/16] 0.0, 128
      %4326 = vxpose.xlu0.b32.cont [5/16] 0.0, 128
      %4327 = vxpose.xlu0.b32.cont [6/16] 0.0, 128
      %4328 = vxpose.xlu0.b32.cont [7/16] 0.0, 128
      %4329 = vxpose.xlu0.b32.cont [8/16] 0.0, 128
      %4330 = vxpose.xlu0.b32.cont [9/16] 0.0, 128
      %4331 = vxpose.xlu0.b32.cont [10/16] 0.0, 128
      %4332 = vxpose.xlu0.b32.cont [11/16] 0.0, 128
      %4333 = vxpose.xlu0.b32.cont [12/16] 0.0, 128
      %4334 = vxpose.xlu0.b32.cont [13/16] 0.0, 128
      %4335 = vxpose.xlu0.b32.cont [14/16] 0.0, 128
      %4336 = vxpose.xlu0.b32.cont [15/16] 0.0, 128
      %4337 = vxpose.xlu0.b32.end [16/16] 0.0, 128
      %v4338 = vpop.trf.xlu0
      %v4339 = vpop.trf.xlu0
      %v4340 = vpop.trf.xlu0
      %v4341 = vpop.trf.xlu0
      %v4342 = vpop.trf.xlu0
      %v4343 = vpop.trf.xlu0
      %v4344 = vpop.trf.xlu0
      %v4345 = vpop.trf.xlu0
      %v4346 = vpop.trf.xlu0
      %v4347 = vpop.trf.xlu0
      %v4348 = vpop.trf.xlu0
      %v4349 = vpop.trf.xlu0
      %v4350 = vpop.trf.xlu0
      %v4351 = vpop.trf.xlu0
      %v4352 = vpop.trf.xlu0
      %v4353 = vpop.trf.xlu0
      %4354 = vxpose.xlu0.b32.start [1/16] %v3501, 128
      %4355 = vxpose.xlu0.b32.cont [2/16] 0.0, 128
      %4356 = vxpose.xlu0.b32.cont [3/16] 0.0, 128
      %4357 = vxpose.xlu0.b32.cont [4/16] 0.0, 128
      %4358 = vxpose.xlu0.b32.cont [5/16] 0.0, 128
      %4359 = vxpose.xlu0.b32.cont [6/16] 0.0, 128
      %4360 = vxpose.xlu0.b32.cont [7/16] 0.0, 128
      %4361 = vxpose.xlu0.b32.cont [8/16] 0.0, 128
      %4362 = vxpose.xlu0.b32.cont [9/16] 0.0, 128
      %4363 = vxpose.xlu0.b32.cont [10/16] 0.0, 128
      %4364 = vxpose.xlu0.b32.cont [11/16] 0.0, 128
      %4365 = vxpose.xlu0.b32.cont [12/16] 0.0, 128
      %4366 = vxpose.xlu0.b32.cont [13/16] 0.0, 128
      %4367 = vxpose.xlu0.b32.cont [14/16] 0.0, 128
      %4368 = vxpose.xlu0.b32.cont [15/16] 0.0, 128
      %4369 = vxpose.xlu0.b32.end [16/16] 0.0, 128
      %v4370 = vpop.trf.xlu0
      %v4371 = vpop.trf.xlu0
      %v4372 = vpop.trf.xlu0
      %v4373 = vpop.trf.xlu0
      %v4374 = vpop.trf.xlu0
      %v4375 = vpop.trf.xlu0
      %v4376 = vpop.trf.xlu0
      %v4377 = vpop.trf.xlu0
      %v4378 = vpop.trf.xlu0
      %v4379 = vpop.trf.xlu0
      %v4380 = vpop.trf.xlu0
      %v4381 = vpop.trf.xlu0
      %v4382 = vpop.trf.xlu0
      %v4383 = vpop.trf.xlu0
      %v4384 = vpop.trf.xlu0
      %v4385 = vpop.trf.xlu0
      %4386 = vxpose.xlu0.b32.start [1/16] %v3519, 128
      %4387 = vxpose.xlu0.b32.cont [2/16] 0.0, 128
      %4388 = vxpose.xlu0.b32.cont [3/16] 0.0, 128
      %4389 = vxpose.xlu0.b32.cont [4/16] 0.0, 128
      %4390 = vxpose.xlu0.b32.cont [5/16] 0.0, 128
      %4391 = vxpose.xlu0.b32.cont [6/16] 0.0, 128
      %4392 = vxpose.xlu0.b32.cont [7/16] 0.0, 128
      %4393 = vxpose.xlu0.b32.cont [8/16] 0.0, 128
      %4394 = vxpose.xlu0.b32.cont [9/16] 0.0, 128
      %4395 = vxpose.xlu0.b32.cont [10/16] 0.0, 128
      %4396 = vxpose.xlu0.b32.cont [11/16] 0.0, 128
      %4397 = vxpose.xlu0.b32.cont [12/16] 0.0, 128
      %4398 = vxpose.xlu0.b32.cont [13/16] 0.0, 128
      %4399 = vxpose.xlu0.b32.cont [14/16] 0.0, 128
      %4400 = vxpose.xlu0.b32.cont [15/16] 0.0, 128
      %4401 = vxpose.xlu0.b32.end [16/16] 0.0, 128
      %v4402 = vpop.trf.xlu0
      %v4403 = vpop.trf.xlu0
      %v4404 = vpop.trf.xlu0
      %v4405 = vpop.trf.xlu0
      %v4406 = vpop.trf.xlu0
      %v4407 = vpop.trf.xlu0
      %v4408 = vpop.trf.xlu0
      %v4409 = vpop.trf.xlu0
      %v4410 = vpop.trf.xlu0
      %v4411 = vpop.trf.xlu0
      %v4412 = vpop.trf.xlu0
      %v4413 = vpop.trf.xlu0
      %v4414 = vpop.trf.xlu0
      %v4415 = vpop.trf.xlu0
      %v4416 = vpop.trf.xlu0
      %v4417 = vpop.trf.xlu0
      %4418 = vxpose.xlu0.b32.start [1/16] %v3510, 128
      %4419 = vxpose.xlu0.b32.cont [2/16] 0.0, 128
      %4420 = vxpose.xlu0.b32.cont [3/16] 0.0, 128
      %4421 = vxpose.xlu0.b32.cont [4/16] 0.0, 128
      %4422 = vxpose.xlu0.b32.cont [5/16] 0.0, 128
      %4423 = vxpose.xlu0.b32.cont [6/16] 0.0, 128
      %4424 = vxpose.xlu0.b32.cont [7/16] 0.0, 128
      %4425 = vxpose.xlu0.b32.cont [8/16] 0.0, 128
      %4426 = vxpose.xlu0.b32.cont [9/16] 0.0, 128
      %4427 = vxpose.xlu0.b32.cont [10/16] 0.0, 128
      %4428 = vxpose.xlu0.b32.cont [11/16] 0.0, 128
      %4429 = vxpose.xlu0.b32.cont [12/16] 0.0, 128
      %4430 = vxpose.xlu0.b32.cont [13/16] 0.0, 128
      %4431 = vxpose.xlu0.b32.cont [14/16] 0.0, 128
      %4432 = vxpose.xlu0.b32.cont [15/16] 0.0, 128
      %4433 = vxpose.xlu0.b32.end [16/16] 0.0, 128
      %v4434 = vpop.trf.xlu0
      %v4435 = vpop.trf.xlu0
      %v4436 = vpop.trf.xlu0
      %v4437 = vpop.trf.xlu0
      %v4438 = vpop.trf.xlu0
      %v4439 = vpop.trf.xlu0
      %v4440 = vpop.trf.xlu0
      %v4441 = vpop.trf.xlu0
      %v4442 = vpop.trf.xlu0
      %v4443 = vpop.trf.xlu0
      %v4444 = vpop.trf.xlu0
      %v4445 = vpop.trf.xlu0
      %v4446 = vpop.trf.xlu0
      %v4447 = vpop.trf.xlu0
      %v4448 = vpop.trf.xlu0
      %v4449 = vpop.trf.xlu0
      %4450 = vxpose.xlu0.b32.start [1/16] %v3520, 128
      %4451 = vxpose.xlu0.b32.cont [2/16] 0.0, 128
      %4452 = vxpose.xlu0.b32.cont [3/16] 0.0, 128
      %4453 = vxpose.xlu0.b32.cont [4/16] 0.0, 128
      %4454 = vxpose.xlu0.b32.cont [5/16] 0.0, 128
      %4455 = vxpose.xlu0.b32.cont [6/16] 0.0, 128
      %4456 = vxpose.xlu0.b32.cont [7/16] 0.0, 128
      %4457 = vxpose.xlu0.b32.cont [8/16] 0.0, 128
      %4458 = vxpose.xlu0.b32.cont [9/16] 0.0, 128
      %4459 = vxpose.xlu0.b32.cont [10/16] 0.0, 128
      %4460 = vxpose.xlu0.b32.cont [11/16] 0.0, 128
      %4461 = vxpose.xlu0.b32.cont [12/16] 0.0, 128
      %4462 = vxpose.xlu0.b32.cont [13/16] 0.0, 128
      %4463 = vxpose.xlu0.b32.cont [14/16] 0.0, 128
      %4464 = vxpose.xlu0.b32.cont [15/16] 0.0, 128
      %4465 = vxpose.xlu0.b32.end [16/16] 0.0, 128
      %v4466 = vpop.trf.xlu0
      %v4467 = vpop.trf.xlu0
      %v4468 = vpop.trf.xlu0
      %v4469 = vpop.trf.xlu0
      %v4470 = vpop.trf.xlu0
      %v4471 = vpop.trf.xlu0
      %v4472 = vpop.trf.xlu0
      %v4473 = vpop.trf.xlu0
      %v4474 = vpop.trf.xlu0
      %v4475 = vpop.trf.xlu0
      %v4476 = vpop.trf.xlu0
      %v4477 = vpop.trf.xlu0
      %v4478 = vpop.trf.xlu0
      %v4479 = vpop.trf.xlu0
      %v4480 = vpop.trf.xlu0
      %v4481 = vpop.trf.xlu0
      %4482 = vxpose.xlu0.b32.start [1/16] %v3517, 128
      %4483 = vxpose.xlu0.b32.cont [2/16] 0.0, 128
      %4484 = vxpose.xlu0.b32.cont [3/16] 0.0, 128
      %4485 = vxpose.xlu0.b32.cont [4/16] 0.0, 128
      %4486 = vxpose.xlu0.b32.cont [5/16] 0.0, 128
      %4487 = vxpose.xlu0.b32.cont [6/16] 0.0, 128
      %4488 = vxpose.xlu0.b32.cont [7/16] 0.0, 128
      %4489 = vxpose.xlu0.b32.cont [8/16] 0.0, 128
      %4490 = vxpose.xlu0.b32.cont [9/16] 0.0, 128
      %4491 = vxpose.xlu0.b32.cont [10/16] 0.0, 128
      %4492 = vxpose.xlu0.b32.cont [11/16] 0.0, 128
      %4493 = vxpose.xlu0.b32.cont [12/16] 0.0, 128
      %4494 = vxpose.xlu0.b32.cont [13/16] 0.0, 128
      %4495 = vxpose.xlu0.b32.cont [14/16] 0.0, 128
      %4496 = vxpose.xlu0.b32.cont [15/16] 0.0, 128
      %4497 = vxpose.xlu0.b32.end [16/16] 0.0, 128
      %v4498 = vpop.trf.xlu0
      %v4499 = vpop.trf.xlu0
      %v4500 = vpop.trf.xlu0
      %v4501 = vpop.trf.xlu0
      %v4502 = vpop.trf.xlu0
      %v4503 = vpop.trf.xlu0
      %v4504 = vpop.trf.xlu0
      %v4505 = vpop.trf.xlu0
      %v4506 = vpop.trf.xlu0
      %v4507 = vpop.trf.xlu0
      %v4508 = vpop.trf.xlu0
      %v4509 = vpop.trf.xlu0
      %v4510 = vpop.trf.xlu0
      %v4511 = vpop.trf.xlu0
      %v4512 = vpop.trf.xlu0
      %v4513 = vpop.trf.xlu0
      %4514 = vxpose.xlu0.b32.start [1/16] %v3521, 128
      %4515 = vxpose.xlu0.b32.cont [2/16] 0.0, 128
      %4516 = vxpose.xlu0.b32.cont [3/16] 0.0, 128
      %4517 = vxpose.xlu0.b32.cont [4/16] 0.0, 128
      %4518 = vxpose.xlu0.b32.cont [5/16] 0.0, 128
      %4519 = vxpose.xlu0.b32.cont [6/16] 0.0, 128
      %4520 = vxpose.xlu0.b32.cont [7/16] 0.0, 128
      %4521 = vxpose.xlu0.b32.cont [8/16] 0.0, 128
      %4522 = vxpose.xlu0.b32.cont [9/16] 0.0, 128
      %4523 = vxpose.xlu0.b32.cont [10/16] 0.0, 128
      %4524 = vxpose.xlu0.b32.cont [11/16] 0.0, 128
      %4525 = vxpose.xlu0.b32.cont [12/16] 0.0, 128
      %4526 = vxpose.xlu0.b32.cont [13/16] 0.0, 128
      %4527 = vxpose.xlu0.b32.cont [14/16] 0.0, 128
      %4528 = vxpose.xlu0.b32.cont [15/16] 0.0, 128
      %4529 = vxpose.xlu0.b32.end [16/16] 0.0, 128
      %v4530 = vpop.trf.xlu0
      %v4531 = vpop.trf.xlu0
      %v4532 = vpop.trf.xlu0
      %v4533 = vpop.trf.xlu0
      %v4534 = vpop.trf.xlu0
      %v4535 = vpop.trf.xlu0
      %v4536 = vpop.trf.xlu0
      %v4537 = vpop.trf.xlu0
      %v4538 = vpop.trf.xlu0
      %v4539 = vpop.trf.xlu0
      %v4540 = vpop.trf.xlu0
      %v4541 = vpop.trf.xlu0
      %v4542 = vpop.trf.xlu0
      %v4543 = vpop.trf.xlu0
      %v4544 = vpop.trf.xlu0
      %v4545 = vpop.trf.xlu0
      %v4546 = vcombine.low %v3538, %v3602
      %v4548 = vunpack.c.l.s4 1983009808
      %v4549 = vunpack.c.0.s8 %v4548
      %v4550 = vlaneseq
      %v4551 = vshrl.u32 %v4550, 7
      %v4552 = vsub.s32 %v4549, %v4551
      %v4553 = vrot.slane %v4546, %v4552
      %v4554 = vcombine.low %v3570, %v3634
      %v4556 = vunpack.c.l.s4 1983009808
      %v4557 = vunpack.c.0.s8 %v4556
      %v4558 = vlaneseq
      %v4559 = vshrl.u32 %v4558, 7
      %v4560 = vsub.s32 %v4557, %v4559
      %v4561 = vrot.slane %v4554, %v4560
      %v4562 = vcombine.low %v3666, %v3730
      %v4564 = vunpack.c.l.s4 1983009808
      %v4565 = vunpack.c.0.s8 %v4564
      %v4566 = vlaneseq
      %v4567 = vshrl.u32 %v4566, 7
      %v4568 = vsub.s32 %v4565, %v4567
      %v4569 = vrot.slane %v4562, %v4568
      %v4570 = vcombine.low %v3698, %v3762
      %v4572 = vunpack.c.l.s4 1983009808
      %v4573 = vunpack.c.0.s8 %v4572
      %v4574 = vlaneseq
      %v4575 = vshrl.u32 %v4574, 7
      %v4576 = vsub.s32 %v4573, %v4575
      %v4577 = vrot.slane %v4570, %v4576
      %v4578 = vcombine.low %v4553, %v4561
      %v4580 = vunpack.c.l.s4 1934713408
      %v4581 = vunpack.c.0.s8 %v4580
      %v4582 = vlaneseq
      %v4583 = vshrl.u32 %v4582, 7
      %v4584 = vsub.s32 %v4581, %v4583
      %v4585 = vrot.slane %v4578, %v4584
      %v4586 = vcombine.low %v4569, %v4577
      %v4588 = vunpack.c.l.s4 1934713408
      %v4589 = vunpack.c.0.s8 %v4588
      %v4590 = vlaneseq
      %v4591 = vshrl.u32 %v4590, 7
      %v4592 = vsub.s32 %v4589, %v4591
      %v4593 = vrot.slane %v4586, %v4592
      %v4594 = vcombine.low %v4585, %v4593
      %v4595 = vcombine.high %v4585, %v4593
      %v4596 = vcombine.low %v3794, %v3858
      %v4598 = vunpack.c.l.s4 1983009808
      %v4599 = vunpack.c.0.s8 %v4598
      %v4600 = vlaneseq
      %v4601 = vshrl.u32 %v4600, 7
      %v4602 = vsub.s32 %v4599, %v4601
      %v4603 = vrot.slane %v4596, %v4602
      %v4604 = vcombine.low %v3826, %v3890
      %v4606 = vunpack.c.l.s4 1983009808
      %v4607 = vunpack.c.0.s8 %v4606
      %v4608 = vlaneseq
      %v4609 = vshrl.u32 %v4608, 7
      %v4610 = vsub.s32 %v4607, %v4609
      %v4611 = vrot.slane %v4604, %v4610
      %v4612 = vcombine.low %v3922, %v3986
      %v4614 = vunpack.c.l.s4 1983009808
      %v4615 = vunpack.c.0.s8 %v4614
      %v4616 = vlaneseq
      %v4617 = vshrl.u32 %v4616, 7
      %v4618 = vsub.s32 %v4615, %v4617
      %v4619 = vrot.slane %v4612, %v4618
      %v4620 = vcombine.low %v3954, %v4018
      %v4622 = vunpack.c.l.s4 1983009808
      %v4623 = vunpack.c.0.s8 %v4622
      %v4624 = vlaneseq
      %v4625 = vshrl.u32 %v4624, 7
      %v4626 = vsub.s32 %v4623, %v4625
      %v4627 = vrot.slane %v4620, %v4626
      %v4628 = vcombine.low %v4603, %v4611
      %v4630 = vunpack.c.l.s4 1934713408
      %v4631 = vunpack.c.0.s8 %v4630
      %v4632 = vlaneseq
      %v4633 = vshrl.u32 %v4632, 7
      %v4634 = vsub.s32 %v4631, %v4633
      %v4635 = vrot.slane %v4628, %v4634
      %v4636 = vcombine.low %v4619, %v4627
      %v4638 = vunpack.c.l.s4 1934713408
      %v4639 = vunpack.c.0.s8 %v4638
      %v4640 = vlaneseq
      %v4641 = vshrl.u32 %v4640, 7
      %v4642 = vsub.s32 %v4639, %v4641
      %v4643 = vrot.slane %v4636, %v4642
      %v4644 = vcombine.low %v4635, %v4643
      %v4645 = vcombine.high %v4635, %v4643
      %v4646 = vcombine.low %v4050, %v4114
      %v4648 = vunpack.c.l.s4 1983009808
      %v4649 = vunpack.c.0.s8 %v4648
      %v4650 = vlaneseq
      %v4651 = vshrl.u32 %v4650, 7
      %v4652 = vsub.s32 %v4649, %v4651
      %v4653 = vrot.slane %v4646, %v4652
      %v4654 = vcombine.low %v4082, %v4146
      %v4656 = vunpack.c.l.s4 1983009808
      %v4657 = vunpack.c.0.s8 %v4656
      %v4658 = vlaneseq
      %v4659 = vshrl.u32 %v4658, 7
      %v4660 = vsub.s32 %v4657, %v4659
      %v4661 = vrot.slane %v4654, %v4660
      %v4662 = vcombine.low %v4178, %v4242
      %v4664 = vunpack.c.l.s4 1983009808
      %v4665 = vunpack.c.0.s8 %v4664
      %v4666 = vlaneseq
      %v4667 = vshrl.u32 %v4666, 7
      %v4668 = vsub.s32 %v4665, %v4667
      %v4669 = vrot.slane %v4662, %v4668
      %v4670 = vcombine.low %v4210, %v4274
      %v4672 = vunpack.c.l.s4 1983009808
      %v4673 = vunpack.c.0.s8 %v4672
      %v4674 = vlaneseq
      %v4675 = vshrl.u32 %v4674, 7
      %v4676 = vsub.s32 %v4673, %v4675
      %v4677 = vrot.slane %v4670, %v4676
      %v4678 = vcombine.low %v4653, %v4661
      %v4680 = vunpack.c.l.s4 1934713408
      %v4681 = vunpack.c.0.s8 %v4680
      %v4682 = vlaneseq
      %v4683 = vshrl.u32 %v4682, 7
      %v4684 = vsub.s32 %v4681, %v4683
      %v4685 = vrot.slane %v4678, %v4684
      %v4686 = vcombine.low %v4669, %v4677
      %v4688 = vunpack.c.l.s4 1934713408
      %v4689 = vunpack.c.0.s8 %v4688
      %v4690 = vlaneseq
      %v4691 = vshrl.u32 %v4690, 7
      %v4692 = vsub.s32 %v4689, %v4691
      %v4693 = vrot.slane %v4686, %v4692
      %v4694 = vcombine.low %v4685, %v4693
      %v4695 = vcombine.high %v4685, %v4693
      %v4696 = vcombine.low %v4306, %v4370
      %v4698 = vunpack.c.l.s4 1983009808
      %v4699 = vunpack.c.0.s8 %v4698
      %v4700 = vlaneseq
      %v4701 = vshrl.u32 %v4700, 7
      %v4702 = vsub.s32 %v4699, %v4701
      %v4703 = vrot.slane %v4696, %v4702
      %v4704 = vcombine.low %v4338, %v4402
      %v4706 = vunpack.c.l.s4 1983009808
      %v4707 = vunpack.c.0.s8 %v4706
      %v4708 = vlaneseq
      %v4709 = vshrl.u32 %v4708, 7
      %v4710 = vsub.s32 %v4707, %v4709
      %v4711 = vrot.slane %v4704, %v4710
      %v4712 = vcombine.low %v4434, %v4498
      %v4714 = vunpack.c.l.s4 1983009808
      %v4715 = vunpack.c.0.s8 %v4714
      %v4716 = vlaneseq
      %v4717 = vshrl.u32 %v4716, 7
      %v4718 = vsub.s32 %v4715, %v4717
      %v4719 = vrot.slane %v4712, %v4718
      %v4720 = vcombine.low %v4466, %v4530
      %v4722 = vunpack.c.l.s4 1983009808
      %v4723 = vunpack.c.0.s8 %v4722
      %v4724 = vlaneseq
      %v4725 = vshrl.u32 %v4724, 7
      %v4726 = vsub.s32 %v4723, %v4725
      %v4727 = vrot.slane %v4720, %v4726
      %v4728 = vcombine.low %v4703, %v4711
      %v4730 = vunpack.c.l.s4 1934713408
      %v4731 = vunpack.c.0.s8 %v4730
      %v4732 = vlaneseq
      %v4733 = vshrl.u32 %v4732, 7
      %v4734 = vsub.s32 %v4731, %v4733
      %v4735 = vrot.slane %v4728, %v4734
      %v4736 = vcombine.low %v4719, %v4727
      %v4738 = vunpack.c.l.s4 1934713408
      %v4739 = vunpack.c.0.s8 %v4738
      %v4740 = vlaneseq
      %v4741 = vshrl.u32 %v4740, 7
      %v4742 = vsub.s32 %v4739, %v4741
      %v4743 = vrot.slane %v4736, %v4742
      %v4744 = vcombine.low %v4735, %v4743
      %v4745 = vcombine.high %v4735, %v4743
      %v4747 = vsel %vm48, %v3142, 0
      %v4750 = vsel %vm48, %v3192, 0
      %4752 = vmatprep.subr.mxu0 0.0
      %4753 = vmatpush1.msra.mxu0 0.0
      %4754 = vmatprep.subr.mxu0 0.0
      %4755 = vmatpush1.msra.mxu0 0.0
      %4756 = vmatprep.subr.mxu0 0.0
      %4757 = vmatpush1.msra.mxu0 0.0
      %4758 = vmatprep.subr.mxu0 0.0
      %4759 = vmatpush1.msra.mxu0 0.0
      %4760 = vmatprep.subr.mxu0 0.0
      %4761 = vmatpush1.msra.mxu0 0.0
      %4762 = vmatprep.subr.mxu0 0.0
      %4763 = vmatpush1.msra.mxu0 0.0
      %4764 = vmatprep.subr.mxu0 0.0
      %4765 = vmatpush1.msra.mxu0 0.0
      %4766 = vmatprep.subr.mxu0 0.0
      %4767 = vmatpush1.msra.mxu0 0.0
      %4768 = vmatprep.subr.mxu0 0.0
      %4769 = vmatpush1.msra.mxu0 0.0
      %4770 = vmatprep.subr.mxu0 0.0
      %4771 = vmatpush1.msra.mxu0 0.0
      %4772 = vmatprep.subr.mxu0 0.0
      %4773 = vmatpush1.msra.mxu0 0.0
      %4774 = vmatprep.subr.mxu0 0.0
      %4775 = vmatpush1.msra.mxu0 0.0
      %4776 = vmatprep.subr.mxu0 0.0
      %4777 = vmatpush1.msra.mxu0 %v4744
      %4778 = vmatprep.subr.mxu0 0.0
      %4779 = vmatpush1.msra.mxu0 %v4694
      %4780 = vmatprep.subr.mxu0 0.0
      %4781 = vmatpush1.msra.mxu0 %v4644
      %4782 = vmatprep.subr.mxu0 0.0
      %4783 = vmatpush1.msra.mxu0 %v4594
      %4784 = vmatprep.subr.mxu0 0.0
      %4785 = vmatpush2.msra.mxu0 0.0
      %4786 = vmatprep.subr.mxu0 0.0
      %4787 = vmatpush2.msra.mxu0 0.0
      %4788 = vmatprep.subr.mxu0 0.0
      %4789 = vmatpush2.msra.mxu0 0.0
      %4790 = vmatprep.subr.mxu0 0.0
      %4791 = vmatpush2.msra.mxu0 0.0
      %4792 = vmatprep.subr.mxu0 0.0
      %4793 = vmatpush2.msra.mxu0 0.0
      %4794 = vmatprep.subr.mxu0 0.0
      %4795 = vmatpush2.msra.mxu0 0.0
      %4796 = vmatprep.subr.mxu0 0.0
      %4797 = vmatpush2.msra.mxu0 0.0
      %4798 = vmatprep.subr.mxu0 0.0
      %4799 = vmatpush2.msra.mxu0 0.0
      %4800 = vmatprep.subr.mxu0 0.0
      %4801 = vmatpush2.msra.mxu0 0.0
      %4802 = vmatprep.subr.mxu0 0.0
      %4803 = vmatpush2.msra.mxu0 0.0
      %4804 = vmatprep.subr.mxu0 0.0
      %4805 = vmatpush2.msra.mxu0 0.0
      %4806 = vmatprep.subr.mxu0 0.0
      %4807 = vmatpush2.msra.mxu0 0.0
      %4808 = vmatprep.subr.mxu0 0.0
      %4809 = vmatpush2.msra.mxu0 0.0
      %4810 = vmatprep.subr.mxu0 0.0
      %4811 = vmatpush2.msra.mxu0 0.0
      %4812 = vmatprep.subr.mxu0 0.0
      %4813 = vmatpush2.msra.mxu0 0.0
      %4814 = vmatprep.subr.mxu0 0.0
      %4815 = vmatpush2.msra.mxu0 0.0
      %4816 = vmatprep.mubr.f32.mxu0 0.0
      %4817 = vmatmul.mubr.f32.gmra.mxu0 %v4747
      %v4818 = vpop.f32.mrf.mxu0
      %v4819 = vadd.f32 0.0, %v4818
      %v4820 = vpop.f32.mrf.mxu0
      %4821 = vmatprep.mubr.f32.mxu0 0.0
      %4822 = vmatmul.mubr.f32.gmra.mxu0 %v4750
      %v4823 = vpop.f32.mrf.mxu0
      %v4824 = vadd.f32 0.0, %v4823
      %v4825 = vpop.f32.mrf.mxu0
      %4826 = vdwg.mxu0
      %v4828 = vsel %vm48, %v3143, 0
      %v4831 = vsel %vm48, %v3193, 0
      %4833 = vmatprep.subr.mxu0 0.0
      %4834 = vmatpush1.msra.mxu0 0.0
      %4835 = vmatprep.subr.mxu0 0.0
      %4836 = vmatpush1.msra.mxu0 0.0
      %4837 = vmatprep.subr.mxu0 0.0
      %4838 = vmatpush1.msra.mxu0 0.0
      %4839 = vmatprep.subr.mxu0 0.0
      %4840 = vmatpush1.msra.mxu0 0.0
      %4841 = vmatprep.subr.mxu0 0.0
      %4842 = vmatpush1.msra.mxu0 0.0
      %4843 = vmatprep.subr.mxu0 0.0
      %4844 = vmatpush1.msra.mxu0 0.0
      %4845 = vmatprep.subr.mxu0 0.0
      %4846 = vmatpush1.msra.mxu0 0.0
      %4847 = vmatprep.subr.mxu0 0.0
      %4848 = vmatpush1.msra.mxu0 0.0
      %4849 = vmatprep.subr.mxu0 0.0
      %4850 = vmatpush1.msra.mxu0 0.0
      %4851 = vmatprep.subr.mxu0 0.0
      %4852 = vmatpush1.msra.mxu0 0.0
      %4853 = vmatprep.subr.mxu0 0.0
      %4854 = vmatpush1.msra.mxu0 0.0
      %4855 = vmatprep.subr.mxu0 0.0
      %4856 = vmatpush1.msra.mxu0 0.0
      %4857 = vmatprep.subr.mxu0 0.0
      %4858 = vmatpush1.msra.mxu0 %v4745
      %4859 = vmatprep.subr.mxu0 0.0
      %4860 = vmatpush1.msra.mxu0 %v4695
      %4861 = vmatprep.subr.mxu0 0.0
      %4862 = vmatpush1.msra.mxu0 %v4645
      %4863 = vmatprep.subr.mxu0 0.0
      %4864 = vmatpush1.msra.mxu0 %v4595
      %4865 = vmatprep.subr.mxu0 0.0
      %4866 = vmatpush2.msra.mxu0 0.0
      %4867 = vmatprep.subr.mxu0 0.0
      %4868 = vmatpush2.msra.mxu0 0.0
      %4869 = vmatprep.subr.mxu0 0.0
      %4870 = vmatpush2.msra.mxu0 0.0
      %4871 = vmatprep.subr.mxu0 0.0
      %4872 = vmatpush2.msra.mxu0 0.0
      %4873 = vmatprep.subr.mxu0 0.0
      %4874 = vmatpush2.msra.mxu0 0.0
      %4875 = vmatprep.subr.mxu0 0.0
      %4876 = vmatpush2.msra.mxu0 0.0
      %4877 = vmatprep.subr.mxu0 0.0
      %4878 = vmatpush2.msra.mxu0 0.0
      %4879 = vmatprep.subr.mxu0 0.0
      %4880 = vmatpush2.msra.mxu0 0.0
      %4881 = vmatprep.subr.mxu0 0.0
      %4882 = vmatpush2.msra.mxu0 0.0
      %4883 = vmatprep.subr.mxu0 0.0
      %4884 = vmatpush2.msra.mxu0 0.0
      %4885 = vmatprep.subr.mxu0 0.0
      %4886 = vmatpush2.msra.mxu0 0.0
      %4887 = vmatprep.subr.mxu0 0.0
      %4888 = vmatpush2.msra.mxu0 0.0
      %4889 = vmatprep.subr.mxu0 0.0
      %4890 = vmatpush2.msra.mxu0 0.0
      %4891 = vmatprep.subr.mxu0 0.0
      %4892 = vmatpush2.msra.mxu0 0.0
      %4893 = vmatprep.subr.mxu0 0.0
      %4894 = vmatpush2.msra.mxu0 0.0
      %4895 = vmatprep.subr.mxu0 0.0
      %4896 = vmatpush2.msra.mxu0 0.0
      %4897 = vmatprep.mubr.f32.mxu0 0.0
      %4898 = vmatmul.mubr.f32.gmra.mxu0 %v4828
      %v4899 = vpop.f32.mrf.mxu0
      %v4900 = vadd.f32 0.0, %v4899
      %v4901 = vpop.f32.mrf.mxu0
      %4902 = vmatprep.mubr.f32.mxu0 0.0
      %4903 = vmatmul.mubr.f32.gmra.mxu0 %v4831
      %v4904 = vpop.f32.mrf.mxu0
      %v4905 = vadd.f32 0.0, %v4904
      %v4906 = vpop.f32.mrf.mxu0
      %4907 = vdwg.mxu0
      %4908 = vxpose.xlu0.b32.start [1/16] %v4819, 128
      %4909 = vxpose.xlu0.b32.cont [2/16] %v4824, 128
      %4910 = vxpose.xlu0.b32.cont [3/16] 0.0, 128
      %4911 = vxpose.xlu0.b32.cont [4/16] 0.0, 128
      %4912 = vxpose.xlu0.b32.cont [5/16] 0.0, 128
      %4913 = vxpose.xlu0.b32.cont [6/16] 0.0, 128
      %4914 = vxpose.xlu0.b32.cont [7/16] 0.0, 128
      %4915 = vxpose.xlu0.b32.cont [8/16] 0.0, 128
      %4916 = vxpose.xlu0.b32.cont [9/16] 0.0, 128
      %4917 = vxpose.xlu0.b32.cont [10/16] 0.0, 128
      %4918 = vxpose.xlu0.b32.cont [11/16] 0.0, 128
      %4919 = vxpose.xlu0.b32.cont [12/16] 0.0, 128
      %4920 = vxpose.xlu0.b32.cont [13/16] 0.0, 128
      %4921 = vxpose.xlu0.b32.cont [14/16] 0.0, 128
      %4922 = vxpose.xlu0.b32.cont [15/16] 0.0, 128
      %4923 = vxpose.xlu0.b32.end [16/16] 0.0, 128
      %v4924 = vpop.trf.xlu0
      %v4925 = vpop.trf.xlu0
      %v4926 = vpop.trf.xlu0
      %v4927 = vpop.trf.xlu0
      %v4928 = vpop.trf.xlu0
      %v4929 = vpop.trf.xlu0
      %v4930 = vpop.trf.xlu0
      %v4931 = vpop.trf.xlu0
      %v4932 = vpop.trf.xlu0
      %v4933 = vpop.trf.xlu0
      %v4934 = vpop.trf.xlu0
      %v4935 = vpop.trf.xlu0
      %v4936 = vpop.trf.xlu0
      %v4937 = vpop.trf.xlu0
      %v4938 = vpop.trf.xlu0
      %v4939 = vpop.trf.xlu0
      %4940 = vxpose.xlu0.b32.start [1/16] %v4900, 128
      %4941 = vxpose.xlu0.b32.cont [2/16] %v4905, 128
      %4942 = vxpose.xlu0.b32.cont [3/16] 0.0, 128
      %4943 = vxpose.xlu0.b32.cont [4/16] 0.0, 128
      %4944 = vxpose.xlu0.b32.cont [5/16] 0.0, 128
      %4945 = vxpose.xlu0.b32.cont [6/16] 0.0, 128
      %4946 = vxpose.xlu0.b32.cont [7/16] 0.0, 128
      %4947 = vxpose.xlu0.b32.cont [8/16] 0.0, 128
      %4948 = vxpose.xlu0.b32.cont [9/16] 0.0, 128
      %4949 = vxpose.xlu0.b32.cont [10/16] 0.0, 128
      %4950 = vxpose.xlu0.b32.cont [11/16] 0.0, 128
      %4951 = vxpose.xlu0.b32.cont [12/16] 0.0, 128
      %4952 = vxpose.xlu0.b32.cont [13/16] 0.0, 128
      %4953 = vxpose.xlu0.b32.cont [14/16] 0.0, 128
      %4954 = vxpose.xlu0.b32.cont [15/16] 0.0, 128
      %4955 = vxpose.xlu0.b32.end [16/16] 0.0, 128
      %v4956 = vpop.trf.xlu0
      %v4957 = vpop.trf.xlu0
      %v4958 = vpop.trf.xlu0
      %v4959 = vpop.trf.xlu0
      %v4960 = vpop.trf.xlu0
      %v4961 = vpop.trf.xlu0
      %v4962 = vpop.trf.xlu0
      %v4963 = vpop.trf.xlu0
      %v4964 = vpop.trf.xlu0
      %v4965 = vpop.trf.xlu0
      %v4966 = vpop.trf.xlu0
      %v4967 = vpop.trf.xlu0
      %v4968 = vpop.trf.xlu0
      %v4969 = vpop.trf.xlu0
      %v4970 = vpop.trf.xlu0
      %v4971 = vpop.trf.xlu0
      %v4972 = vcombine.low %v4924, %v4956
      %v4974 = vunpack.c.l.s4 1934713408
      %v4975 = vunpack.c.0.s8 %v4974
      %v4976 = vlaneseq
      %v4977 = vshrl.u32 %v4976, 7
      %v4978 = vsub.s32 %v4975, %v4977
      %v4979 = vrot.slane %v4972, %v4978
      %v4980 = vcombine.high %v4979, 0.0
      %v4981 = vcombine.low %v4979, %v4980
      %v4983 = vunpack.c.l.s4 1934713408
      %v4984 = vunpack.c.0.s8 %v4983
      %v4985 = vlaneseq
      %v4986 = vshrl.u32 %v4985, 7
      %v4987 = vsub.s32 %v4984, %v4986
      %v4988 = vrot.slane %v4981, %v4987
      %v4989 = vcombine.high %v4988, 0.0
      %4991 = vrot.lane.b32.xlu0 %v4989, 16
      %v4992 = vpop.permute.xlu0 %4991
      %vm4994 = vcmask 130048
      %v4995 = vsel %vm4994, %v4988, %v4992
      %v4996 = vld [vmem:[%s5] sm:$0x1]
      %v4998 = vlaneseq
      %v4999 = vshrl.u32 %v4998, 7
      %v5000 = vsub.s32 0, %v4999
      %v5001 = vrot.slane %v4996, %v5000
      %v5003 = vadd.f32 %v4995, %v5001
      %v5004 = vld [vmem:[%s0] sm:$0x3]
      %v5005 = vadd.f32 %v5003, %v5004
      %v5006 = vsel %vm412, %v5005, 0.0
      %5007 = vadd.xlane.f32.xlu0 %v5006
      %v5008 = vpop.xlane.xlu0 %5007
      %v5009 = vrcp.pop 32.0
      %v5010 = vmul.f32 %v5008, %v5009
      %v5011 = vsub.f32 %v5005, %v5010
      %v5012 = vmul.f32 %v5011, %v5011
      %v5013 = vsel %vm412, %v5012, 0.0
      %5014 = vadd.xlane.f32.xlu0 %v5013
      %v5015 = vpop.xlane.xlu0 %5014
      %v5016 = vmul.f32 %v5015, %v5009
      %v5017 = vadd.f32 %v5016, 1e-05
      %v5018 = vrsqrt.pop %v5017
      %v5019 = vmul.f32 %v5011, %v5018
      %v5020 = vld [vmem:[%s6] sm:$0x1]
      %v5022 = vlaneseq
      %v5023 = vshrl.u32 %v5022, 7
      %v5024 = vsub.s32 0, %v5023
      %v5025 = vrot.slane %v5020, %v5024
      %v5027 = vmul.f32 %v5019, %v5025
      %v5028 = vld [vmem:[%s7] sm:$0x1]
      %v5030 = vlaneseq
      %v5031 = vshrl.u32 %v5030, 7
      %v5032 = vsub.s32 0, %v5031
      %v5033 = vrot.slane %v5028, %v5032
      %v5035 = vadd.f32 %v5027, %v5033
      %5036 = vst.msk [vmem:[#allocation5] sm:$0x3] %vm412, %v5035
    $region41: #{tpu_custom_call.1} parent=1 // pred_fallthru
      _
    // Predicated region
    $region42: #{tpu_custom_call.1} parent=1 // pred_check
      _
    $region43: #{tpu_custom_call.1} parent=1 // pred_check_branch
      %5038 = sbr.rel (0) target = $region45
    $region44: #{tpu_custom_call.1} parent=1 // pred_region
      %s5040 = ssub.s32 32, 32
      %5041 = vsyncadd [#allocation6], %s5040
      %s5043 = sshll.u32 [#allocation5], 4
      %s5044 = int_to_ptr.vmem [resolvable:$true] %s5043
      %5046 = dma.vmem_to_hbm [thread:$0]  %s5044, 32, %s8, [#allocation6]
    $region45: #{tpu_custom_call.1} parent=1 // pred_fallthru
      _
    // Predicated region
    $region46: #{tpu_custom_call.1} parent=1 // pred_check
      _
    $region47: #{tpu_custom_call.1} parent=1 // pred_check_branch
      %5048 = sbr.rel (0) target = $region49
    $region48: #{tpu_custom_call.1} parent=1 // pred_region
      %5049 = dma.done [#allocation6], 32
    $region49: #{tpu_custom_call.1} parent=1 // pred_fallthru
      _
    %5050 = vsyncpa [#allocation6], 1

</llo_original>
